<compile_context>
chip_gen: v6e
topology: v6e:2x2x1
jax: 0.10.0
libtpu: 0.0.40
codegen_flags: <defaults>
</compile_context>

<pallas_src>
import jax
import jax.numpy as jnp
from jax.experimental import pallas as pl
from jax.experimental.pallas import tpu as pltpu


def _round_up(x, m):
    return (x + m - 1) // m * m


def _gru_decoder_kernel(seq_ref, h0_ref, emb_ref, w_ih_ref, w_hh_ref,
                        b_in_ref, b_hn_ref, w_out_ref, b_out_ref,
                        logp_ref, hT_ref, h_seq_ref):
    bb, T = seq_ref.shape
    V, Dp = emb_ref.shape
    Hp = h0_ref.shape[1]
    f32 = jnp.float32
    wdtype = emb_ref.dtype

    # ---- embedding lookup via one-hot matmul in the native weight dtype ----
    # TODO(synk): for large V replace with a DMA gather of a precomputed
    #             (V, 3*Hp) emb @ W_ih table (scalar-prefetched seq ids).
    tok = seq_ref[...]                                               # (bb, T) int32
    vocab_iota = jax.lax.broadcasted_iota(jnp.int32, (bb, T, V), 2)
    onehot = (vocab_iota == tok[:, :, None]).astype(wdtype)          # (bb, T, V)
    x_all = jnp.dot(onehot.reshape(bb * T, V), emb_ref[...],
                    preferred_element_type=wdtype)                   # (bb*T, Dp)

    # ---- fused input-side gate projection over all bb*T tokens ----
    # b_in already contains b_ih for all gates plus b_hh for r,z (folded).
    gx = (jnp.dot(x_all, w_ih_ref[...], preferred_element_type=f32)
          + b_in_ref[...].astype(f32))                               # (bb*T, 3*Hp)
    gx = gx.reshape(bb, T, 3 * Hp)

    w_hh = w_hh_ref[...]                                             # resident, native dtype
    b_hn = b_hn_ref[...].astype(f32)                                 # (1, Hp)

    # ---- GRU recurrence (PyTorch gate order r,z,n): ONE fused matmul/step ----
    h = h0_ref[...].astype(f32)                                      # (bb, Hp), f32 state
    for t in range(T):  # TODO(synk): lax.fori_loop + VMEM gx scratch for long T
        gh = jnp.dot(h.astype(w_hh.dtype), w_hh,
                     preferred_element_type=f32)                     # (bb, 3*Hp)
        gx_t = gx[:, t, :]
        r = jax.nn.sigmoid(gx_t[:, :Hp] + gh[:, :Hp])
        z = jax.nn.sigmoid(gx_t[:, Hp:2 * Hp] + gh[:, Hp:2 * Hp])
        n = jnp.tanh(gx_t[:, 2 * Hp:] + r * (gh[:, 2 * Hp:] + b_hn))
        h = (1.0 - z) * n + z * h
        h_seq_ref[:, t, :] = h                                       # small f32 scratch

    hT_ref[...] = h.astype(hT_ref.dtype)                             # stays f32

    # ---- output projection + log_softmax, batched over all bb*T tokens ----
    h_seq = h_seq_ref[...].reshape(bb * T, Hp)
    decoded = (jnp.dot(h_seq.astype(w_out_ref.dtype), w_out_ref[...],
                       preferred_element_type=f32)
               + b_out_ref[...].astype(f32))                         # (bb*T, Vp)
    m = jnp.max(decoded, axis=-1, keepdims=True)
    lse = m + jnp.log(jnp.sum(jnp.exp(decoded - m), axis=-1, keepdims=True))
    logp = decoded - lse
    logp_ref[...] = logp.reshape(bb, T, logp_ref.shape[2]).astype(logp_ref.dtype)


def gru_decoder_forward(seq, hidden, params, *, out_dtype=None):
    """Pallas implementation of GRUDecoder.forward.

    seq    : (B, T)    int token ids
    hidden : (1, B, H) GRU hidden state (num_layers = 1)
    returns (log_probs (B, T, V), hidden (1, B, H))
    """
    emb, w_x, w_h = params["emb"], params["w_x"], params["w_h"]
    b_x, b_h = params["b_x"], params["b_h"]
    w_out, b_out = params["w_out"], params["b_out"]

    B, T = seq.shape
    V, D = emb.shape
    H = w_h.shape[-1]
    h0 = hidden[0]
    wdtype = emb.dtype
    out_dtype = out_dtype or wdtype

    # ---- lane-dense padded layouts (multiples of 128 on the minor axes) ----
    Hp, Dp, Vp = _round_up(H, 128), _round_up(D, 128), _round_up(V, 128)

    def pad2(a, rows, cols):
        a = a.astype(wdtype)
        return jnp.pad(a, ((0, rows - a.shape[0]), (0, cols - a.shape[1])))

    # fused gate weights/biases, PyTorch gate order (r, z, n)
    w_ih = jnp.concatenate([pad2(w_x[g], Dp, Hp) for g in range(3)], axis=1)
    w_hh = jnp.concatenate([pad2(w_h[g], Hp, Hp) for g in range(3)], axis=1)
    b_in = jnp.concatenate(
        [pad2(b_x[g] + (b_h[g] if g < 2 else 0.0), 1, Hp) for g in range(3)], axis=1)
    b_hn = pad2(b_h[2], 1, Hp)

    emb_p = pad2(emb, V, Dp)
    w_out_p = pad2(w_out, Hp, Vp)
    b_out_p = jnp.pad(b_out.reshape(1, V).astype(wdtype), ((0, 0), (0, Vp - V)),
                      constant_values=-1e30)   # padded vocab never wins log_softmax

    # ---- batch block: fill the MXU (bb*T >= 256 rows when the batch allows)
    #      while keeping per-block tensors inside an explicit VMEM budget ----
    out_isz = jnp.dtype(out_dtype).itemsize
    w_isz = jnp.dtype(wdtype).itemsize
    bb = _round_up(max(8, (256 + T - 1) // T), 8)
    per_bb = T * Vp * (2 * out_isz + w_isz + 4) + T * (4 * Hp) * 4 + T * 4
    bb = min(bb, max(8, ((24 << 20) // max(per_bb, 1)) // 8 * 8))
    bb = min(bb, _round_up(B, 8))
    Bp = _round_up(B, bb)                      # pad batch instead of one huge block
    grid = (Bp // bb,)

    seq_p = jnp.pad(seq.astype(jnp.int32), ((0, Bp - B), (0, 0)))
    h0_p = jnp.pad(h0.astype(jnp.float32), ((0, Bp - B), (0, Hp - H)))

    # explicit VMEM budget (resident weights x2 buffers + streamed blocks +
    # scratch + big intermediates + margin), clamped to portable limits
    resident = (V * Dp + Dp * 3 * Hp + Hp * 3 * Hp + 4 * Hp + Hp * Vp + Vp) * w_isz
    streamed = 2 * bb * (T * 4 + Hp * 4 + T * Vp * out_isz + Hp * 4)
    scratch = bb * T * Hp * 4
    interm = bb * T * (V * w_isz + 3 * Hp * 4 + 2 * Vp * 4)
    vmem_limit = int(min(max(2 * resident + streamed + scratch + interm + (8 << 20),
                             32 << 20), 64 << 20))

    logp, hT = pl.pallas_call(
        _gru_decoder_kernel,
        out_shape=(
            jax.ShapeDtypeStruct((Bp, T, Vp), out_dtype),
            jax.ShapeDtypeStruct((Bp, Hp), jnp.float32),   # keep hT in f32
        ),
        grid_spec=pltpu.PrefetchScalarGridSpec(
            num_scalar_prefetch=0,
            grid=grid,
            in_specs=[
                pl.BlockSpec((bb, T), lambda i: (i, 0)),           # seq
                pl.BlockSpec((bb, Hp), lambda i: (i, 0)),          # h0
                pl.BlockSpec((V, Dp), lambda i: (0, 0)),           # embedding (resident)
                pl.BlockSpec((Dp, 3 * Hp), lambda i: (0, 0)),      # fused W_ih^T
                pl.BlockSpec((Hp, 3 * Hp), lambda i: (0, 0)),      # fused W_hh^T
                pl.BlockSpec((1, 3 * Hp), lambda i: (0, 0)),       # fused b_ih (+ b_hh r,z)
                pl.BlockSpec((1, Hp), lambda i: (0, 0)),           # b_hn
                pl.BlockSpec((Hp, Vp), lambda i: (0, 0)),          # linear weight^T
                pl.BlockSpec((1, Vp), lambda i: (0, 0)),           # linear bias
            ],
            out_specs=(
                pl.BlockSpec((bb, T, Vp), lambda i: (i, 0, 0)),    # log_softmax out
                pl.BlockSpec((bb, Hp), lambda i: (i, 0)),          # final hidden
            ),
            scratch_shapes=[pltpu.VMEM((bb, T, Hp), jnp.float32)], # per-step hiddens
        ),
        compiler_params=pltpu.CompilerParams(
            dimension_semantics=("parallel",),
            vmem_limit_bytes=vmem_limit),
    )(seq_p, h0_p, emb_p, w_ih, w_hh, b_in, b_hn, w_out_p, b_out_p)

    return logp[:B, :, :V], hT[:B, :H][None].astype(hidden.dtype)


def _reference(seq, hidden, params):
    """Pure-JAX reference matching torch's GRU / log_softmax semantics."""
    emb, w_x, w_h = params["emb"], params["w_x"], params["w_h"]
    b_x, b_h = params["b_x"], params["b_h"]
    x = emb[seq]                                                    # (B, T, D)
    h0 = hidden[0]

    def step(h, x_t):
        r = jax.nn.sigmoid(x_t @ w_x[0] + b_x[0] + h @ w_h[0] + b_h[0])
        z = jax.nn.sigmoid(x_t @ w_x[1] + b_x[1] + h @ w_h[1] + b_h[1])
        n = jnp.tanh(x_t @ w_x[2] + b_x[2] + r * (h @ w_h[2] + b_h[2]))
        h_new = (1.0 - z) * n + z * h
        return h_new, h_new

    hT, h_seq = jax.lax.scan(step, h0, jnp.swapaxes(x, 0, 1))
    h_seq = jnp.swapaxes(h_seq, 0, 1)                               # (B, T, H)
    decoded = h_seq @ params["w_out"] + params["b_out"]
    return jax.nn.log_softmax(decoded, axis=-1), hT[None]


if __name__ == "__main__":
    # GRUDecoder(n_tokens=128, d_model=32, hidden_size=32); batch=2, seq=8.
    N_TOKENS, D_MODEL, HIDDEN = 128, 32, 32
    B, T = 2, 8

    key = jax.random.PRNGKey(0)
    ks = jax.random.split(key, 8)

    initrange = 0.1
    kH = 1.0 / (HIDDEN ** 0.5)
    params = {
        "emb":   jax.random.uniform(ks[0], (N_TOKENS, D_MODEL), jnp.float32, -initrange, initrange),
        "w_x":   jax.random.uniform(ks[1], (3, D_MODEL, HIDDEN), jnp.float32, -kH, kH),
        "w_h":   jax.random.uniform(ks[2], (3, HIDDEN, HIDDEN), jnp.float32, -kH, kH),
        "b_x":   jax.random.uniform(ks[3], (3, 1, HIDDEN), jnp.float32, -kH, kH),
        "b_h":   jax.random.uniform(ks[4], (3, 1, HIDDEN), jnp.float32, -kH, kH),
        "w_out": jax.random.uniform(ks[5], (HIDDEN, N_TOKENS), jnp.float32, -initrange, initrange),
        "b_out": jnp.zeros((1, N_TOKENS), jnp.float32),             # linear bias zero-init
    }

    seq = jax.random.randint(ks[6], (B, T), 0, N_TOKENS, dtype=jnp.int32)
    hidden = jax.random.normal(ks[7], (1, B, HIDDEN), jnp.float32) * 0.1

    logp, h_out = gru_decoder_forward(seq, hidden, params)
    jax.block_until_ready((logp, h_out))

    logp_ref, h_ref = _reference(seq, hidden, params)

    assert logp.shape == (B, T, N_TOKENS) and h_out.shape == (1, B, HIDDEN)
    assert jnp.allclose(logp, logp_ref, rtol=1e-3, atol=1e-3), float(
        jnp.max(jnp.abs(logp - logp_ref)))
    assert jnp.allclose(h_out, h_ref, rtol=1e-3, atol=1e-3), float(
        jnp.max(jnp.abs(h_out - h_ref)))
    # log-probabilities must normalize along the vocab axis
    assert jnp.allclose(jnp.sum(jnp.exp(logp), axis=-1), 1.0, atol=1e-3)

    print("KERNEL_OK")
</pallas_src>

<mosaic_0001>
module attributes {stable_mosaic.version = 11 : i64} {
  func.func @_gru_decoder_kernel(%arg0: i32, %arg1: memref<8x8xi32, #tpu.memory_space<vmem>>, %arg2: memref<8x128xf32, #tpu.memory_space<vmem>>, %arg3: memref<128x128xf32, #tpu.memory_space<vmem>>, %arg4: memref<128x384xf32, #tpu.memory_space<vmem>>, %arg5: memref<128x384xf32, #tpu.memory_space<vmem>>, %arg6: memref<1x384xf32, #tpu.memory_space<vmem>>, %arg7: memref<1x128xf32, #tpu.memory_space<vmem>>, %arg8: memref<128x128xf32, #tpu.memory_space<vmem>>, %arg9: memref<1x128xf32, #tpu.memory_space<vmem>>, %arg10: memref<8x8x128xf32, #tpu.memory_space<vmem>>, %arg11: memref<8x128xf32, #tpu.memory_space<vmem>>, %arg12: memref<8x8x128xf32, #tpu.memory_space<vmem>>) attributes {dimension_semantics = [#tpu.dimension_semantics<parallel>], iteration_bounds = array<i64: 1>, scalar_prefetch = 0 : i64, scratch_operands = 1 : i64, tpu.core_type = #tpu.core_type<tc>, window_params = [{transform_indices = @transform_0, window_bounds = array<i64: 8, 8>}, {transform_indices = @transform_1, window_bounds = array<i64: 8, 128>}, {pipeline_mode = #tpu.pipeline_mode<synchronous>, transform_indices = @transform_2, window_bounds = array<i64: 128, 128>}, {pipeline_mode = #tpu.pipeline_mode<synchronous>, transform_indices = @transform_3, window_bounds = array<i64: 128, 384>}, {pipeline_mode = #tpu.pipeline_mode<synchronous>, transform_indices = @transform_4, window_bounds = array<i64: 128, 384>}, {pipeline_mode = #tpu.pipeline_mode<synchronous>, transform_indices = @transform_5, window_bounds = array<i64: 1, 384>}, {pipeline_mode = #tpu.pipeline_mode<synchronous>, transform_indices = @transform_6, window_bounds = array<i64: 1, 128>}, {pipeline_mode = #tpu.pipeline_mode<synchronous>, transform_indices = @transform_7, window_bounds = array<i64: 128, 128>}, {pipeline_mode = #tpu.pipeline_mode<synchronous>, transform_indices = @transform_8, window_bounds = array<i64: 1, 128>}, {transform_indices = @transform_9, window_bounds = array<i64: 8, 8, 128>}, {transform_indices = @transform_10, window_bounds = array<i64: 8, 128>}]} {
    %c0 = arith.constant 0 : index
    %c0_0 = arith.constant 0 : index
    %0 = vector.load %arg1[%c0, %c0_0] : memref<8x8xi32, #tpu.memory_space<vmem>>, vector<8x8xi32>
    %1 = tpu.iota {dimensions = array<i32: 2>} : vector<8x8x128xi32>
    %2 = vector.shape_cast %0 : vector<8x8xi32> to vector<8x8x1xi32>
    %3 = vector.broadcast %2 : vector<8x8x1xi32> to vector<8x8x128xi32>
    %4 = arith.cmpi eq, %1, %3 : vector<8x8x128xi32>
    %5 = arith.extui %4 : vector<8x8x128xi1> to vector<8x8x128xi32>
    %6 = arith.sitofp %5 : vector<8x8x128xi32> to vector<8x8x128xf32>
    %7 = vector.shape_cast %6 : vector<8x8x128xf32> to vector<64x128xf32>
    %c0_1 = arith.constant 0 : index
    %c0_2 = arith.constant 0 : index
    %8 = vector.load %arg3[%c0_1, %c0_2] : memref<128x128xf32, #tpu.memory_space<vmem>>, vector<128x128xf32>
    %cst = arith.constant dense<0.000000e+00> : vector<64x128xf32>
    %9 = tpu.matmul %7, %8, %cst {dimension_numbers = #tpu.dot_dimension_numbers<[1], [0], [0], [1], [0, 0, 1, 1], [], []>} : vector<64x128xf32>, vector<128x128xf32>, vector<64x128xf32> -> vector<64x128xf32>
    %c0_3 = arith.constant 0 : index
    %c0_4 = arith.constant 0 : index
    %10 = vector.load %arg4[%c0_3, %c0_4] : memref<128x384xf32, #tpu.memory_space<vmem>>, vector<128x384xf32>
    %cst_5 = arith.constant dense<0.000000e+00> : vector<64x384xf32>
    %11 = tpu.matmul %9, %10, %cst_5 {dimension_numbers = #tpu.dot_dimension_numbers<[1], [0], [0], [1], [0, 0, 1, 1], [], []>} : vector<64x128xf32>, vector<128x384xf32>, vector<64x384xf32> -> vector<64x384xf32>
    %c0_6 = arith.constant 0 : index
    %c0_7 = arith.constant 0 : index
    %12 = vector.load %arg6[%c0_6, %c0_7] : memref<1x384xf32, #tpu.memory_space<vmem>>, vector<1x384xf32>
    %13 = vector.broadcast %12 : vector<1x384xf32> to vector<64x384xf32>
    %14 = arith.addf %11, %13 : vector<64x384xf32>
    %15 = vector.shape_cast %14 : vector<64x384xf32> to vector<8x8x384xf32>
    %c0_8 = arith.constant 0 : index
    %c0_9 = arith.constant 0 : index
    %16 = vector.load %arg5[%c0_8, %c0_9] : memref<128x384xf32, #tpu.memory_space<vmem>>, vector<128x384xf32>
    %c0_10 = arith.constant 0 : index
    %c0_11 = arith.constant 0 : index
    %17 = vector.load %arg7[%c0_10, %c0_11] : memref<1x128xf32, #tpu.memory_space<vmem>>, vector<1x128xf32>
    %c0_12 = arith.constant 0 : index
    %c0_13 = arith.constant 0 : index
    %18 = vector.load %arg2[%c0_12, %c0_13] : memref<8x128xf32, #tpu.memory_space<vmem>>, vector<8x128xf32>
    %cst_14 = arith.constant dense<0.000000e+00> : vector<8x384xf32>
    %19 = tpu.matmul %18, %16, %cst_14 {dimension_numbers = #tpu.dot_dimension_numbers<[1], [0], [0], [1], [0, 0, 1, 1], [], []>} : vector<8x128xf32>, vector<128x384xf32>, vector<8x384xf32> -> vector<8x384xf32>
    %20 = vector.extract_strided_slice %15 {offsets = [0, 0, 0], sizes = [8, 1, 384], strides = [1, 1, 1]} : vector<8x8x384xf32> to vector<8x1x384xf32>
    %21 = vector.shape_cast %20 : vector<8x1x384xf32> to vector<8x384xf32>
    %22 = vector.extract_strided_slice %21 {offsets = [0, 0], sizes = [8, 128], strides = [1, 1]} : vector<8x384xf32> to vector<8x128xf32>
    %23 = vector.extract_strided_slice %19 {offsets = [0, 0], sizes = [8, 128], strides = [1, 1]} : vector<8x384xf32> to vector<8x128xf32>
    %24 = arith.addf %22, %23 : vector<8x128xf32>
    %25 = arith.negf %24 : vector<8x128xf32>
    %26 = math.exp %25 : vector<8x128xf32>
    %cst_15 = arith.constant 1.000000e+00 : f32
    %27 = vector.broadcast %cst_15 : f32 to vector<8x128xf32>
    %28 = arith.addf %27, %26 : vector<8x128xf32>
    %29 = arith.divf %27, %28 : vector<8x128xf32>
    %30 = vector.extract_strided_slice %21 {offsets = [0, 128], sizes = [8, 128], strides = [1, 1]} : vector<8x384xf32> to vector<8x128xf32>
    %31 = vector.extract_strided_slice %19 {offsets = [0, 128], sizes = [8, 128], strides = [1, 1]} : vector<8x384xf32> to vector<8x128xf32>
    %32 = arith.addf %30, %31 : vector<8x128xf32>
    %33 = arith.negf %32 : vector<8x128xf32>
    %34 = math.exp %33 : vector<8x128xf32>
    %cst_16 = arith.constant 1.000000e+00 : f32
    %35 = vector.broadcast %cst_16 : f32 to vector<8x128xf32>
    %36 = arith.addf %35, %34 : vector<8x128xf32>
    %37 = arith.divf %35, %36 : vector<8x128xf32>
    %38 = vector.extract_strided_slice %21 {offsets = [0, 256], sizes = [8, 128], strides = [1, 1]} : vector<8x384xf32> to vector<8x128xf32>
    %39 = vector.extract_strided_slice %19 {offsets = [0, 256], sizes = [8, 128], strides = [1, 1]} : vector<8x384xf32> to vector<8x128xf32>
    %40 = vector.broadcast %17 : vector<1x128xf32> to vector<8x128xf32>
    %41 = arith.addf %39, %40 : vector<8x128xf32>
    %42 = arith.mulf %29, %41 : vector<8x128xf32>
    %43 = arith.addf %38, %42 : vector<8x128xf32>
    %44 = math.tanh %43 : vector<8x128xf32>
    %cst_17 = arith.constant 1.000000e+00 : f32
    %45 = vector.broadcast %cst_17 : f32 to vector<8x128xf32>
    %46 = arith.subf %45, %37 : vector<8x128xf32>
    %47 = arith.mulf %46, %44 : vector<8x128xf32>
    %48 = arith.mulf %37, %18 : vector<8x128xf32>
    %49 = arith.addf %47, %48 : vector<8x128xf32>
    %c0_18 = arith.constant 0 : index
    %c0_19 = arith.constant 0 : index
    %c0_20 = arith.constant 0 : index
    %50 = vector.load %arg12[%c0_18, %c0_19, %c0_20] : memref<8x8x128xf32, #tpu.memory_space<vmem>>, vector<8x1x128xf32>
    %51 = vector.shape_cast %50 : vector<8x1x128xf32> to vector<8x128xf32>
    %52 = vector.shape_cast %49 : vector<8x128xf32> to vector<8x1x128xf32>
    tpu.vector_store %arg12[%c0_18, %c0_19, %c0_20], %52 {strides = array<i32>} : memref<8x8x128xf32, #tpu.memory_space<vmem>>, vector<8x1x128xf32>,
    %cst_21 = arith.constant dense<0.000000e+00> : vector<8x384xf32>
    %53 = tpu.matmul %49, %16, %cst_21 {dimension_numbers = #tpu.dot_dimension_numbers<[1], [0], [0], [1], [0, 0, 1, 1], [], []>} : vector<8x128xf32>, vector<128x384xf32>, vector<8x384xf32> -> vector<8x384xf32>
    %54 = vector.extract_strided_slice %15 {offsets = [0, 1, 0], sizes = [8, 1, 384], strides = [1, 1, 1]} : vector<8x8x384xf32> to vector<8x1x384xf32>
    %55 = vector.shape_cast %54 : vector<8x1x384xf32> to vector<8x384xf32>
    %56 = vector.extract_strided_slice %55 {offsets = [0, 0], sizes = [8, 128], strides = [1, 1]} : vector<8x384xf32> to vector<8x128xf32>
    %57 = vector.extract_strided_slice %53 {offsets = [0, 0], sizes = [8, 128], strides = [1, 1]} : vector<8x384xf32> to vector<8x128xf32>
    %58 = arith.addf %56, %57 : vector<8x128xf32>
    %59 = arith.negf %58 : vector<8x128xf32>
    %60 = math.exp %59 : vector<8x128xf32>
    %cst_22 = arith.constant 1.000000e+00 : f32
    %61 = vector.broadcast %cst_22 : f32 to vector<8x128xf32>
    %62 = arith.addf %61, %60 : vector<8x128xf32>
    %63 = arith.divf %61, %62 : vector<8x128xf32>
    %64 = vector.extract_strided_slice %55 {offsets = [0, 128], sizes = [8, 128], strides = [1, 1]} : vector<8x384xf32> to vector<8x128xf32>
    %65 = vector.extract_strided_slice %53 {offsets = [0, 128], sizes = [8, 128], strides = [1, 1]} : vector<8x384xf32> to vector<8x128xf32>
    %66 = arith.addf %64, %65 : vector<8x128xf32>
    %67 = arith.negf %66 : vector<8x128xf32>
    %68 = math.exp %67 : vector<8x128xf32>
    %cst_23 = arith.constant 1.000000e+00 : f32
    %69 = vector.broadcast %cst_23 : f32 to vector<8x128xf32>
    %70 = arith.addf %69, %68 : vector<8x128xf32>
    %71 = arith.divf %69, %70 : vector<8x128xf32>
    %72 = vector.extract_strided_slice %55 {offsets = [0, 256], sizes = [8, 128], strides = [1, 1]} : vector<8x384xf32> to vector<8x128xf32>
    %73 = vector.extract_strided_slice %53 {offsets = [0, 256], sizes = [8, 128], strides = [1, 1]} : vector<8x384xf32> to vector<8x128xf32>
    %74 = vector.broadcast %17 : vector<1x128xf32> to vector<8x128xf32>
    %75 = arith.addf %73, %74 : vector<8x128xf32>
    %76 = arith.mulf %63, %75 : vector<8x128xf32>
    %77 = arith.addf %72, %76 : vector<8x128xf32>
    %78 = math.tanh %77 : vector<8x128xf32>
    %cst_24 = arith.constant 1.000000e+00 : f32
    %79 = vector.broadcast %cst_24 : f32 to vector<8x128xf32>
    %80 = arith.subf %79, %71 : vector<8x128xf32>
    %81 = arith.mulf %80, %78 : vector<8x128xf32>
    %82 = arith.mulf %71, %49 : vector<8x128xf32>
    %83 = arith.addf %81, %82 : vector<8x128xf32>
    %c0_25 = arith.constant 0 : index
    %c1 = arith.constant 1 : index
    %c0_26 = arith.constant 0 : index
    %84 = vector.load %arg12[%c0_25, %c1, %c0_26] : memref<8x8x128xf32, #tpu.memory_space<vmem>>, vector<8x1x128xf32>
    %85 = vector.shape_cast %84 : vector<8x1x128xf32> to vector<8x128xf32>
    %86 = vector.shape_cast %83 : vector<8x128xf32> to vector<8x1x128xf32>
    tpu.vector_store %arg12[%c0_25, %c1, %c0_26], %86 {strides = array<i32>} : memref<8x8x128xf32, #tpu.memory_space<vmem>>, vector<8x1x128xf32>,
    %cst_27 = arith.constant dense<0.000000e+00> : vector<8x384xf32>
    %87 = tpu.matmul %83, %16, %cst_27 {dimension_numbers = #tpu.dot_dimension_numbers<[1], [0], [0], [1], [0, 0, 1, 1], [], []>} : vector<8x128xf32>, vector<128x384xf32>, vector<8x384xf32> -> vector<8x384xf32>
    %88 = vector.extract_strided_slice %15 {offsets = [0, 2, 0], sizes = [8, 1, 384], strides = [1, 1, 1]} : vector<8x8x384xf32> to vector<8x1x384xf32>
    %89 = vector.shape_cast %88 : vector<8x1x384xf32> to vector<8x384xf32>
    %90 = vector.extract_strided_slice %89 {offsets = [0, 0], sizes = [8, 128], strides = [1, 1]} : vector<8x384xf32> to vector<8x128xf32>
    %91 = vector.extract_strided_slice %87 {offsets = [0, 0], sizes = [8, 128], strides = [1, 1]} : vector<8x384xf32> to vector<8x128xf32>
    %92 = arith.addf %90, %91 : vector<8x128xf32>
    %93 = arith.negf %92 : vector<8x128xf32>
    %94 = math.exp %93 : vector<8x128xf32>
    %cst_28 = arith.constant 1.000000e+00 : f32
    %95 = vector.broadcast %cst_28 : f32 to vector<8x128xf32>
    %96 = arith.addf %95, %94 : vector<8x128xf32>
    %97 = arith.divf %95, %96 : vector<8x128xf32>
    %98 = vector.extract_strided_slice %89 {offsets = [0, 128], sizes = [8, 128], strides = [1, 1]} : vector<8x384xf32> to vector<8x128xf32>
    %99 = vector.extract_strided_slice %87 {offsets = [0, 128], sizes = [8, 128], strides = [1, 1]} : vector<8x384xf32> to vector<8x128xf32>
    %100 = arith.addf %98, %99 : vector<8x128xf32>
    %101 = arith.negf %100 : vector<8x128xf32>
    %102 = math.exp %101 : vector<8x128xf32>
    %cst_29 = arith.constant 1.000000e+00 : f32
    %103 = vector.broadcast %cst_29 : f32 to vector<8x128xf32>
    %104 = arith.addf %103, %102 : vector<8x128xf32>
    %105 = arith.divf %103, %104 : vector<8x128xf32>
    %106 = vector.extract_strided_slice %89 {offsets = [0, 256], sizes = [8, 128], strides = [1, 1]} : vector<8x384xf32> to vector<8x128xf32>
    %107 = vector.extract_strided_slice %87 {offsets = [0, 256], sizes = [8, 128], strides = [1, 1]} : vector<8x384xf32> to vector<8x128xf32>
    %108 = vector.broadcast %17 : vector<1x128xf32> to vector<8x128xf32>
    %109 = arith.addf %107, %108 : vector<8x128xf32>
    %110 = arith.mulf %97, %109 : vector<8x128xf32>
    %111 = arith.addf %106, %110 : vector<8x128xf32>
    %112 = math.tanh %111 : vector<8x128xf32>
    %cst_30 = arith.constant 1.000000e+00 : f32
    %113 = vector.broadcast %cst_30 : f32 to vector<8x128xf32>
    %114 = arith.subf %113, %105 : vector<8x128xf32>
    %115 = arith.mulf %114, %112 : vector<8x128xf32>
    %116 = arith.mulf %105, %83 : vector<8x128xf32>
    %117 = arith.addf %115, %116 : vector<8x128xf32>
    %c0_31 = arith.constant 0 : index
    %c2 = arith.constant 2 : index
    %c0_32 = arith.constant 0 : index
    %118 = vector.load %arg12[%c0_31, %c2, %c0_32] : memref<8x8x128xf32, #tpu.memory_space<vmem>>, vector<8x1x128xf32>
    %119 = vector.shape_cast %118 : vector<8x1x128xf32> to vector<8x128xf32>
    %120 = vector.shape_cast %117 : vector<8x128xf32> to vector<8x1x128xf32>
    tpu.vector_store %arg12[%c0_31, %c2, %c0_32], %120 {strides = array<i32>} : memref<8x8x128xf32, #tpu.memory_space<vmem>>, vector<8x1x128xf32>,
    %cst_33 = arith.constant dense<0.000000e+00> : vector<8x384xf32>
    %121 = tpu.matmul %117, %16, %cst_33 {dimension_numbers = #tpu.dot_dimension_numbers<[1], [0], [0], [1], [0, 0, 1, 1], [], []>} : vector<8x128xf32>, vector<128x384xf32>, vector<8x384xf32> -> vector<8x384xf32>
    %122 = vector.extract_strided_slice %15 {offsets = [0, 3, 0], sizes = [8, 1, 384], strides = [1, 1, 1]} : vector<8x8x384xf32> to vector<8x1x384xf32>
    %123 = vector.shape_cast %122 : vector<8x1x384xf32> to vector<8x384xf32>
    %124 = vector.extract_strided_slice %123 {offsets = [0, 0], sizes = [8, 128], strides = [1, 1]} : vector<8x384xf32> to vector<8x128xf32>
    %125 = vector.extract_strided_slice %121 {offsets = [0, 0], sizes = [8, 128], strides = [1, 1]} : vector<8x384xf32> to vector<8x128xf32>
    %126 = arith.addf %124, %125 : vector<8x128xf32>
    %127 = arith.negf %126 : vector<8x128xf32>
    %128 = math.exp %127 : vector<8x128xf32>
    %cst_34 = arith.constant 1.000000e+00 : f32
    %129 = vector.broadcast %cst_34 : f32 to vector<8x128xf32>
    %130 = arith.addf %129, %128 : vector<8x128xf32>
    %131 = arith.divf %129, %130 : vector<8x128xf32>
    %132 = vector.extract_strided_slice %123 {offsets = [0, 128], sizes = [8, 128], strides = [1, 1]} : vector<8x384xf32> to vector<8x128xf32>
    %133 = vector.extract_strided_slice %121 {offsets = [0, 128], sizes = [8, 128], strides = [1, 1]} : vector<8x384xf32> to vector<8x128xf32>
    %134 = arith.addf %132, %133 : vector<8x128xf32>
    %135 = arith.negf %134 : vector<8x128xf32>
    %136 = math.exp %135 : vector<8x128xf32>
    %cst_35 = arith.constant 1.000000e+00 : f32
    %137 = vector.broadcast %cst_35 : f32 to vector<8x128xf32>
    %138 = arith.addf %137, %136 : vector<8x128xf32>
    %139 = arith.divf %137, %138 : vector<8x128xf32>
    %140 = vector.extract_strided_slice %123 {offsets = [0, 256], sizes = [8, 128], strides = [1, 1]} : vector<8x384xf32> to vector<8x128xf32>
    %141 = vector.extract_strided_slice %121 {offsets = [0, 256], sizes = [8, 128], strides = [1, 1]} : vector<8x384xf32> to vector<8x128xf32>
    %142 = vector.broadcast %17 : vector<1x128xf32> to vector<8x128xf32>
    %143 = arith.addf %141, %142 : vector<8x128xf32>
    %144 = arith.mulf %131, %143 : vector<8x128xf32>
    %145 = arith.addf %140, %144 : vector<8x128xf32>
    %146 = math.tanh %145 : vector<8x128xf32>
    %cst_36 = arith.constant 1.000000e+00 : f32
    %147 = vector.broadcast %cst_36 : f32 to vector<8x128xf32>
    %148 = arith.subf %147, %139 : vector<8x128xf32>
    %149 = arith.mulf %148, %146 : vector<8x128xf32>
    %150 = arith.mulf %139, %117 : vector<8x128xf32>
    %151 = arith.addf %149, %150 : vector<8x128xf32>
    %c0_37 = arith.constant 0 : index
    %c3 = arith.constant 3 : index
    %c0_38 = arith.constant 0 : index
    %152 = vector.load %arg12[%c0_37, %c3, %c0_38] : memref<8x8x128xf32, #tpu.memory_space<vmem>>, vector<8x1x128xf32>
    %153 = vector.shape_cast %152 : vector<8x1x128xf32> to vector<8x128xf32>
    %154 = vector.shape_cast %151 : vector<8x128xf32> to vector<8x1x128xf32>
    tpu.vector_store %arg12[%c0_37, %c3, %c0_38], %154 {strides = array<i32>} : memref<8x8x128xf32, #tpu.memory_space<vmem>>, vector<8x1x128xf32>,
    %cst_39 = arith.constant dense<0.000000e+00> : vector<8x384xf32>
    %155 = tpu.matmul %151, %16, %cst_39 {dimension_numbers = #tpu.dot_dimension_numbers<[1], [0], [0], [1], [0, 0, 1, 1], [], []>} : vector<8x128xf32>, vector<128x384xf32>, vector<8x384xf32> -> vector<8x384xf32>
    %156 = vector.extract_strided_slice %15 {offsets = [0, 4, 0], sizes = [8, 1, 384], strides = [1, 1, 1]} : vector<8x8x384xf32> to vector<8x1x384xf32>
    %157 = vector.shape_cast %156 : vector<8x1x384xf32> to vector<8x384xf32>
    %158 = vector.extract_strided_slice %157 {offsets = [0, 0], sizes = [8, 128], strides = [1, 1]} : vector<8x384xf32> to vector<8x128xf32>
    %159 = vector.extract_strided_slice %155 {offsets = [0, 0], sizes = [8, 128], strides = [1, 1]} : vector<8x384xf32> to vector<8x128xf32>
    %160 = arith.addf %158, %159 : vector<8x128xf32>
    %161 = arith.negf %160 : vector<8x128xf32>
    %162 = math.exp %161 : vector<8x128xf32>
    %cst_40 = arith.constant 1.000000e+00 : f32
    %163 = vector.broadcast %cst_40 : f32 to vector<8x128xf32>
    %164 = arith.addf %163, %162 : vector<8x128xf32>
    %165 = arith.divf %163, %164 : vector<8x128xf32>
    %166 = vector.extract_strided_slice %157 {offsets = [0, 128], sizes = [8, 128], strides = [1, 1]} : vector<8x384xf32> to vector<8x128xf32>
    %167 = vector.extract_strided_slice %155 {offsets = [0, 128], sizes = [8, 128], strides = [1, 1]} : vector<8x384xf32> to vector<8x128xf32>
    %168 = arith.addf %166, %167 : vector<8x128xf32>
    %169 = arith.negf %168 : vector<8x128xf32>
    %170 = math.exp %169 : vector<8x128xf32>
    %cst_41 = arith.constant 1.000000e+00 : f32
    %171 = vector.broadcast %cst_41 : f32 to vector<8x128xf32>
    %172 = arith.addf %171, %170 : vector<8x128xf32>
    %173 = arith.divf %171, %172 : vector<8x128xf32>
    %174 = vector.extract_strided_slice %157 {offsets = [0, 256], sizes = [8, 128], strides = [1, 1]} : vector<8x384xf32> to vector<8x128xf32>
    %175 = vector.extract_strided_slice %155 {offsets = [0, 256], sizes = [8, 128], strides = [1, 1]} : vector<8x384xf32> to vector<8x128xf32>
    %176 = vector.broadcast %17 : vector<1x128xf32> to vector<8x128xf32>
    %177 = arith.addf %175, %176 : vector<8x128xf32>
    %178 = arith.mulf %165, %177 : vector<8x128xf32>
    %179 = arith.addf %174, %178 : vector<8x128xf32>
    %180 = math.tanh %179 : vector<8x128xf32>
    %cst_42 = arith.constant 1.000000e+00 : f32
    %181 = vector.broadcast %cst_42 : f32 to vector<8x128xf32>
    %182 = arith.subf %181, %173 : vector<8x128xf32>
    %183 = arith.mulf %182, %180 : vector<8x128xf32>
    %184 = arith.mulf %173, %151 : vector<8x128xf32>
    %185 = arith.addf %183, %184 : vector<8x128xf32>
    %c0_43 = arith.constant 0 : index
    %c4 = arith.constant 4 : index
    %c0_44 = arith.constant 0 : index
    %186 = vector.load %arg12[%c0_43, %c4, %c0_44] : memref<8x8x128xf32, #tpu.memory_space<vmem>>, vector<8x1x128xf32>
    %187 = vector.shape_cast %186 : vector<8x1x128xf32> to vector<8x128xf32>
    %188 = vector.shape_cast %185 : vector<8x128xf32> to vector<8x1x128xf32>
    tpu.vector_store %arg12[%c0_43, %c4, %c0_44], %188 {strides = array<i32>} : memref<8x8x128xf32, #tpu.memory_space<vmem>>, vector<8x1x128xf32>,
    %cst_45 = arith.constant dense<0.000000e+00> : vector<8x384xf32>
    %189 = tpu.matmul %185, %16, %cst_45 {dimension_numbers = #tpu.dot_dimension_numbers<[1], [0], [0], [1], [0, 0, 1, 1], [], []>} : vector<8x128xf32>, vector<128x384xf32>, vector<8x384xf32> -> vector<8x384xf32>
    %190 = vector.extract_strided_slice %15 {offsets = [0, 5, 0], sizes = [8, 1, 384], strides = [1, 1, 1]} : vector<8x8x384xf32> to vector<8x1x384xf32>
    %191 = vector.shape_cast %190 : vector<8x1x384xf32> to vector<8x384xf32>
    %192 = vector.extract_strided_slice %191 {offsets = [0, 0], sizes = [8, 128], strides = [1, 1]} : vector<8x384xf32> to vector<8x128xf32>
    %193 = vector.extract_strided_slice %189 {offsets = [0, 0], sizes = [8, 128], strides = [1, 1]} : vector<8x384xf32> to vector<8x128xf32>
    %194 = arith.addf %192, %193 : vector<8x128xf32>
    %195 = arith.negf %194 : vector<8x128xf32>
    %196 = math.exp %195 : vector<8x128xf32>
    %cst_46 = arith.constant 1.000000e+00 : f32
    %197 = vector.broadcast %cst_46 : f32 to vector<8x128xf32>
    %198 = arith.addf %197, %196 : vector<8x128xf32>
    %199 = arith.divf %197, %198 : vector<8x128xf32>
    %200 = vector.extract_strided_slice %191 {offsets = [0, 128], sizes = [8, 128], strides = [1, 1]} : vector<8x384xf32> to vector<8x128xf32>
    %201 = vector.extract_strided_slice %189 {offsets = [0, 128], sizes = [8, 128], strides = [1, 1]} : vector<8x384xf32> to vector<8x128xf32>
    %202 = arith.addf %200, %201 : vector<8x128xf32>
    %203 = arith.negf %202 : vector<8x128xf32>
    %204 = math.exp %203 : vector<8x128xf32>
    %cst_47 = arith.constant 1.000000e+00 : f32
    %205 = vector.broadcast %cst_47 : f32 to vector<8x128xf32>
    %206 = arith.addf %205, %204 : vector<8x128xf32>
    %207 = arith.divf %205, %206 : vector<8x128xf32>
    %208 = vector.extract_strided_slice %191 {offsets = [0, 256], sizes = [8, 128], strides = [1, 1]} : vector<8x384xf32> to vector<8x128xf32>
    %209 = vector.extract_strided_slice %189 {offsets = [0, 256], sizes = [8, 128], strides = [1, 1]} : vector<8x384xf32> to vector<8x128xf32>
    %210 = vector.broadcast %17 : vector<1x128xf32> to vector<8x128xf32>
    %211 = arith.addf %209, %210 : vector<8x128xf32>
    %212 = arith.mulf %199, %211 : vector<8x128xf32>
    %213 = arith.addf %208, %212 : vector<8x128xf32>
    %214 = math.tanh %213 : vector<8x128xf32>
    %cst_48 = arith.constant 1.000000e+00 : f32
    %215 = vector.broadcast %cst_48 : f32 to vector<8x128xf32>
    %216 = arith.subf %215, %207 : vector<8x128xf32>
    %217 = arith.mulf %216, %214 : vector<8x128xf32>
    %218 = arith.mulf %207, %185 : vector<8x128xf32>
    %219 = arith.addf %217, %218 : vector<8x128xf32>
    %c0_49 = arith.constant 0 : index
    %c5 = arith.constant 5 : index
    %c0_50 = arith.constant 0 : index
    %220 = vector.load %arg12[%c0_49, %c5, %c0_50] : memref<8x8x128xf32, #tpu.memory_space<vmem>>, vector<8x1x128xf32>
    %221 = vector.shape_cast %220 : vector<8x1x128xf32> to vector<8x128xf32>
    %222 = vector.shape_cast %219 : vector<8x128xf32> to vector<8x1x128xf32>
    tpu.vector_store %arg12[%c0_49, %c5, %c0_50], %222 {strides = array<i32>} : memref<8x8x128xf32, #tpu.memory_space<vmem>>, vector<8x1x128xf32>,
    %cst_51 = arith.constant dense<0.000000e+00> : vector<8x384xf32>
    %223 = tpu.matmul %219, %16, %cst_51 {dimension_numbers = #tpu.dot_dimension_numbers<[1], [0], [0], [1], [0, 0, 1, 1], [], []>} : vector<8x128xf32>, vector<128x384xf32>, vector<8x384xf32> -> vector<8x384xf32>
    %224 = vector.extract_strided_slice %15 {offsets = [0, 6, 0], sizes = [8, 1, 384], strides = [1, 1, 1]} : vector<8x8x384xf32> to vector<8x1x384xf32>
    %225 = vector.shape_cast %224 : vector<8x1x384xf32> to vector<8x384xf32>
    %226 = vector.extract_strided_slice %225 {offsets = [0, 0], sizes = [8, 128], strides = [1, 1]} : vector<8x384xf32> to vector<8x128xf32>
    %227 = vector.extract_strided_slice %223 {offsets = [0, 0], sizes = [8, 128], strides = [1, 1]} : vector<8x384xf32> to vector<8x128xf32>
    %228 = arith.addf %226, %227 : vector<8x128xf32>
    %229 = arith.negf %228 : vector<8x128xf32>
    %230 = math.exp %229 : vector<8x128xf32>
    %cst_52 = arith.constant 1.000000e+00 : f32
    %231 = vector.broadcast %cst_52 : f32 to vector<8x128xf32>
    %232 = arith.addf %231, %230 : vector<8x128xf32>
    %233 = arith.divf %231, %232 : vector<8x128xf32>
    %234 = vector.extract_strided_slice %225 {offsets = [0, 128], sizes = [8, 128], strides = [1, 1]} : vector<8x384xf32> to vector<8x128xf32>
    %235 = vector.extract_strided_slice %223 {offsets = [0, 128], sizes = [8, 128], strides = [1, 1]} : vector<8x384xf32> to vector<8x128xf32>
    %236 = arith.addf %234, %235 : vector<8x128xf32>
    %237 = arith.negf %236 : vector<8x128xf32>
    %238 = math.exp %237 : vector<8x128xf32>
    %cst_53 = arith.constant 1.000000e+00 : f32
    %239 = vector.broadcast %cst_53 : f32 to vector<8x128xf32>
    %240 = arith.addf %239, %238 : vector<8x128xf32>
    %241 = arith.divf %239, %240 : vector<8x128xf32>
    %242 = vector.extract_strided_slice %225 {offsets = [0, 256], sizes = [8, 128], strides = [1, 1]} : vector<8x384xf32> to vector<8x128xf32>
    %243 = vector.extract_strided_slice %223 {offsets = [0, 256], sizes = [8, 128], strides = [1, 1]} : vector<8x384xf32> to vector<8x128xf32>
    %244 = vector.broadcast %17 : vector<1x128xf32> to vector<8x128xf32>
    %245 = arith.addf %243, %244 : vector<8x128xf32>
    %246 = arith.mulf %233, %245 : vector<8x128xf32>
    %247 = arith.addf %242, %246 : vector<8x128xf32>
    %248 = math.tanh %247 : vector<8x128xf32>
    %cst_54 = arith.constant 1.000000e+00 : f32
    %249 = vector.broadcast %cst_54 : f32 to vector<8x128xf32>
    %250 = arith.subf %249, %241 : vector<8x128xf32>
    %251 = arith.mulf %250, %248 : vector<8x128xf32>
    %252 = arith.mulf %241, %219 : vector<8x128xf32>
    %253 = arith.addf %251, %252 : vector<8x128xf32>
    %c0_55 = arith.constant 0 : index
    %c6 = arith.constant 6 : index
    %c0_56 = arith.constant 0 : index
    %254 = vector.load %arg12[%c0_55, %c6, %c0_56] : memref<8x8x128xf32, #tpu.memory_space<vmem>>, vector<8x1x128xf32>
    %255 = vector.shape_cast %254 : vector<8x1x128xf32> to vector<8x128xf32>
    %256 = vector.shape_cast %253 : vector<8x128xf32> to vector<8x1x128xf32>
    tpu.vector_store %arg12[%c0_55, %c6, %c0_56], %256 {strides = array<i32>} : memref<8x8x128xf32, #tpu.memory_space<vmem>>, vector<8x1x128xf32>,
    %cst_57 = arith.constant dense<0.000000e+00> : vector<8x384xf32>
    %257 = tpu.matmul %253, %16, %cst_57 {dimension_numbers = #tpu.dot_dimension_numbers<[1], [0], [0], [1], [0, 0, 1, 1], [], []>} : vector<8x128xf32>, vector<128x384xf32>, vector<8x384xf32> -> vector<8x384xf32>
    %258 = vector.extract_strided_slice %15 {offsets = [0, 7, 0], sizes = [8, 1, 384], strides = [1, 1, 1]} : vector<8x8x384xf32> to vector<8x1x384xf32>
    %259 = vector.shape_cast %258 : vector<8x1x384xf32> to vector<8x384xf32>
    %260 = vector.extract_strided_slice %259 {offsets = [0, 0], sizes = [8, 128], strides = [1, 1]} : vector<8x384xf32> to vector<8x128xf32>
    %261 = vector.extract_strided_slice %257 {offsets = [0, 0], sizes = [8, 128], strides = [1, 1]} : vector<8x384xf32> to vector<8x128xf32>
    %262 = arith.addf %260, %261 : vector<8x128xf32>
    %263 = arith.negf %262 : vector<8x128xf32>
    %264 = math.exp %263 : vector<8x128xf32>
    %cst_58 = arith.constant 1.000000e+00 : f32
    %265 = vector.broadcast %cst_58 : f32 to vector<8x128xf32>
    %266 = arith.addf %265, %264 : vector<8x128xf32>
    %267 = arith.divf %265, %266 : vector<8x128xf32>
    %268 = vector.extract_strided_slice %259 {offsets = [0, 128], sizes = [8, 128], strides = [1, 1]} : vector<8x384xf32> to vector<8x128xf32>
    %269 = vector.extract_strided_slice %257 {offsets = [0, 128], sizes = [8, 128], strides = [1, 1]} : vector<8x384xf32> to vector<8x128xf32>
    %270 = arith.addf %268, %269 : vector<8x128xf32>
    %271 = arith.negf %270 : vector<8x128xf32>
    %272 = math.exp %271 : vector<8x128xf32>
    %cst_59 = arith.constant 1.000000e+00 : f32
    %273 = vector.broadcast %cst_59 : f32 to vector<8x128xf32>
    %274 = arith.addf %273, %272 : vector<8x128xf32>
    %275 = arith.divf %273, %274 : vector<8x128xf32>
    %276 = vector.extract_strided_slice %259 {offsets = [0, 256], sizes = [8, 128], strides = [1, 1]} : vector<8x384xf32> to vector<8x128xf32>
    %277 = vector.extract_strided_slice %257 {offsets = [0, 256], sizes = [8, 128], strides = [1, 1]} : vector<8x384xf32> to vector<8x128xf32>
    %278 = vector.broadcast %17 : vector<1x128xf32> to vector<8x128xf32>
    %279 = arith.addf %277, %278 : vector<8x128xf32>
    %280 = arith.mulf %267, %279 : vector<8x128xf32>
    %281 = arith.addf %276, %280 : vector<8x128xf32>
    %282 = math.tanh %281 : vector<8x128xf32>
    %cst_60 = arith.constant 1.000000e+00 : f32
    %283 = vector.broadcast %cst_60 : f32 to vector<8x128xf32>
    %284 = arith.subf %283, %275 : vector<8x128xf32>
    %285 = arith.mulf %284, %282 : vector<8x128xf32>
    %286 = arith.mulf %275, %253 : vector<8x128xf32>
    %287 = arith.addf %285, %286 : vector<8x128xf32>
    %c0_61 = arith.constant 0 : index
    %c7 = arith.constant 7 : index
    %c0_62 = arith.constant 0 : index
    %288 = vector.load %arg12[%c0_61, %c7, %c0_62] : memref<8x8x128xf32, #tpu.memory_space<vmem>>, vector<8x1x128xf32>
    %289 = vector.shape_cast %288 : vector<8x1x128xf32> to vector<8x128xf32>
    %290 = vector.shape_cast %287 : vector<8x128xf32> to vector<8x1x128xf32>
    tpu.vector_store %arg12[%c0_61, %c7, %c0_62], %290 {strides = array<i32>} : memref<8x8x128xf32, #tpu.memory_space<vmem>>, vector<8x1x128xf32>,
    %c0_63 = arith.constant 0 : index
    %c0_64 = arith.constant 0 : index
    %291 = vector.load %arg11[%c0_63, %c0_64] : memref<8x128xf32, #tpu.memory_space<vmem>>, vector<8x128xf32>
    tpu.vector_store %arg11[%c0_63, %c0_64], %287 {strides = array<i32>} : memref<8x128xf32, #tpu.memory_space<vmem>>, vector<8x128xf32>,
    %c0_65 = arith.constant 0 : index
    %c0_66 = arith.constant 0 : index
    %c0_67 = arith.constant 0 : index
    %292 = vector.load %arg12[%c0_65, %c0_66, %c0_67] : memref<8x8x128xf32, #tpu.memory_space<vmem>>, vector<8x8x128xf32>
    %293 = vector.shape_cast %292 : vector<8x8x128xf32> to vector<64x128xf32>
    %c0_68 = arith.constant 0 : index
    %c0_69 = arith.constant 0 : index
    %294 = vector.load %arg8[%c0_68, %c0_69] : memref<128x128xf32, #tpu.memory_space<vmem>>, vector<128x128xf32>
    %cst_70 = arith.constant dense<0.000000e+00> : vector<64x128xf32>
    %295 = tpu.matmul %293, %294, %cst_70 {dimension_numbers = #tpu.dot_dimension_numbers<[1], [0], [0], [1], [0, 0, 1, 1], [], []>} : vector<64x128xf32>, vector<128x128xf32>, vector<64x128xf32> -> vector<64x128xf32>
    %c0_71 = arith.constant 0 : index
    %c0_72 = arith.constant 0 : index
    %296 = vector.load %arg9[%c0_71, %c0_72] : memref<1x128xf32, #tpu.memory_space<vmem>>, vector<1x128xf32>
    %297 = vector.broadcast %296 : vector<1x128xf32> to vector<64x128xf32>
    %298 = arith.addf %295, %297 : vector<64x128xf32>
    %cst_73 = arith.constant dense<0xFF800000> : vector<64xf32>
    %299 = vector.multi_reduction <maximumf>, %298, %cst_73 [1] : vector<64x128xf32> to vector<64xf32>
    %300 = vector.shape_cast %299 : vector<64xf32> to vector<64x1xf32>
    %301 = vector.broadcast %300 : vector<64x1xf32> to vector<64x128xf32>
    %302 = arith.subf %298, %301 : vector<64x128xf32>
    %303 = math.exp %302 : vector<64x128xf32>
    %cst_74 = arith.constant dense<0.000000e+00> : vector<64xf32>
    %304 = vector.multi_reduction <add>, %303, %cst_74 [1] : vector<64x128xf32> to vector<64xf32>
    %305 = vector.shape_cast %304 : vector<64xf32> to vector<64x1xf32>
    %306 = math.log %305 : vector<64x1xf32>
    %307 = arith.addf %300, %306 : vector<64x1xf32>
    %308 = vector.broadcast %307 : vector<64x1xf32> to vector<64x128xf32>
    %309 = arith.subf %298, %308 : vector<64x128xf32>
    %310 = vector.shape_cast %309 : vector<64x128xf32> to vector<8x8x128xf32>
    %c0_75 = arith.constant 0 : index
    %c0_76 = arith.constant 0 : index
    %c0_77 = arith.constant 0 : index
    %311 = vector.load %arg10[%c0_75, %c0_76, %c0_77] : memref<8x8x128xf32, #tpu.memory_space<vmem>>, vector<8x8x128xf32>
    tpu.vector_store %arg10[%c0_75, %c0_76, %c0_77], %310 {strides = array<i32>} : memref<8x8x128xf32, #tpu.memory_space<vmem>>, vector<8x8x128xf32>,
    return
  }
  func.func @transform_0(%arg0: i32) -> (i32, i32) {
    %c0_i32 = arith.constant 0 : i32
    %c0_i32_0 = arith.constant 0 : i32
    return %arg0, %c0_i32 : i32, i32
  }
  func.func @transform_1(%arg0: i32) -> (i32, i32) {
    %c0_i32 = arith.constant 0 : i32
    %c0_i32_0 = arith.constant 0 : i32
    return %arg0, %c0_i32 : i32, i32
  }
  func.func @transform_2(%arg0: i32) -> (i32, i32) {
    %c0_i32 = arith.constant 0 : i32
    %c0_i32_0 = arith.constant 0 : i32
    %c0_i32_1 = arith.constant 0 : i32
    return %c0_i32, %c0_i32_0 : i32, i32
  }
  func.func @transform_3(%arg0: i32) -> (i32, i32) {
    %c0_i32 = arith.constant 0 : i32
    %c0_i32_0 = arith.constant 0 : i32
    %c0_i32_1 = arith.constant 0 : i32
    return %c0_i32, %c0_i32_0 : i32, i32
  }
  func.func @transform_4(%arg0: i32) -> (i32, i32) {
    %c0_i32 = arith.constant 0 : i32
    %c0_i32_0 = arith.constant 0 : i32
    %c0_i32_1 = arith.constant 0 : i32
    return %c0_i32, %c0_i32_0 : i32, i32
  }
  func.func @transform_5(%arg0: i32) -> (i32, i32) {
    %c0_i32 = arith.constant 0 : i32
    %c0_i32_0 = arith.constant 0 : i32
    %c0_i32_1 = arith.constant 0 : i32
    return %c0_i32, %c0_i32_0 : i32, i32
  }
  func.func @transform_6(%arg0: i32) -> (i32, i32) {
    %c0_i32 = arith.constant 0 : i32
    %c0_i32_0 = arith.constant 0 : i32
    %c0_i32_1 = arith.constant 0 : i32
    return %c0_i32, %c0_i32_0 : i32, i32
  }
  func.func @transform_7(%arg0: i32) -> (i32, i32) {
    %c0_i32 = arith.constant 0 : i32
    %c0_i32_0 = arith.constant 0 : i32
    %c0_i32_1 = arith.constant 0 : i32
    return %c0_i32, %c0_i32_0 : i32, i32
  }
  func.func @transform_8(%arg0: i32) -> (i32, i32) {
    %c0_i32 = arith.constant 0 : i32
    %c0_i32_0 = arith.constant 0 : i32
    %c0_i32_1 = arith.constant 0 : i32
    return %c0_i32, %c0_i32_0 : i32, i32
  }
  func.func @transform_9(%arg0: i32) -> (i32, i32, i32) {
    %c0_i32 = arith.constant 0 : i32
    %c0_i32_0 = arith.constant 0 : i32
    %c0_i32_1 = arith.constant 0 : i32
    return %arg0, %c0_i32, %c0_i32_0 : i32, i32, i32
  }
  func.func @transform_10(%arg0: i32) -> (i32, i32) {
    %c0_i32 = arith.constant 0 : i32
    %c0_i32_0 = arith.constant 0 : i32
    return %arg0, %c0_i32 : i32, i32
  }
}

</mosaic_0001>

<llo_original>
// kernel: tpu_custom_call.1
$region0: #{tpu_custom_call.1}
  #allocation0 [shape = 'u32[]', space=smem, size = 0x4, offset = 0x4, fixed_abs, tag = 'smem constant byte address 0x4 - core index']
  #allocation1 [shape = 'u32[144,128]{1,0:T(1,128)}', space=vmem, size = 0x12000, scoped, tag = 'internal scratch']
  #allocation2 [shape = 'f32[8,8,128]{2,1,0:T(8,128)}', space=vmem, size = 0x8000, scoped, tag = 'scratch operand']
  %s0 = inlined_call_operand.hbm [shape: s32[8,8], index: 0, kind: input, shape index: {}]
  %s1 = inlined_call_operand.hbm [shape: f32[8,128], index: 1, kind: input, shape index: {}]
  %s2 = inlined_call_operand.hbm [shape: f32[128,128], index: 2, kind: input, shape index: {}]
  %s3 = inlined_call_operand.hbm [shape: f32[128,384], index: 3, kind: input, shape index: {}]
  %s4 = inlined_call_operand.hbm [shape: f32[128,384], index: 4, kind: input, shape index: {}]
  %s5 = inlined_call_operand.vmem [shape: f32[1,384], index: 5, kind: input, shape index: {}]
  %s6 = inlined_call_operand.vmem [shape: f32[1,128], index: 6, kind: input, shape index: {}]
  %s7 = inlined_call_operand.hbm [shape: f32[128,128], index: 7, kind: input, shape index: {}]
  %s8 = inlined_call_operand.vmem [shape: f32[1,128], index: 8, kind: input, shape index: {}]
  %s9 = inlined_call_operand.hbm [shape: f32[8,8,128], index: 9, kind: output, shape index: {0}]
  %s10 = inlined_call_operand.hbm [shape: f32[8,128], index: 10, kind: output, shape index: {1}]
  %11 = xla_tuple %s9, %s10
  %s12 = sld [smem:[#allocation0]]
  $region78: #{tpu_custom_call.1} parent=0
    _
  %s14 = ssub.s32 1, %s12
  %s15 = scalar_select 0, %s14, %s12
  $region1: #{tpu_custom_call.1} parent=0
    #allocation3 [shape = 'u8[4096]{0}', space=vmem, size = 0x1000, scoped, tag = 'input window, operand 0, single buffered']
    #allocation4 [shape = 's32[1]{0}', space=sflag, size = 0x4, scoped, tag = 'scoped memory for tpu_custom_call.1']
    #allocation5 [shape = 's32[1]{0}', space=sflag, size = 0x4, scoped, tag = 'scoped memory for tpu_custom_call.1']
    #allocation6 [shape = 'u8[4096]{0}', space=vmem, size = 0x1000, scoped, tag = 'input window, operand 1, single buffered']
    #allocation7 [shape = 's32[1]{0}', space=sflag, size = 0x4, scoped, tag = 'scoped memory for tpu_custom_call.1']
    #allocation8 [shape = 'u8[65536]{0}', space=vmem, size = 0x10000, scoped, tag = 'input window, operand 2, single buffered']
    #allocation9 [shape = 'u8[196608]{0}', space=vmem, size = 0x30000, scoped, tag = 'input window, operand 3, single buffered']
    #allocation10 [shape = 's32[1]{0}', space=sflag, size = 0x4, scoped, tag = 'scoped memory for tpu_custom_call.1']
    #allocation11 [shape = 'u8[196608]{0}', space=vmem, size = 0x30000, scoped, tag = 'input window, operand 4, single buffered']
    #allocation12 [shape = 'u8[65536]{0}', space=vmem, size = 0x10000, scoped, tag = 'input window, operand 7, single buffered']
    #allocation13 [shape = 's32[1]{0}', space=sflag, size = 0x4, scoped, tag = 'scoped memory for tpu_custom_call.1']
    #allocation14 [shape = 'u8[32768]{0}', space=vmem, size = 0x8000, scoped, tag = 'output window, operand 0, single buffered']
    #allocation15 [shape = 'u8[4096]{0}', space=vmem, size = 0x1000, scoped, tag = 'output window, operand 1, single buffered']
    #allocation16 [shape = 's32[1]{0}', space=sflag, size = 0x4, scoped, tag = 'scoped memory for tpu_custom_call.1']
    %16 = vsyncpa [#allocation4], 0
    %17 = vsyncpa [#allocation7], 0
    %18 = vsyncpa [#allocation10], 0
    %19 = vsyncpa [#allocation13], 0
    %20 = vsyncpa [#allocation5], 0
    %21 = vsyncpa [#allocation16], 0
    // Predicated region
    $region2: #{tpu_custom_call.1} parent=1 // pred_check
      _
    $region3: #{tpu_custom_call.1} parent=1 // pred_check_branch
      %23 = sbr.rel (0) target = $region5
    $region4: #{tpu_custom_call.1} parent=1 // pred_region
      %s25 = ssub.s32 128, 128
      %26 = vsyncadd [#allocation4], %s25
      %s28 = sshll.u32 [#allocation3], 4
      %s29 = int_to_ptr.vmem [resolvable:$true] %s28
      %31 = dma.hbm_to_vmem [thread:$0]  %s0, 128, %s29, [#allocation4]
    $region5: #{tpu_custom_call.1} parent=1 // pred_fallthru
      _
    // Predicated region
    $region6: #{tpu_custom_call.1} parent=1 // pred_check
      _
    $region7: #{tpu_custom_call.1} parent=1 // pred_check_branch
      %33 = sbr.rel (0) target = $region9
    $region8: #{tpu_custom_call.1} parent=1 // pred_region
      %s35 = ssub.s32 128, 128
      %36 = vsyncadd [#allocation7], %s35
      %s38 = sshll.u32 [#allocation6], 4
      %s39 = int_to_ptr.vmem [resolvable:$true] %s38
      %41 = dma.hbm_to_vmem [thread:$0]  %s1, 128, %s39, [#allocation7]
    $region9: #{tpu_custom_call.1} parent=1 // pred_fallthru
      _
    // Predicated region
    $region10: #{tpu_custom_call.1} parent=1 // pred_check
      _
    $region11: #{tpu_custom_call.1} parent=1 // pred_check_branch
      %43 = sbr.rel (0) target = $region13
    $region12: #{tpu_custom_call.1} parent=1 // pred_region
      %s45 = ssub.s32 2048, 2048
      %46 = vsyncadd [#allocation7], %s45
      %s47 = sshll.u32 [#allocation8], 4
      %s48 = int_to_ptr.vmem [resolvable:$true] %s47
      %53 = dma.hbm_to_vmem [thread:$0]  %s2, 2048, %s48, [#allocation7], 128, 128, 8
    $region13: #{tpu_custom_call.1} parent=1 // pred_fallthru
      _
    // Predicated region
    $region14: #{tpu_custom_call.1} parent=1 // pred_check
      _
    $region15: #{tpu_custom_call.1} parent=1 // pred_check_branch
      %55 = sbr.rel (0) target = $region17
    $region16: #{tpu_custom_call.1} parent=1 // pred_region
      %s57 = ssub.s32 6144, 6144
      %58 = vsyncadd [#allocation10], %s57
      %s59 = sshll.u32 [#allocation9], 4
      %s60 = int_to_ptr.vmem [resolvable:$true] %s59
      %65 = dma.hbm_to_vmem [thread:$0]  %s3, 6144, %s60, [#allocation10], 384, 384, 24
    $region17: #{tpu_custom_call.1} parent=1 // pred_fallthru
      _
    // Predicated region
    $region18: #{tpu_custom_call.1} parent=1 // pred_check
      _
    $region19: #{tpu_custom_call.1} parent=1 // pred_check_branch
      %67 = sbr.rel (0) target = $region21
    $region20: #{tpu_custom_call.1} parent=1 // pred_region
      %s69 = ssub.s32 6144, 6144
      %70 = vsyncadd [#allocation10], %s69
      %s71 = sshll.u32 [#allocation11], 4
      %s72 = int_to_ptr.vmem [resolvable:$true] %s71
      %77 = dma.hbm_to_vmem [thread:$0]  %s4, 6144, %s72, [#allocation10], 384, 384, 24
    $region21: #{tpu_custom_call.1} parent=1 // pred_fallthru
      _
    // Predicated region
    $region22: #{tpu_custom_call.1} parent=1 // pred_check
      _
    $region23: #{tpu_custom_call.1} parent=1 // pred_check_branch
      %79 = sbr.rel (0) target = $region25
    $region24: #{tpu_custom_call.1} parent=1 // pred_region
      _
    $region25: #{tpu_custom_call.1} parent=1 // pred_fallthru
      _
    // Predicated region
    $region26: #{tpu_custom_call.1} parent=1 // pred_check
      _
    $region27: #{tpu_custom_call.1} parent=1 // pred_check_branch
      %81 = sbr.rel (0) target = $region29
    $region28: #{tpu_custom_call.1} parent=1 // pred_region
      _
    $region29: #{tpu_custom_call.1} parent=1 // pred_fallthru
      _
    // Predicated region
    $region30: #{tpu_custom_call.1} parent=1 // pred_check
      _
    $region31: #{tpu_custom_call.1} parent=1 // pred_check_branch
      %83 = sbr.rel (0) target = $region33
    $region32: #{tpu_custom_call.1} parent=1 // pred_region
      %s85 = ssub.s32 2048, 2048
      %86 = vsyncadd [#allocation13], %s85
      %s87 = sshll.u32 [#allocation12], 4
      %s88 = int_to_ptr.vmem [resolvable:$true] %s87
      %93 = dma.hbm_to_vmem [thread:$0]  %s7, 2048, %s88, [#allocation13], 128, 128, 8
    $region33: #{tpu_custom_call.1} parent=1 // pred_fallthru
      _
    // Predicated region
    $region34: #{tpu_custom_call.1} parent=1 // pred_check
      _
    $region35: #{tpu_custom_call.1} parent=1 // pred_check_branch
      %95 = sbr.rel (0) target = $region37
    $region36: #{tpu_custom_call.1} parent=1 // pred_region
      _
    $region37: #{tpu_custom_call.1} parent=1 // pred_fallthru
      _
    // Predicated region
    $region38: #{tpu_custom_call.1} parent=1 // pred_check
      _
    $region39: #{tpu_custom_call.1} parent=1 // pred_check_branch
      %97 = sbr.rel (0) target = $region41
    $region40: #{tpu_custom_call.1} parent=1 // pred_region
      %98 = dma.done [#allocation4], 128
    $region41: #{tpu_custom_call.1} parent=1 // pred_fallthru
      _
    // Predicated region
    $region42: #{tpu_custom_call.1} parent=1 // pred_check
      _
    $region43: #{tpu_custom_call.1} parent=1 // pred_check_branch
      %100 = sbr.rel (0) target = $region45
    $region44: #{tpu_custom_call.1} parent=1 // pred_region
      %101 = dma.done [#allocation7], 128
    $region45: #{tpu_custom_call.1} parent=1 // pred_fallthru
      _
    // Predicated region
    $region46: #{tpu_custom_call.1} parent=1 // pred_check
      _
    $region47: #{tpu_custom_call.1} parent=1 // pred_check_branch
      %103 = sbr.rel (0) target = $region49
    $region48: #{tpu_custom_call.1} parent=1 // pred_region
      %104 = dma.done [#allocation7], 2048
    $region49: #{tpu_custom_call.1} parent=1 // pred_fallthru
      _
    // Predicated region
    $region50: #{tpu_custom_call.1} parent=1 // pred_check
      _
    $region51: #{tpu_custom_call.1} parent=1 // pred_check_branch
      %106 = sbr.rel (0) target = $region53
    $region52: #{tpu_custom_call.1} parent=1 // pred_region
      %107 = dma.done [#allocation10], 6144
    $region53: #{tpu_custom_call.1} parent=1 // pred_fallthru
      _
    // Predicated region
    $region54: #{tpu_custom_call.1} parent=1 // pred_check
      _
    $region55: #{tpu_custom_call.1} parent=1 // pred_check_branch
      %109 = sbr.rel (0) target = $region57
    $region56: #{tpu_custom_call.1} parent=1 // pred_region
      %110 = dma.done [#allocation10], 6144
    $region57: #{tpu_custom_call.1} parent=1 // pred_fallthru
      _
    // Predicated region
    $region58: #{tpu_custom_call.1} parent=1 // pred_check
      _
    $region59: #{tpu_custom_call.1} parent=1 // pred_check_branch
      %112 = sbr.rel (0) target = $region61
    $region60: #{tpu_custom_call.1} parent=1 // pred_region
      %113 = dma.done [#allocation13], 2048
    $region61: #{tpu_custom_call.1} parent=1 // pred_fallthru
      _
    %v114 = vld [vmem:[#allocation3] sm:$0xff]
    %v115 = vlaneseq
    %v116 = vand.u32 %v115, 127
    %v117 = vlaneseq
    %v118 = vshrl.u32 %v117, 7
    %v119 = vsub.s32 0, %v118
    %v120 = vrot.slane %v114, %v119
    %122 = vbcast.lane.b32.xlu0 %v120, 256
    %v123 = vpop.permute.xlu0 %122
    %v124 = vlaneseq
    %v125 = vshrl.u32 %v124, 7
    %v126 = vsub.s32 1, %v125
    %v127 = vrot.slane %v114, %v126
    %129 = vbcast.lane.b32.xlu0 %v127, 256
    %v130 = vpop.permute.xlu0 %129
    %v131 = vlaneseq
    %v132 = vshrl.u32 %v131, 7
    %v133 = vsub.s32 2, %v132
    %v134 = vrot.slane %v114, %v133
    %136 = vbcast.lane.b32.xlu0 %v134, 256
    %v137 = vpop.permute.xlu0 %136
    %v138 = vlaneseq
    %v139 = vshrl.u32 %v138, 7
    %v140 = vsub.s32 3, %v139
    %v141 = vrot.slane %v114, %v140
    %143 = vbcast.lane.b32.xlu0 %v141, 256
    %v144 = vpop.permute.xlu0 %143
    %v145 = vlaneseq
    %v146 = vshrl.u32 %v145, 7
    %v147 = vsub.s32 4, %v146
    %v148 = vrot.slane %v114, %v147
    %150 = vbcast.lane.b32.xlu0 %v148, 256
    %v151 = vpop.permute.xlu0 %150
    %v152 = vlaneseq
    %v153 = vshrl.u32 %v152, 7
    %v154 = vsub.s32 5, %v153
    %v155 = vrot.slane %v114, %v154
    %157 = vbcast.lane.b32.xlu0 %v155, 256
    %v158 = vpop.permute.xlu0 %157
    %v159 = vlaneseq
    %v160 = vshrl.u32 %v159, 7
    %v161 = vsub.s32 6, %v160
    %v162 = vrot.slane %v114, %v161
    %164 = vbcast.lane.b32.xlu0 %v162, 256
    %v165 = vpop.permute.xlu0 %164
    %v166 = vlaneseq
    %v167 = vshrl.u32 %v166, 7
    %v168 = vsub.s32 7, %v167
    %v169 = vrot.slane %v114, %v168
    %171 = vbcast.lane.b32.xlu0 %v169, 256
    %v172 = vpop.permute.xlu0 %171
    %vm173 = vcmp.eq.s32.totalorder %v116, %v123
    %vm174 = vcmp.eq.s32.totalorder %v116, %v130
    %vm175 = vcmp.eq.s32.totalorder %v116, %v137
    %vm176 = vcmp.eq.s32.totalorder %v116, %v144
    %vm177 = vcmp.eq.s32.totalorder %v116, %v151
    %vm178 = vcmp.eq.s32.totalorder %v116, %v158
    %vm179 = vcmp.eq.s32.totalorder %v116, %v165
    %vm180 = vcmp.eq.s32.totalorder %v116, %v172
    %v181 = vsel %vm173, 1, 0
    %v182 = vsel %vm174, 1, 0
    %v183 = vsel %vm175, 1, 0
    %v184 = vsel %vm176, 1, 0
    %v185 = vsel %vm177, 1, 0
    %v186 = vsel %vm178, 1, 0
    %v187 = vsel %vm179, 1, 0
    %v188 = vsel %vm180, 1, 0
    %v189 = vcvt.s32.f32 %v181
    %v190 = vcvt.s32.f32 %v182
    %v191 = vcvt.s32.f32 %v183
    %v192 = vcvt.s32.f32 %v184
    %v193 = vcvt.s32.f32 %v185
    %v194 = vcvt.s32.f32 %v186
    %v195 = vcvt.s32.f32 %v187
    %v196 = vcvt.s32.f32 %v188
    %v197 = vld [vmem:[#allocation8] sm:$0xff]
    %v198 = vld [vmem:[#allocation8 + $0x8] sm:$0xff]
    %v199 = vld [vmem:[#allocation8 + $0x10] sm:$0xff]
    %v200 = vld [vmem:[#allocation8 + $0x18] sm:$0xff]
    %v201 = vld [vmem:[#allocation8 + $0x20] sm:$0xff]
    %v202 = vld [vmem:[#allocation8 + $0x28] sm:$0xff]
    %v203 = vld [vmem:[#allocation8 + $0x30] sm:$0xff]
    %v204 = vld [vmem:[#allocation8 + $0x38] sm:$0xff]
    %v205 = vld [vmem:[#allocation8 + $0x40] sm:$0xff]
    %v206 = vld [vmem:[#allocation8 + $0x48] sm:$0xff]
    %v207 = vld [vmem:[#allocation8 + $0x50] sm:$0xff]
    %v208 = vld [vmem:[#allocation8 + $0x58] sm:$0xff]
    %v209 = vld [vmem:[#allocation8 + $0x60] sm:$0xff]
    %v210 = vld [vmem:[#allocation8 + $0x68] sm:$0xff]
    %v211 = vld [vmem:[#allocation8 + $0x70] sm:$0xff]
    %v212 = vld [vmem:[#allocation8 + $0x78] sm:$0xff]
    %213 = vmatprep.subr.mxu0 0.0
    %214 = vmatpush1.msra.mxu0 %v212
    %215 = vmatprep.subr.mxu0 0.0
    %216 = vmatpush1.msra.mxu0 %v211
    %217 = vmatprep.subr.mxu0 0.0
    %218 = vmatpush1.msra.mxu0 %v210
    %219 = vmatprep.subr.mxu0 0.0
    %220 = vmatpush1.msra.mxu0 %v209
    %221 = vmatprep.subr.mxu0 0.0
    %222 = vmatpush1.msra.mxu0 %v208
    %223 = vmatprep.subr.mxu0 0.0
    %224 = vmatpush1.msra.mxu0 %v207
    %225 = vmatprep.subr.mxu0 0.0
    %226 = vmatpush1.msra.mxu0 %v206
    %227 = vmatprep.subr.mxu0 0.0
    %228 = vmatpush1.msra.mxu0 %v205
    %229 = vmatprep.subr.mxu0 0.0
    %230 = vmatpush1.msra.mxu0 %v204
    %231 = vmatprep.subr.mxu0 0.0
    %232 = vmatpush1.msra.mxu0 %v203
    %233 = vmatprep.subr.mxu0 0.0
    %234 = vmatpush1.msra.mxu0 %v202
    %235 = vmatprep.subr.mxu0 0.0
    %236 = vmatpush1.msra.mxu0 %v201
    %237 = vmatprep.subr.mxu0 0.0
    %238 = vmatpush1.msra.mxu0 %v200
    %239 = vmatprep.subr.mxu0 0.0
    %240 = vmatpush1.msra.mxu0 %v199
    %241 = vmatprep.subr.mxu0 0.0
    %242 = vmatpush1.msra.mxu0 %v198
    %243 = vmatprep.subr.mxu0 0.0
    %244 = vmatpush1.msra.mxu0 %v197
    %245 = vmatprep.subr.mxu0 0.0
    %246 = vmatpush2.msra.mxu0 0.0
    %247 = vmatprep.subr.mxu0 0.0
    %248 = vmatpush2.msra.mxu0 0.0
    %249 = vmatprep.subr.mxu0 0.0
    %250 = vmatpush2.msra.mxu0 0.0
    %251 = vmatprep.subr.mxu0 0.0
    %252 = vmatpush2.msra.mxu0 0.0
    %253 = vmatprep.subr.mxu0 0.0
    %254 = vmatpush2.msra.mxu0 0.0
    %255 = vmatprep.subr.mxu0 0.0
    %256 = vmatpush2.msra.mxu0 0.0
    %257 = vmatprep.subr.mxu0 0.0
    %258 = vmatpush2.msra.mxu0 0.0
    %259 = vmatprep.subr.mxu0 0.0
    %260 = vmatpush2.msra.mxu0 0.0
    %261 = vmatprep.subr.mxu0 0.0
    %262 = vmatpush2.msra.mxu0 0.0
    %263 = vmatprep.subr.mxu0 0.0
    %264 = vmatpush2.msra.mxu0 0.0
    %265 = vmatprep.subr.mxu0 0.0
    %266 = vmatpush2.msra.mxu0 0.0
    %267 = vmatprep.subr.mxu0 0.0
    %268 = vmatpush2.msra.mxu0 0.0
    %269 = vmatprep.subr.mxu0 0.0
    %270 = vmatpush2.msra.mxu0 0.0
    %271 = vmatprep.subr.mxu0 0.0
    %272 = vmatpush2.msra.mxu0 0.0
    %273 = vmatprep.subr.mxu0 0.0
    %274 = vmatpush2.msra.mxu0 0.0
    %275 = vmatprep.subr.mxu0 0.0
    %276 = vmatpush2.msra.mxu0 0.0
    %277 = vmatprep.mubr.f32.mxu0 0.0
    %278 = vmatmul.mubr.f32.gmra.mxu0 %v189
    %v279 = vpop.f32.mrf.mxu0
    %v280 = vadd.f32 0.0, %v279
    %v281 = vpop.f32.mrf.mxu0
    %282 = vmatprep.mubr.f32.mxu0 0.0
    %283 = vmatmul.mubr.f32.gmra.mxu0 %v190
    %v284 = vpop.f32.mrf.mxu0
    %v285 = vadd.f32 0.0, %v284
    %v286 = vpop.f32.mrf.mxu0
    %287 = vmatprep.mubr.f32.mxu0 0.0
    %288 = vmatmul.mubr.f32.gmra.mxu0 %v191
    %v289 = vpop.f32.mrf.mxu0
    %v290 = vadd.f32 0.0, %v289
    %v291 = vpop.f32.mrf.mxu0
    %292 = vmatprep.mubr.f32.mxu0 0.0
    %293 = vmatmul.mubr.f32.gmra.mxu0 %v192
    %v294 = vpop.f32.mrf.mxu0
    %v295 = vadd.f32 0.0, %v294
    %v296 = vpop.f32.mrf.mxu0
    %297 = vmatprep.mubr.f32.mxu0 0.0
    %298 = vmatmul.mubr.f32.gmra.mxu0 %v193
    %v299 = vpop.f32.mrf.mxu0
    %v300 = vadd.f32 0.0, %v299
    %v301 = vpop.f32.mrf.mxu0
    %302 = vmatprep.mubr.f32.mxu0 0.0
    %303 = vmatmul.mubr.f32.gmra.mxu0 %v194
    %v304 = vpop.f32.mrf.mxu0
    %v305 = vadd.f32 0.0, %v304
    %v306 = vpop.f32.mrf.mxu0
    %307 = vmatprep.mubr.f32.mxu0 0.0
    %308 = vmatmul.mubr.f32.gmra.mxu0 %v195
    %v309 = vpop.f32.mrf.mxu0
    %v310 = vadd.f32 0.0, %v309
    %v311 = vpop.f32.mrf.mxu0
    %312 = vmatprep.mubr.f32.mxu0 0.0
    %313 = vmatmul.mubr.f32.gmra.mxu0 %v196
    %v314 = vpop.f32.mrf.mxu0
    %v315 = vadd.f32 0.0, %v314
    %v316 = vpop.f32.mrf.mxu0
    %317 = vdwg.mxu0
    %v318 = vld [vmem:[#allocation9] sm:$0xff]
    %v319 = vld [vmem:[#allocation9 + $0x8] sm:$0xff]
    %v320 = vld [vmem:[#allocation9 + $0x10] sm:$0xff]
    %v321 = vld [vmem:[#allocation9 + $0x18] sm:$0xff]
    %v322 = vld [vmem:[#allocation9 + $0x20] sm:$0xff]
    %v323 = vld [vmem:[#allocation9 + $0x28] sm:$0xff]
    %v324 = vld [vmem:[#allocation9 + $0x30] sm:$0xff]
    %v325 = vld [vmem:[#allocation9 + $0x38] sm:$0xff]
    %v326 = vld [vmem:[#allocation9 + $0x40] sm:$0xff]
    %v327 = vld [vmem:[#allocation9 + $0x48] sm:$0xff]
    %v328 = vld [vmem:[#allocation9 + $0x50] sm:$0xff]
    %v329 = vld [vmem:[#allocation9 + $0x58] sm:$0xff]
    %v330 = vld [vmem:[#allocation9 + $0x60] sm:$0xff]
    %v331 = vld [vmem:[#allocation9 + $0x68] sm:$0xff]
    %v332 = vld [vmem:[#allocation9 + $0x70] sm:$0xff]
    %v333 = vld [vmem:[#allocation9 + $0x78] sm:$0xff]
    %v334 = vld [vmem:[#allocation9 + $0x80] sm:$0xff]
    %v335 = vld [vmem:[#allocation9 + $0x88] sm:$0xff]
    %v336 = vld [vmem:[#allocation9 + $0x90] sm:$0xff]
    %v337 = vld [vmem:[#allocation9 + $0x98] sm:$0xff]
    %v338 = vld [vmem:[#allocation9 + $0xa0] sm:$0xff]
    %v339 = vld [vmem:[#allocation9 + $0xa8] sm:$0xff]
    %v340 = vld [vmem:[#allocation9 + $0xb0] sm:$0xff]
    %v341 = vld [vmem:[#allocation9 + $0xb8] sm:$0xff]
    %v342 = vld [vmem:[#allocation9 + $0xc0] sm:$0xff]
    %v343 = vld [vmem:[#allocation9 + $0xc8] sm:$0xff]
    %v344 = vld [vmem:[#allocation9 + $0xd0] sm:$0xff]
    %v345 = vld [vmem:[#allocation9 + $0xd8] sm:$0xff]
    %v346 = vld [vmem:[#allocation9 + $0xe0] sm:$0xff]
    %v347 = vld [vmem:[#allocation9 + $0xe8] sm:$0xff]
    %v348 = vld [vmem:[#allocation9 + $0xf0] sm:$0xff]
    %v349 = vld [vmem:[#allocation9 + $0xf8] sm:$0xff]
    %v350 = vld [vmem:[#allocation9 + $0x100] sm:$0xff]
    %v351 = vld [vmem:[#allocation9 + $0x108] sm:$0xff]
    %v352 = vld [vmem:[#allocation9 + $0x110] sm:$0xff]
    %v353 = vld [vmem:[#allocation9 + $0x118] sm:$0xff]
    %v354 = vld [vmem:[#allocation9 + $0x120] sm:$0xff]
    %v355 = vld [vmem:[#allocation9 + $0x128] sm:$0xff]
    %v356 = vld [vmem:[#allocation9 + $0x130] sm:$0xff]
    %v357 = vld [vmem:[#allocation9 + $0x138] sm:$0xff]
    %v358 = vld [vmem:[#allocation9 + $0x140] sm:$0xff]
    %v359 = vld [vmem:[#allocation9 + $0x148] sm:$0xff]
    %v360 = vld [vmem:[#allocation9 + $0x150] sm:$0xff]
    %v361 = vld [vmem:[#allocation9 + $0x158] sm:$0xff]
    %v362 = vld [vmem:[#allocation9 + $0x160] sm:$0xff]
    %v363 = vld [vmem:[#allocation9 + $0x168] sm:$0xff]
    %v364 = vld [vmem:[#allocation9 + $0x170] sm:$0xff]
    %v365 = vld [vmem:[#allocation9 + $0x178] sm:$0xff]
    %v366 = vld [vmem:[%s5] sm:$0x7]
    %v368 = vlaneseq
    %v369 = vshrl.u32 %v368, 7
    %v370 = vsub.s32 0, %v369
    %v371 = vrot.slane %v366, %v370
    %v372 = vlaneseq
    %v373 = vshrl.u32 %v372, 7
    %v374 = vsub.s32 1, %v373
    %v375 = vrot.slane %v366, %v374
    %v376 = vlaneseq
    %v377 = vshrl.u32 %v376, 7
    %v378 = vsub.s32 2, %v377
    %v379 = vrot.slane %v366, %v378
    %383 = vmatprep.subr.mxu0 %v364
    %384 = vmatpush1.msra.mxu0 %v363
    %385 = vmatprep.subr.mxu0 %v361
    %386 = vmatpush1.msra.mxu0 %v360
    %387 = vmatprep.subr.mxu0 %v358
    %388 = vmatpush1.msra.mxu0 %v357
    %389 = vmatprep.subr.mxu0 %v355
    %390 = vmatpush1.msra.mxu0 %v354
    %391 = vmatprep.subr.mxu0 %v352
    %392 = vmatpush1.msra.mxu0 %v351
    %393 = vmatprep.subr.mxu0 %v349
    %394 = vmatpush1.msra.mxu0 %v348
    %395 = vmatprep.subr.mxu0 %v346
    %396 = vmatpush1.msra.mxu0 %v345
    %397 = vmatprep.subr.mxu0 %v343
    %398 = vmatpush1.msra.mxu0 %v342
    %399 = vmatprep.subr.mxu0 %v340
    %400 = vmatpush1.msra.mxu0 %v339
    %401 = vmatprep.subr.mxu0 %v337
    %402 = vmatpush1.msra.mxu0 %v336
    %403 = vmatprep.subr.mxu0 %v334
    %404 = vmatpush1.msra.mxu0 %v333
    %405 = vmatprep.subr.mxu0 %v331
    %406 = vmatpush1.msra.mxu0 %v330
    %407 = vmatprep.subr.mxu0 %v328
    %408 = vmatpush1.msra.mxu0 %v327
    %409 = vmatprep.subr.mxu0 %v325
    %410 = vmatpush1.msra.mxu0 %v324
    %411 = vmatprep.subr.mxu0 %v322
    %412 = vmatpush1.msra.mxu0 %v321
    %413 = vmatprep.subr.mxu0 %v319
    %414 = vmatpush1.msra.mxu0 %v318
    %415 = vmatprep.subr.mxu0 0.0
    %416 = vmatpush2.msra.mxu0 0.0
    %417 = vmatprep.subr.mxu0 0.0
    %418 = vmatpush2.msra.mxu0 0.0
    %419 = vmatprep.subr.mxu0 0.0
    %420 = vmatpush2.msra.mxu0 0.0
    %421 = vmatprep.subr.mxu0 0.0
    %422 = vmatpush2.msra.mxu0 0.0
    %423 = vmatprep.subr.mxu0 0.0
    %424 = vmatpush2.msra.mxu0 0.0
    %425 = vmatprep.subr.mxu0 0.0
    %426 = vmatpush2.msra.mxu0 0.0
    %427 = vmatprep.subr.mxu0 0.0
    %428 = vmatpush2.msra.mxu0 0.0
    %429 = vmatprep.subr.mxu0 0.0
    %430 = vmatpush2.msra.mxu0 0.0
    %431 = vmatprep.subr.mxu0 0.0
    %432 = vmatpush2.msra.mxu0 0.0
    %433 = vmatprep.subr.mxu0 0.0
    %434 = vmatpush2.msra.mxu0 0.0
    %435 = vmatprep.subr.mxu0 0.0
    %436 = vmatpush2.msra.mxu0 0.0
    %437 = vmatprep.subr.mxu0 0.0
    %438 = vmatpush2.msra.mxu0 0.0
    %439 = vmatprep.subr.mxu0 0.0
    %440 = vmatpush2.msra.mxu0 0.0
    %441 = vmatprep.subr.mxu0 0.0
    %442 = vmatpush2.msra.mxu0 0.0
    %443 = vmatprep.subr.mxu0 0.0
    %444 = vmatpush2.msra.mxu0 0.0
    %445 = vmatprep.subr.mxu0 0.0
    %446 = vmatpush2.msra.mxu0 0.0
    %447 = vmatprep.mubr.f32.mxu0 0.0
    %448 = vmatmul.mubr.f32.gmra.mxu0 %v280
    %v449 = vpop.f32.mrf.mxu0
    %v450 = vadd.f32 %v371, %v449
    %v451 = vpop.f32.mrf.mxu0
    %v452 = vadd.f32 %v375, %v451
    %453 = vmatprep.mubr.f32.mxu0 0.0
    %454 = vmatmul.mubr.f32.gmra.mxu0 %v285
    %v455 = vpop.f32.mrf.mxu0
    %v456 = vadd.f32 %v371, %v455
    %v457 = vpop.f32.mrf.mxu0
    %v458 = vadd.f32 %v375, %v457
    %459 = vmatprep.mubr.f32.mxu0 0.0
    %460 = vmatmul.mubr.f32.gmra.mxu0 %v290
    %v461 = vpop.f32.mrf.mxu0
    %v462 = vadd.f32 %v371, %v461
    %v463 = vpop.f32.mrf.mxu0
    %v464 = vadd.f32 %v375, %v463
    %465 = vmatprep.mubr.f32.mxu0 0.0
    %466 = vmatmul.mubr.f32.gmra.mxu0 %v295
    %v467 = vpop.f32.mrf.mxu0
    %v468 = vadd.f32 %v371, %v467
    %v469 = vpop.f32.mrf.mxu0
    %v470 = vadd.f32 %v375, %v469
    %471 = vmatprep.mubr.f32.mxu0 0.0
    %472 = vmatmul.mubr.f32.gmra.mxu0 %v300
    %v473 = vpop.f32.mrf.mxu0
    %v474 = vadd.f32 %v371, %v473
    %v475 = vpop.f32.mrf.mxu0
    %v476 = vadd.f32 %v375, %v475
    %477 = vmatprep.mubr.f32.mxu0 0.0
    %478 = vmatmul.mubr.f32.gmra.mxu0 %v305
    %v479 = vpop.f32.mrf.mxu0
    %v480 = vadd.f32 %v371, %v479
    %v481 = vpop.f32.mrf.mxu0
    %v482 = vadd.f32 %v375, %v481
    %483 = vmatprep.mubr.f32.mxu0 0.0
    %484 = vmatmul.mubr.f32.gmra.mxu0 %v310
    %v485 = vpop.f32.mrf.mxu0
    %v486 = vadd.f32 %v371, %v485
    %v487 = vpop.f32.mrf.mxu0
    %v488 = vadd.f32 %v375, %v487
    %489 = vmatprep.mubr.f32.mxu0 0.0
    %490 = vmatmul.mubr.f32.gmra.mxu0 %v315
    %v491 = vpop.f32.mrf.mxu0
    %v492 = vadd.f32 %v371, %v491
    %v493 = vpop.f32.mrf.mxu0
    %v494 = vadd.f32 %v375, %v493
    %495 = vdwg.mxu0
    %496 = vmatprep.subr.mxu0 0.0
    %497 = vmatpush1.msra.mxu0 %v365
    %498 = vmatprep.subr.mxu0 0.0
    %499 = vmatpush1.msra.mxu0 %v362
    %500 = vmatprep.subr.mxu0 0.0
    %501 = vmatpush1.msra.mxu0 %v359
    %502 = vmatprep.subr.mxu0 0.0
    %503 = vmatpush1.msra.mxu0 %v356
    %504 = vmatprep.subr.mxu0 0.0
    %505 = vmatpush1.msra.mxu0 %v353
    %506 = vmatprep.subr.mxu0 0.0
    %507 = vmatpush1.msra.mxu0 %v350
    %508 = vmatprep.subr.mxu0 0.0
    %509 = vmatpush1.msra.mxu0 %v347
    %510 = vmatprep.subr.mxu0 0.0
    %511 = vmatpush1.msra.mxu0 %v344
    %512 = vmatprep.subr.mxu0 0.0
    %513 = vmatpush1.msra.mxu0 %v341
    %514 = vmatprep.subr.mxu0 0.0
    %515 = vmatpush1.msra.mxu0 %v338
    %516 = vmatprep.subr.mxu0 0.0
    %517 = vmatpush1.msra.mxu0 %v335
    %518 = vmatprep.subr.mxu0 0.0
    %519 = vmatpush1.msra.mxu0 %v332
    %520 = vmatprep.subr.mxu0 0.0
    %521 = vmatpush1.msra.mxu0 %v329
    %522 = vmatprep.subr.mxu0 0.0
    %523 = vmatpush1.msra.mxu0 %v326
    %524 = vmatprep.subr.mxu0 0.0
    %525 = vmatpush1.msra.mxu0 %v323
    %526 = vmatprep.subr.mxu0 0.0
    %527 = vmatpush1.msra.mxu0 %v320
    %528 = vmatprep.subr.mxu0 0.0
    %529 = vmatpush2.msra.mxu0 0.0
    %530 = vmatprep.subr.mxu0 0.0
    %531 = vmatpush2.msra.mxu0 0.0
    %532 = vmatprep.subr.mxu0 0.0
    %533 = vmatpush2.msra.mxu0 0.0
    %534 = vmatprep.subr.mxu0 0.0
    %535 = vmatpush2.msra.mxu0 0.0
    %536 = vmatprep.subr.mxu0 0.0
    %537 = vmatpush2.msra.mxu0 0.0
    %538 = vmatprep.subr.mxu0 0.0
    %539 = vmatpush2.msra.mxu0 0.0
    %540 = vmatprep.subr.mxu0 0.0
    %541 = vmatpush2.msra.mxu0 0.0
    %542 = vmatprep.subr.mxu0 0.0
    %543 = vmatpush2.msra.mxu0 0.0
    %544 = vmatprep.subr.mxu0 0.0
    %545 = vmatpush2.msra.mxu0 0.0
    %546 = vmatprep.subr.mxu0 0.0
    %547 = vmatpush2.msra.mxu0 0.0
    %548 = vmatprep.subr.mxu0 0.0
    %549 = vmatpush2.msra.mxu0 0.0
    %550 = vmatprep.subr.mxu0 0.0
    %551 = vmatpush2.msra.mxu0 0.0
    %552 = vmatprep.subr.mxu0 0.0
    %553 = vmatpush2.msra.mxu0 0.0
    %554 = vmatprep.subr.mxu0 0.0
    %555 = vmatpush2.msra.mxu0 0.0
    %556 = vmatprep.subr.mxu0 0.0
    %557 = vmatpush2.msra.mxu0 0.0
    %558 = vmatprep.subr.mxu0 0.0
    %559 = vmatpush2.msra.mxu0 0.0
    %560 = vmatprep.mubr.f32.mxu0 0.0
    %561 = vmatmul.mubr.f32.gmra.mxu0 %v280
    %v562 = vpop.f32.mrf.mxu0
    %v563 = vadd.f32 %v379, %v562
    %v564 = vpop.f32.mrf.mxu0
    %565 = vmatprep.mubr.f32.mxu0 0.0
    %566 = vmatmul.mubr.f32.gmra.mxu0 %v285
    %v567 = vpop.f32.mrf.mxu0
    %v568 = vadd.f32 %v379, %v567
    %v569 = vpop.f32.mrf.mxu0
    %570 = vmatprep.mubr.f32.mxu0 0.0
    %571 = vmatmul.mubr.f32.gmra.mxu0 %v290
    %v572 = vpop.f32.mrf.mxu0
    %v573 = vadd.f32 %v379, %v572
    %v574 = vpop.f32.mrf.mxu0
    %575 = vmatprep.mubr.f32.mxu0 0.0
    %576 = vmatmul.mubr.f32.gmra.mxu0 %v295
    %v577 = vpop.f32.mrf.mxu0
    %v578 = vadd.f32 %v379, %v577
    %v579 = vpop.f32.mrf.mxu0
    %580 = vmatprep.mubr.f32.mxu0 0.0
    %581 = vmatmul.mubr.f32.gmra.mxu0 %v300
    %v582 = vpop.f32.mrf.mxu0
    %v583 = vadd.f32 %v379, %v582
    %v584 = vpop.f32.mrf.mxu0
    %585 = vmatprep.mubr.f32.mxu0 0.0
    %586 = vmatmul.mubr.f32.gmra.mxu0 %v305
    %v587 = vpop.f32.mrf.mxu0
    %v588 = vadd.f32 %v379, %v587
    %v589 = vpop.f32.mrf.mxu0
    %590 = vmatprep.mubr.f32.mxu0 0.0
    %591 = vmatmul.mubr.f32.gmra.mxu0 %v310
    %v592 = vpop.f32.mrf.mxu0
    %v593 = vadd.f32 %v379, %v592
    %v594 = vpop.f32.mrf.mxu0
    %595 = vmatprep.mubr.f32.mxu0 0.0
    %596 = vmatmul.mubr.f32.gmra.mxu0 %v315
    %v597 = vpop.f32.mrf.mxu0
    %v598 = vadd.f32 %v379, %v597
    %v599 = vpop.f32.mrf.mxu0
    %600 = vdwg.mxu0
    %v601 = vld [vmem:[#allocation11] sm:$0xff]
    %v602 = vld [vmem:[#allocation11 + $0x8] sm:$0xff]
    %v603 = vld [vmem:[#allocation11 + $0x10] sm:$0xff]
    %v604 = vld [vmem:[#allocation11 + $0x18] sm:$0xff]
    %v605 = vld [vmem:[#allocation11 + $0x20] sm:$0xff]
    %v606 = vld [vmem:[#allocation11 + $0x28] sm:$0xff]
    %v607 = vld [vmem:[#allocation11 + $0x30] sm:$0xff]
    %v608 = vld [vmem:[#allocation11 + $0x38] sm:$0xff]
    %v609 = vld [vmem:[#allocation11 + $0x40] sm:$0xff]
    %v610 = vld [vmem:[#allocation11 + $0x48] sm:$0xff]
    %v611 = vld [vmem:[#allocation11 + $0x50] sm:$0xff]
    %v612 = vld [vmem:[#allocation11 + $0x58] sm:$0xff]
    %v613 = vld [vmem:[#allocation11 + $0x60] sm:$0xff]
    %v614 = vld [vmem:[#allocation11 + $0x68] sm:$0xff]
    %v615 = vld [vmem:[#allocation11 + $0x70] sm:$0xff]
    %v616 = vld [vmem:[#allocation11 + $0x78] sm:$0xff]
    %v617 = vld [vmem:[#allocation11 + $0x80] sm:$0xff]
    %v618 = vld [vmem:[#allocation11 + $0x88] sm:$0xff]
    %v619 = vld [vmem:[#allocation11 + $0x90] sm:$0xff]
    %v620 = vld [vmem:[#allocation11 + $0x98] sm:$0xff]
    %v621 = vld [vmem:[#allocation11 + $0xa0] sm:$0xff]
    %v622 = vld [vmem:[#allocation11 + $0xa8] sm:$0xff]
    %v623 = vld [vmem:[#allocation11 + $0xb0] sm:$0xff]
    %v624 = vld [vmem:[#allocation11 + $0xb8] sm:$0xff]
    %v625 = vld [vmem:[#allocation11 + $0xc0] sm:$0xff]
    %v626 = vld [vmem:[#allocation11 + $0xc8] sm:$0xff]
    %v627 = vld [vmem:[#allocation11 + $0xd0] sm:$0xff]
    %v628 = vld [vmem:[#allocation11 + $0xd8] sm:$0xff]
    %v629 = vld [vmem:[#allocation11 + $0xe0] sm:$0xff]
    %v630 = vld [vmem:[#allocation11 + $0xe8] sm:$0xff]
    %v631 = vld [vmem:[#allocation11 + $0xf0] sm:$0xff]
    %v632 = vld [vmem:[#allocation11 + $0xf8] sm:$0xff]
    %v633 = vld [vmem:[#allocation11 + $0x100] sm:$0xff]
    %v634 = vld [vmem:[#allocation11 + $0x108] sm:$0xff]
    %v635 = vld [vmem:[#allocation11 + $0x110] sm:$0xff]
    %v636 = vld [vmem:[#allocation11 + $0x118] sm:$0xff]
    %v637 = vld [vmem:[#allocation11 + $0x120] sm:$0xff]
    %v638 = vld [vmem:[#allocation11 + $0x128] sm:$0xff]
    %v639 = vld [vmem:[#allocation11 + $0x130] sm:$0xff]
    %v640 = vld [vmem:[#allocation11 + $0x138] sm:$0xff]
    %v641 = vld [vmem:[#allocation11 + $0x140] sm:$0xff]
    %v642 = vld [vmem:[#allocation11 + $0x148] sm:$0xff]
    %v643 = vld [vmem:[#allocation11 + $0x150] sm:$0xff]
    %v644 = vld [vmem:[#allocation11 + $0x158] sm:$0xff]
    %v645 = vld [vmem:[#allocation11 + $0x160] sm:$0xff]
    %v646 = vld [vmem:[#allocation11 + $0x168] sm:$0xff]
    %v647 = vld [vmem:[#allocation11 + $0x170] sm:$0xff]
    %v648 = vld [vmem:[#allocation11 + $0x178] sm:$0xff]
    %v649 = vld [vmem:[%s6] sm:$0x1]
    %v650 = vld [vmem:[#allocation6] sm:$0xff]
    %651 = vmatprep.subr.mxu0 %v647
    %652 = vmatpush1.msra.mxu0 %v646
    %653 = vmatprep.subr.mxu0 %v644
    %654 = vmatpush1.msra.mxu0 %v643
    %655 = vmatprep.subr.mxu0 %v641
    %656 = vmatpush1.msra.mxu0 %v640
    %657 = vmatprep.subr.mxu0 %v638
    %658 = vmatpush1.msra.mxu0 %v637
    %659 = vmatprep.subr.mxu0 %v635
    %660 = vmatpush1.msra.mxu0 %v634
    %661 = vmatprep.subr.mxu0 %v632
    %662 = vmatpush1.msra.mxu0 %v631
    %663 = vmatprep.subr.mxu0 %v629
    %664 = vmatpush1.msra.mxu0 %v628
    %665 = vmatprep.subr.mxu0 %v626
    %666 = vmatpush1.msra.mxu0 %v625
    %667 = vmatprep.subr.mxu0 %v623
    %668 = vmatpush1.msra.mxu0 %v622
    %669 = vmatprep.subr.mxu0 %v620
    %670 = vmatpush1.msra.mxu0 %v619
    %671 = vmatprep.subr.mxu0 %v617
    %672 = vmatpush1.msra.mxu0 %v616
    %673 = vmatprep.subr.mxu0 %v614
    %674 = vmatpush1.msra.mxu0 %v613
    %675 = vmatprep.subr.mxu0 %v611
    %676 = vmatpush1.msra.mxu0 %v610
    %677 = vmatprep.subr.mxu0 %v608
    %678 = vmatpush1.msra.mxu0 %v607
    %679 = vmatprep.subr.mxu0 %v605
    %680 = vmatpush1.msra.mxu0 %v604
    %681 = vmatprep.subr.mxu0 %v602
    %682 = vmatpush1.msra.mxu0 %v601
    %683 = vmatprep.subr.mxu0 0.0
    %684 = vmatpush2.msra.mxu0 0.0
    %685 = vmatprep.subr.mxu0 0.0
    %686 = vmatpush2.msra.mxu0 0.0
    %687 = vmatprep.subr.mxu0 0.0
    %688 = vmatpush2.msra.mxu0 0.0
    %689 = vmatprep.subr.mxu0 0.0
    %690 = vmatpush2.msra.mxu0 0.0
    %691 = vmatprep.subr.mxu0 0.0
    %692 = vmatpush2.msra.mxu0 0.0
    %693 = vmatprep.subr.mxu0 0.0
    %694 = vmatpush2.msra.mxu0 0.0
    %695 = vmatprep.subr.mxu0 0.0
    %696 = vmatpush2.msra.mxu0 0.0
    %697 = vmatprep.subr.mxu0 0.0
    %698 = vmatpush2.msra.mxu0 0.0
    %699 = vmatprep.subr.mxu0 0.0
    %700 = vmatpush2.msra.mxu0 0.0
    %701 = vmatprep.subr.mxu0 0.0
    %702 = vmatpush2.msra.mxu0 0.0
    %703 = vmatprep.subr.mxu0 0.0
    %704 = vmatpush2.msra.mxu0 0.0
    %705 = vmatprep.subr.mxu0 0.0
    %706 = vmatpush2.msra.mxu0 0.0
    %707 = vmatprep.subr.mxu0 0.0
    %708 = vmatpush2.msra.mxu0 0.0
    %709 = vmatprep.subr.mxu0 0.0
    %710 = vmatpush2.msra.mxu0 0.0
    %711 = vmatprep.subr.mxu0 0.0
    %712 = vmatpush2.msra.mxu0 0.0
    %713 = vmatprep.subr.mxu0 0.0
    %714 = vmatpush2.msra.mxu0 0.0
    %715 = vmatprep.mubr.f32.mxu0 0.0
    %716 = vmatmul.mubr.f32.gmra.mxu0 %v650
    %v717 = vpop.f32.mrf.mxu0
    %v718 = vadd.f32 0.0, %v717
    %v719 = vpop.f32.mrf.mxu0
    %v720 = vadd.f32 0.0, %v719
    %721 = vdwg.mxu0
    %722 = vmatprep.subr.mxu0 0.0
    %723 = vmatpush1.msra.mxu0 %v648
    %724 = vmatprep.subr.mxu0 0.0
    %725 = vmatpush1.msra.mxu0 %v645
    %726 = vmatprep.subr.mxu0 0.0
    %727 = vmatpush1.msra.mxu0 %v642
    %728 = vmatprep.subr.mxu0 0.0
    %729 = vmatpush1.msra.mxu0 %v639
    %730 = vmatprep.subr.mxu0 0.0
    %731 = vmatpush1.msra.mxu0 %v636
    %732 = vmatprep.subr.mxu0 0.0
    %733 = vmatpush1.msra.mxu0 %v633
    %734 = vmatprep.subr.mxu0 0.0
    %735 = vmatpush1.msra.mxu0 %v630
    %736 = vmatprep.subr.mxu0 0.0
    %737 = vmatpush1.msra.mxu0 %v627
    %738 = vmatprep.subr.mxu0 0.0
    %739 = vmatpush1.msra.mxu0 %v624
    %740 = vmatprep.subr.mxu0 0.0
    %741 = vmatpush1.msra.mxu0 %v621
    %742 = vmatprep.subr.mxu0 0.0
    %743 = vmatpush1.msra.mxu0 %v618
    %744 = vmatprep.subr.mxu0 0.0
    %745 = vmatpush1.msra.mxu0 %v615
    %746 = vmatprep.subr.mxu0 0.0
    %747 = vmatpush1.msra.mxu0 %v612
    %748 = vmatprep.subr.mxu0 0.0
    %749 = vmatpush1.msra.mxu0 %v609
    %750 = vmatprep.subr.mxu0 0.0
    %751 = vmatpush1.msra.mxu0 %v606
    %752 = vmatprep.subr.mxu0 0.0
    %753 = vmatpush1.msra.mxu0 %v603
    %754 = vmatprep.subr.mxu0 0.0
    %755 = vmatpush2.msra.mxu0 0.0
    %756 = vmatprep.subr.mxu0 0.0
    %757 = vmatpush2.msra.mxu0 0.0
    %758 = vmatprep.subr.mxu0 0.0
    %759 = vmatpush2.msra.mxu0 0.0
    %760 = vmatprep.subr.mxu0 0.0
    %761 = vmatpush2.msra.mxu0 0.0
    %762 = vmatprep.subr.mxu0 0.0
    %763 = vmatpush2.msra.mxu0 0.0
    %764 = vmatprep.subr.mxu0 0.0
    %765 = vmatpush2.msra.mxu0 0.0
    %766 = vmatprep.subr.mxu0 0.0
    %767 = vmatpush2.msra.mxu0 0.0
    %768 = vmatprep.subr.mxu0 0.0
    %769 = vmatpush2.msra.mxu0 0.0
    %770 = vmatprep.subr.mxu0 0.0
    %771 = vmatpush2.msra.mxu0 0.0
    %772 = vmatprep.subr.mxu0 0.0
    %773 = vmatpush2.msra.mxu0 0.0
    %774 = vmatprep.subr.mxu0 0.0
    %775 = vmatpush2.msra.mxu0 0.0
    %776 = vmatprep.subr.mxu0 0.0
    %777 = vmatpush2.msra.mxu0 0.0
    %778 = vmatprep.subr.mxu0 0.0
    %779 = vmatpush2.msra.mxu0 0.0
    %780 = vmatprep.subr.mxu0 0.0
    %781 = vmatpush2.msra.mxu0 0.0
    %782 = vmatprep.subr.mxu0 0.0
    %783 = vmatpush2.msra.mxu0 0.0
    %784 = vmatprep.subr.mxu0 0.0
    %785 = vmatpush2.msra.mxu0 0.0
    %786 = vmatprep.mubr.f32.mxu0 0.0
    %787 = vmatmul.mubr.f32.gmra.mxu0 %v650
    %v788 = vpop.f32.mrf.mxu0
    %v789 = vadd.f32 0.0, %v788
    %v790 = vpop.f32.mrf.mxu0
    %791 = vdwg.mxu0
    %v793 = vrot.slane %v718, 1
    %v794 = vrot.slane %v718, 2
    %v795 = vrot.slane %v718, 3
    %v796 = vrot.slane %v718, 4
    %v797 = vrot.slane %v718, 5
    %v798 = vrot.slane %v718, 6
    %v799 = vrot.slane %v718, 7
    %v808 = vadd.f32 %v450, %v718
    %v809 = vadd.f32 %v456, %v793
    %v810 = vadd.f32 %v462, %v794
    %v811 = vadd.f32 %v468, %v795
    %v812 = vadd.f32 %v474, %v796
    %v813 = vadd.f32 %v480, %v797
    %v814 = vadd.f32 %v486, %v798
    %v815 = vadd.f32 %v492, %v799
    %v816 = vxor.u32 %v808, 2147483648
    %v817 = vxor.u32 %v809, 2147483648
    %v818 = vxor.u32 %v810, 2147483648
    %v819 = vxor.u32 %v811, 2147483648
    %v820 = vxor.u32 %v812, 2147483648
    %v821 = vxor.u32 %v813, 2147483648
    %v822 = vxor.u32 %v814, 2147483648
    %v823 = vxor.u32 %v815, 2147483648
    %v824 = vmul.f32 %v816, 1.442695
    %v825 = vpow.pop %v824
    %v826 = vmul.f32 %v817, 1.442695
    %v827 = vpow.pop %v826
    %v828 = vmul.f32 %v818, 1.442695
    %v829 = vpow.pop %v828
    %v830 = vmul.f32 %v819, 1.442695
    %v831 = vpow.pop %v830
    %v832 = vmul.f32 %v820, 1.442695
    %v833 = vpow.pop %v832
    %v834 = vmul.f32 %v821, 1.442695
    %v835 = vpow.pop %v834
    %v836 = vmul.f32 %v822, 1.442695
    %v837 = vpow.pop %v836
    %v838 = vmul.f32 %v823, 1.442695
    %v839 = vpow.pop %v838
    %v840 = vadd.f32 %v825, 1.0
    %v841 = vadd.f32 %v827, 1.0
    %v842 = vadd.f32 %v829, 1.0
    %v843 = vadd.f32 %v831, 1.0
    %v844 = vadd.f32 %v833, 1.0
    %v845 = vadd.f32 %v835, 1.0
    %v846 = vadd.f32 %v837, 1.0
    %v847 = vadd.f32 %v839, 1.0
    %v848 = vrcp.pop %v840
    %v849 = vmul.f32 1.0, %v848
    %v850 = vrcp.pop %v841
    %v851 = vmul.f32 1.0, %v850
    %v852 = vrcp.pop %v842
    %v853 = vmul.f32 1.0, %v852
    %v854 = vrcp.pop %v843
    %v855 = vmul.f32 1.0, %v854
    %v856 = vrcp.pop %v844
    %v857 = vmul.f32 1.0, %v856
    %v858 = vrcp.pop %v845
    %v859 = vmul.f32 1.0, %v858
    %v860 = vrcp.pop %v846
    %v861 = vmul.f32 1.0, %v860
    %v862 = vrcp.pop %v847
    %v863 = vmul.f32 1.0, %v862
    %v865 = vrot.slane %v720, 1
    %v866 = vrot.slane %v720, 2
    %v867 = vrot.slane %v720, 3
    %v868 = vrot.slane %v720, 4
    %v869 = vrot.slane %v720, 5
    %v870 = vrot.slane %v720, 6
    %v871 = vrot.slane %v720, 7
    %v880 = vadd.f32 %v452, %v720
    %v881 = vadd.f32 %v458, %v865
    %v882 = vadd.f32 %v464, %v866
    %v883 = vadd.f32 %v470, %v867
    %v884 = vadd.f32 %v476, %v868
    %v885 = vadd.f32 %v482, %v869
    %v886 = vadd.f32 %v488, %v870
    %v887 = vadd.f32 %v494, %v871
    %v888 = vxor.u32 %v880, 2147483648
    %v889 = vxor.u32 %v881, 2147483648
    %v890 = vxor.u32 %v882, 2147483648
    %v891 = vxor.u32 %v883, 2147483648
    %v892 = vxor.u32 %v884, 2147483648
    %v893 = vxor.u32 %v885, 2147483648
    %v894 = vxor.u32 %v886, 2147483648
    %v895 = vxor.u32 %v887, 2147483648
    %v896 = vmul.f32 %v888, 1.442695
    %v897 = vpow.pop %v896
    %v898 = vmul.f32 %v889, 1.442695
    %v899 = vpow.pop %v898
    %v900 = vmul.f32 %v890, 1.442695
    %v901 = vpow.pop %v900
    %v902 = vmul.f32 %v891, 1.442695
    %v903 = vpow.pop %v902
    %v904 = vmul.f32 %v892, 1.442695
    %v905 = vpow.pop %v904
    %v906 = vmul.f32 %v893, 1.442695
    %v907 = vpow.pop %v906
    %v908 = vmul.f32 %v894, 1.442695
    %v909 = vpow.pop %v908
    %v910 = vmul.f32 %v895, 1.442695
    %v911 = vpow.pop %v910
    %v912 = vadd.f32 %v897, 1.0
    %v913 = vadd.f32 %v899, 1.0
    %v914 = vadd.f32 %v901, 1.0
    %v915 = vadd.f32 %v903, 1.0
    %v916 = vadd.f32 %v905, 1.0
    %v917 = vadd.f32 %v907, 1.0
    %v918 = vadd.f32 %v909, 1.0
    %v919 = vadd.f32 %v911, 1.0
    %v920 = vrcp.pop %v912
    %v921 = vmul.f32 1.0, %v920
    %v922 = vrcp.pop %v913
    %v923 = vmul.f32 1.0, %v922
    %v924 = vrcp.pop %v914
    %v925 = vmul.f32 1.0, %v924
    %v926 = vrcp.pop %v915
    %v927 = vmul.f32 1.0, %v926
    %v928 = vrcp.pop %v916
    %v929 = vmul.f32 1.0, %v928
    %v930 = vrcp.pop %v917
    %v931 = vmul.f32 1.0, %v930
    %v932 = vrcp.pop %v918
    %v933 = vmul.f32 1.0, %v932
    %v934 = vrcp.pop %v919
    %v935 = vmul.f32 1.0, %v934
    %v937 = vlaneseq
    %v938 = vshrl.u32 %v937, 7
    %v939 = vsub.s32 0, %v938
    %v940 = vrot.slane %v649, %v939
    %v942 = vadd.f32 %v789, %v940
    %v944 = vrot.slane %v942, 1
    %v945 = vrot.slane %v942, 2
    %v946 = vrot.slane %v942, 3
    %v947 = vrot.slane %v942, 4
    %v948 = vrot.slane %v942, 5
    %v949 = vrot.slane %v942, 6
    %v950 = vrot.slane %v942, 7
    %v959 = vmul.f32 %v849, %v942
    %v960 = vmul.f32 %v851, %v944
    %v961 = vmul.f32 %v853, %v945
    %v962 = vmul.f32 %v855, %v946
    %v963 = vmul.f32 %v857, %v947
    %v964 = vmul.f32 %v859, %v948
    %v965 = vmul.f32 %v861, %v949
    %v966 = vmul.f32 %v863, %v950
    %v967 = vadd.f32 %v563, %v959
    %v968 = vadd.f32 %v568, %v960
    %v969 = vadd.f32 %v573, %v961
    %v970 = vadd.f32 %v578, %v962
    %v971 = vadd.f32 %v583, %v963
    %v972 = vadd.f32 %v588, %v964
    %v973 = vadd.f32 %v593, %v965
    %v974 = vadd.f32 %v598, %v966
    %v975 = vtanh.pop %v967
    %v976 = vtanh.pop %v968
    %v977 = vtanh.pop %v969
    %v978 = vtanh.pop %v970
    %v979 = vtanh.pop %v971
    %v980 = vtanh.pop %v972
    %v981 = vtanh.pop %v973
    %v982 = vtanh.pop %v974
    %v983 = vsub.f32 1.0, %v921
    %v984 = vsub.f32 1.0, %v923
    %v985 = vsub.f32 1.0, %v925
    %v986 = vsub.f32 1.0, %v927
    %v987 = vsub.f32 1.0, %v929
    %v988 = vsub.f32 1.0, %v931
    %v989 = vsub.f32 1.0, %v933
    %v990 = vsub.f32 1.0, %v935
    %v991 = vmul.f32 %v983, %v975
    %v992 = vmul.f32 %v984, %v976
    %v993 = vmul.f32 %v985, %v977
    %v994 = vmul.f32 %v986, %v978
    %v995 = vmul.f32 %v987, %v979
    %v996 = vmul.f32 %v988, %v980
    %v997 = vmul.f32 %v989, %v981
    %v998 = vmul.f32 %v990, %v982
    %v1000 = vrot.slane %v650, 1
    %v1001 = vrot.slane %v650, 2
    %v1002 = vrot.slane %v650, 3
    %v1003 = vrot.slane %v650, 4
    %v1004 = vrot.slane %v650, 5
    %v1005 = vrot.slane %v650, 6
    %v1006 = vrot.slane %v650, 7
    %v1015 = vmul.f32 %v921, %v650
    %v1016 = vmul.f32 %v923, %v1000
    %v1017 = vmul.f32 %v925, %v1001
    %v1018 = vmul.f32 %v927, %v1002
    %v1019 = vmul.f32 %v929, %v1003
    %v1020 = vmul.f32 %v931, %v1004
    %v1021 = vmul.f32 %v933, %v1005
    %v1022 = vmul.f32 %v935, %v1006
    %v1023 = vadd.f32 %v991, %v1015
    %v1024 = vadd.f32 %v992, %v1016
    %v1025 = vadd.f32 %v993, %v1017
    %v1026 = vadd.f32 %v994, %v1018
    %v1027 = vadd.f32 %v995, %v1019
    %v1028 = vadd.f32 %v996, %v1020
    %v1029 = vadd.f32 %v997, %v1021
    %v1030 = vadd.f32 %v998, %v1022
    %1031 = vst [vmem:[#allocation2] sm:$0x1] %v1023
    %1032 = vst [vmem:[#allocation2 + $0x8] sm:$0x1] %v1024
    %1033 = vst [vmem:[#allocation2 + $0x10] sm:$0x1] %v1025
    %1034 = vst [vmem:[#allocation2 + $0x18] sm:$0x1] %v1026
    %1035 = vst [vmem:[#allocation2 + $0x20] sm:$0x1] %v1027
    %1036 = vst [vmem:[#allocation2 + $0x28] sm:$0x1] %v1028
    %1037 = vst [vmem:[#allocation2 + $0x30] sm:$0x1] %v1029
    %1038 = vst [vmem:[#allocation2 + $0x38] sm:$0x1] %v1030
    %v1047 = vrot.slane %v1024, 7
    %vm1048 = vcmask 1041409
    %v1049 = vsel %vm1048, %v1047, %v1023
    %v1050 = vrot.slane %v1025, 6
    %vm1051 = vcmask 1042434
    %v1052 = vsel %vm1051, %v1050, %v1049
    %v1053 = vrot.slane %v1026, 5
    %vm1054 = vcmask 1043459
    %v1055 = vsel %vm1054, %v1053, %v1052
    %v1056 = vrot.slane %v1027, 4
    %vm1057 = vcmask 1044484
    %v1058 = vsel %vm1057, %v1056, %v1055
    %v1059 = vrot.slane %v1028, 3
    %vm1060 = vcmask 1045509
    %v1061 = vsel %vm1060, %v1059, %v1058
    %v1062 = vrot.slane %v1029, 2
    %vm1063 = vcmask 1046534
    %v1064 = vsel %vm1063, %v1062, %v1061
    %v1065 = vrot.slane %v1030, 1
    %vm1066 = vcmask 1047559
    %v1067 = vsel %vm1066, %v1065, %v1064
    %1069 = vmatprep.subr.mxu0 %v647
    %1070 = vmatpush1.msra.mxu0 %v646
    %1071 = vmatprep.subr.mxu0 %v644
    %1072 = vmatpush1.msra.mxu0 %v643
    %1073 = vmatprep.subr.mxu0 %v641
    %1074 = vmatpush1.msra.mxu0 %v640
    %1075 = vmatprep.subr.mxu0 %v638
    %1076 = vmatpush1.msra.mxu0 %v637
    %1077 = vmatprep.subr.mxu0 %v635
    %1078 = vmatpush1.msra.mxu0 %v634
    %1079 = vmatprep.subr.mxu0 %v632
    %1080 = vmatpush1.msra.mxu0 %v631
    %1081 = vmatprep.subr.mxu0 %v629
    %1082 = vmatpush1.msra.mxu0 %v628
    %1083 = vmatprep.subr.mxu0 %v626
    %1084 = vmatpush1.msra.mxu0 %v625
    %1085 = vmatprep.subr.mxu0 %v623
    %1086 = vmatpush1.msra.mxu0 %v622
    %1087 = vmatprep.subr.mxu0 %v620
    %1088 = vmatpush1.msra.mxu0 %v619
    %1089 = vmatprep.subr.mxu0 %v617
    %1090 = vmatpush1.msra.mxu0 %v616
    %1091 = vmatprep.subr.mxu0 %v614
    %1092 = vmatpush1.msra.mxu0 %v613
    %1093 = vmatprep.subr.mxu0 %v611
    %1094 = vmatpush1.msra.mxu0 %v610
    %1095 = vmatprep.subr.mxu0 %v608
    %1096 = vmatpush1.msra.mxu0 %v607
    %1097 = vmatprep.subr.mxu0 %v605
    %1098 = vmatpush1.msra.mxu0 %v604
    %1099 = vmatprep.subr.mxu0 %v602
    %1100 = vmatpush1.msra.mxu0 %v601
    %1101 = vmatprep.subr.mxu0 0.0
    %1102 = vmatpush2.msra.mxu0 0.0
    %1103 = vmatprep.subr.mxu0 0.0
    %1104 = vmatpush2.msra.mxu0 0.0
    %1105 = vmatprep.subr.mxu0 0.0
    %1106 = vmatpush2.msra.mxu0 0.0
    %1107 = vmatprep.subr.mxu0 0.0
    %1108 = vmatpush2.msra.mxu0 0.0
    %1109 = vmatprep.subr.mxu0 0.0
    %1110 = vmatpush2.msra.mxu0 0.0
    %1111 = vmatprep.subr.mxu0 0.0
    %1112 = vmatpush2.msra.mxu0 0.0
    %1113 = vmatprep.subr.mxu0 0.0
    %1114 = vmatpush2.msra.mxu0 0.0
    %1115 = vmatprep.subr.mxu0 0.0
    %1116 = vmatpush2.msra.mxu0 0.0
    %1117 = vmatprep.subr.mxu0 0.0
    %1118 = vmatpush2.msra.mxu0 0.0
    %1119 = vmatprep.subr.mxu0 0.0
    %1120 = vmatpush2.msra.mxu0 0.0
    %1121 = vmatprep.subr.mxu0 0.0
    %1122 = vmatpush2.msra.mxu0 0.0
    %1123 = vmatprep.subr.mxu0 0.0
    %1124 = vmatpush2.msra.mxu0 0.0
    %1125 = vmatprep.subr.mxu0 0.0
    %1126 = vmatpush2.msra.mxu0 0.0
    %1127 = vmatprep.subr.mxu0 0.0
    %1128 = vmatpush2.msra.mxu0 0.0
    %1129 = vmatprep.subr.mxu0 0.0
    %1130 = vmatpush2.msra.mxu0 0.0
    %1131 = vmatprep.subr.mxu0 0.0
    %1132 = vmatpush2.msra.mxu0 0.0
    %1133 = vmatprep.mubr.f32.mxu0 0.0
    %1134 = vmatmul.mubr.f32.gmra.mxu0 %v1067
    %v1135 = vpop.f32.mrf.mxu0
    %v1136 = vadd.f32 0.0, %v1135
    %v1137 = vpop.f32.mrf.mxu0
    %v1138 = vadd.f32 0.0, %v1137
    %1139 = vdwg.mxu0
    %1140 = vmatprep.subr.mxu0 0.0
    %1141 = vmatpush1.msra.mxu0 %v648
    %1142 = vmatprep.subr.mxu0 0.0
    %1143 = vmatpush1.msra.mxu0 %v645
    %1144 = vmatprep.subr.mxu0 0.0
    %1145 = vmatpush1.msra.mxu0 %v642
    %1146 = vmatprep.subr.mxu0 0.0
    %1147 = vmatpush1.msra.mxu0 %v639
    %1148 = vmatprep.subr.mxu0 0.0
    %1149 = vmatpush1.msra.mxu0 %v636
    %1150 = vmatprep.subr.mxu0 0.0
    %1151 = vmatpush1.msra.mxu0 %v633
    %1152 = vmatprep.subr.mxu0 0.0
    %1153 = vmatpush1.msra.mxu0 %v630
    %1154 = vmatprep.subr.mxu0 0.0
    %1155 = vmatpush1.msra.mxu0 %v627
    %1156 = vmatprep.subr.mxu0 0.0
    %1157 = vmatpush1.msra.mxu0 %v624
    %1158 = vmatprep.subr.mxu0 0.0
    %1159 = vmatpush1.msra.mxu0 %v621
    %1160 = vmatprep.subr.mxu0 0.0
    %1161 = vmatpush1.msra.mxu0 %v618
    %1162 = vmatprep.subr.mxu0 0.0
    %1163 = vmatpush1.msra.mxu0 %v615
    %1164 = vmatprep.subr.mxu0 0.0
    %1165 = vmatpush1.msra.mxu0 %v612
    %1166 = vmatprep.subr.mxu0 0.0
    %1167 = vmatpush1.msra.mxu0 %v609
    %1168 = vmatprep.subr.mxu0 0.0
    %1169 = vmatpush1.msra.mxu0 %v606
    %1170 = vmatprep.subr.mxu0 0.0
    %1171 = vmatpush1.msra.mxu0 %v603
    %1172 = vmatprep.subr.mxu0 0.0
    %1173 = vmatpush2.msra.mxu0 0.0
    %1174 = vmatprep.subr.mxu0 0.0
    %1175 = vmatpush2.msra.mxu0 0.0
    %1176 = vmatprep.subr.mxu0 0.0
    %1177 = vmatpush2.msra.mxu0 0.0
    %1178 = vmatprep.subr.mxu0 0.0
    %1179 = vmatpush2.msra.mxu0 0.0
    %1180 = vmatprep.subr.mxu0 0.0
    %1181 = vmatpush2.msra.mxu0 0.0
    %1182 = vmatprep.subr.mxu0 0.0
    %1183 = vmatpush2.msra.mxu0 0.0
    %1184 = vmatprep.subr.mxu0 0.0
    %1185 = vmatpush2.msra.mxu0 0.0
    %1186 = vmatprep.subr.mxu0 0.0
    %1187 = vmatpush2.msra.mxu0 0.0
    %1188 = vmatprep.subr.mxu0 0.0
    %1189 = vmatpush2.msra.mxu0 0.0
    %1190 = vmatprep.subr.mxu0 0.0
    %1191 = vmatpush2.msra.mxu0 0.0
    %1192 = vmatprep.subr.mxu0 0.0
    %1193 = vmatpush2.msra.mxu0 0.0
    %1194 = vmatprep.subr.mxu0 0.0
    %1195 = vmatpush2.msra.mxu0 0.0
    %1196 = vmatprep.subr.mxu0 0.0
    %1197 = vmatpush2.msra.mxu0 0.0
    %1198 = vmatprep.subr.mxu0 0.0
    %1199 = vmatpush2.msra.mxu0 0.0
    %1200 = vmatprep.subr.mxu0 0.0
    %1201 = vmatpush2.msra.mxu0 0.0
    %1202 = vmatprep.subr.mxu0 0.0
    %1203 = vmatpush2.msra.mxu0 0.0
    %1204 = vmatprep.mubr.f32.mxu0 0.0
    %1205 = vmatmul.mubr.f32.gmra.mxu0 %v1067
    %v1206 = vpop.f32.mrf.mxu0
    %v1207 = vadd.f32 0.0, %v1206
    %v1208 = vpop.f32.mrf.mxu0
    %1209 = vdwg.mxu0
    %v1211 = vrot.slane %v1136, 7
    %v1212 = vrot.slane %v1136, 1
    %v1213 = vrot.slane %v1136, 2
    %v1214 = vrot.slane %v1136, 3
    %v1215 = vrot.slane %v1136, 4
    %v1216 = vrot.slane %v1136, 5
    %v1217 = vrot.slane %v1136, 6
    %v1226 = vadd.f32 %v450, %v1211
    %v1227 = vadd.f32 %v456, %v1136
    %v1228 = vadd.f32 %v462, %v1212
    %v1229 = vadd.f32 %v468, %v1213
    %v1230 = vadd.f32 %v474, %v1214
    %v1231 = vadd.f32 %v480, %v1215
    %v1232 = vadd.f32 %v486, %v1216
    %v1233 = vadd.f32 %v492, %v1217
    %v1234 = vxor.u32 %v1226, 2147483648
    %v1235 = vxor.u32 %v1227, 2147483648
    %v1236 = vxor.u32 %v1228, 2147483648
    %v1237 = vxor.u32 %v1229, 2147483648
    %v1238 = vxor.u32 %v1230, 2147483648
    %v1239 = vxor.u32 %v1231, 2147483648
    %v1240 = vxor.u32 %v1232, 2147483648
    %v1241 = vxor.u32 %v1233, 2147483648
    %v1242 = vmul.f32 %v1234, 1.442695
    %v1243 = vpow.pop %v1242
    %v1244 = vmul.f32 %v1235, 1.442695
    %v1245 = vpow.pop %v1244
    %v1246 = vmul.f32 %v1236, 1.442695
    %v1247 = vpow.pop %v1246
    %v1248 = vmul.f32 %v1237, 1.442695
    %v1249 = vpow.pop %v1248
    %v1250 = vmul.f32 %v1238, 1.442695
    %v1251 = vpow.pop %v1250
    %v1252 = vmul.f32 %v1239, 1.442695
    %v1253 = vpow.pop %v1252
    %v1254 = vmul.f32 %v1240, 1.442695
    %v1255 = vpow.pop %v1254
    %v1256 = vmul.f32 %v1241, 1.442695
    %v1257 = vpow.pop %v1256
    %v1258 = vadd.f32 %v1243, 1.0
    %v1259 = vadd.f32 %v1245, 1.0
    %v1260 = vadd.f32 %v1247, 1.0
    %v1261 = vadd.f32 %v1249, 1.0
    %v1262 = vadd.f32 %v1251, 1.0
    %v1263 = vadd.f32 %v1253, 1.0
    %v1264 = vadd.f32 %v1255, 1.0
    %v1265 = vadd.f32 %v1257, 1.0
    %v1266 = vrcp.pop %v1258
    %v1267 = vmul.f32 1.0, %v1266
    %v1268 = vrcp.pop %v1259
    %v1269 = vmul.f32 1.0, %v1268
    %v1270 = vrcp.pop %v1260
    %v1271 = vmul.f32 1.0, %v1270
    %v1272 = vrcp.pop %v1261
    %v1273 = vmul.f32 1.0, %v1272
    %v1274 = vrcp.pop %v1262
    %v1275 = vmul.f32 1.0, %v1274
    %v1276 = vrcp.pop %v1263
    %v1277 = vmul.f32 1.0, %v1276
    %v1278 = vrcp.pop %v1264
    %v1279 = vmul.f32 1.0, %v1278
    %v1280 = vrcp.pop %v1265
    %v1281 = vmul.f32 1.0, %v1280
    %v1283 = vrot.slane %v1138, 7
    %v1284 = vrot.slane %v1138, 1
    %v1285 = vrot.slane %v1138, 2
    %v1286 = vrot.slane %v1138, 3
    %v1287 = vrot.slane %v1138, 4
    %v1288 = vrot.slane %v1138, 5
    %v1289 = vrot.slane %v1138, 6
    %v1298 = vadd.f32 %v452, %v1283
    %v1299 = vadd.f32 %v458, %v1138
    %v1300 = vadd.f32 %v464, %v1284
    %v1301 = vadd.f32 %v470, %v1285
    %v1302 = vadd.f32 %v476, %v1286
    %v1303 = vadd.f32 %v482, %v1287
    %v1304 = vadd.f32 %v488, %v1288
    %v1305 = vadd.f32 %v494, %v1289
    %v1306 = vxor.u32 %v1298, 2147483648
    %v1307 = vxor.u32 %v1299, 2147483648
    %v1308 = vxor.u32 %v1300, 2147483648
    %v1309 = vxor.u32 %v1301, 2147483648
    %v1310 = vxor.u32 %v1302, 2147483648
    %v1311 = vxor.u32 %v1303, 2147483648
    %v1312 = vxor.u32 %v1304, 2147483648
    %v1313 = vxor.u32 %v1305, 2147483648
    %v1314 = vmul.f32 %v1306, 1.442695
    %v1315 = vpow.pop %v1314
    %v1316 = vmul.f32 %v1307, 1.442695
    %v1317 = vpow.pop %v1316
    %v1318 = vmul.f32 %v1308, 1.442695
    %v1319 = vpow.pop %v1318
    %v1320 = vmul.f32 %v1309, 1.442695
    %v1321 = vpow.pop %v1320
    %v1322 = vmul.f32 %v1310, 1.442695
    %v1323 = vpow.pop %v1322
    %v1324 = vmul.f32 %v1311, 1.442695
    %v1325 = vpow.pop %v1324
    %v1326 = vmul.f32 %v1312, 1.442695
    %v1327 = vpow.pop %v1326
    %v1328 = vmul.f32 %v1313, 1.442695
    %v1329 = vpow.pop %v1328
    %v1330 = vadd.f32 %v1315, 1.0
    %v1331 = vadd.f32 %v1317, 1.0
    %v1332 = vadd.f32 %v1319, 1.0
    %v1333 = vadd.f32 %v1321, 1.0
    %v1334 = vadd.f32 %v1323, 1.0
    %v1335 = vadd.f32 %v1325, 1.0
    %v1336 = vadd.f32 %v1327, 1.0
    %v1337 = vadd.f32 %v1329, 1.0
    %v1338 = vrcp.pop %v1330
    %v1339 = vmul.f32 1.0, %v1338
    %v1340 = vrcp.pop %v1331
    %v1341 = vmul.f32 1.0, %v1340
    %v1342 = vrcp.pop %v1332
    %v1343 = vmul.f32 1.0, %v1342
    %v1344 = vrcp.pop %v1333
    %v1345 = vmul.f32 1.0, %v1344
    %v1346 = vrcp.pop %v1334
    %v1347 = vmul.f32 1.0, %v1346
    %v1348 = vrcp.pop %v1335
    %v1349 = vmul.f32 1.0, %v1348
    %v1350 = vrcp.pop %v1336
    %v1351 = vmul.f32 1.0, %v1350
    %v1352 = vrcp.pop %v1337
    %v1353 = vmul.f32 1.0, %v1352
    %v1354 = vadd.f32 %v1207, %v940
    %v1356 = vrot.slane %v1354, 7
    %v1357 = vrot.slane %v1354, 1
    %v1358 = vrot.slane %v1354, 2
    %v1359 = vrot.slane %v1354, 3
    %v1360 = vrot.slane %v1354, 4
    %v1361 = vrot.slane %v1354, 5
    %v1362 = vrot.slane %v1354, 6
    %v1371 = vmul.f32 %v1267, %v1356
    %v1372 = vmul.f32 %v1269, %v1354
    %v1373 = vmul.f32 %v1271, %v1357
    %v1374 = vmul.f32 %v1273, %v1358
    %v1375 = vmul.f32 %v1275, %v1359
    %v1376 = vmul.f32 %v1277, %v1360
    %v1377 = vmul.f32 %v1279, %v1361
    %v1378 = vmul.f32 %v1281, %v1362
    %v1379 = vadd.f32 %v563, %v1371
    %v1380 = vadd.f32 %v568, %v1372
    %v1381 = vadd.f32 %v573, %v1373
    %v1382 = vadd.f32 %v578, %v1374
    %v1383 = vadd.f32 %v583, %v1375
    %v1384 = vadd.f32 %v588, %v1376
    %v1385 = vadd.f32 %v593, %v1377
    %v1386 = vadd.f32 %v598, %v1378
    %v1387 = vtanh.pop %v1379
    %v1388 = vtanh.pop %v1380
    %v1389 = vtanh.pop %v1381
    %v1390 = vtanh.pop %v1382
    %v1391 = vtanh.pop %v1383
    %v1392 = vtanh.pop %v1384
    %v1393 = vtanh.pop %v1385
    %v1394 = vtanh.pop %v1386
    %v1395 = vsub.f32 1.0, %v1339
    %v1396 = vsub.f32 1.0, %v1341
    %v1397 = vsub.f32 1.0, %v1343
    %v1398 = vsub.f32 1.0, %v1345
    %v1399 = vsub.f32 1.0, %v1347
    %v1400 = vsub.f32 1.0, %v1349
    %v1401 = vsub.f32 1.0, %v1351
    %v1402 = vsub.f32 1.0, %v1353
    %v1403 = vmul.f32 %v1395, %v1387
    %v1404 = vmul.f32 %v1396, %v1388
    %v1405 = vmul.f32 %v1397, %v1389
    %v1406 = vmul.f32 %v1398, %v1390
    %v1407 = vmul.f32 %v1399, %v1391
    %v1408 = vmul.f32 %v1400, %v1392
    %v1409 = vmul.f32 %v1401, %v1393
    %v1410 = vmul.f32 %v1402, %v1394
    %v1411 = vrot.slane %v1023, 7
    %v1412 = vrot.slane %v1025, 7
    %v1413 = vrot.slane %v1026, 7
    %v1414 = vrot.slane %v1027, 7
    %v1415 = vrot.slane %v1028, 7
    %v1416 = vrot.slane %v1029, 7
    %v1417 = vrot.slane %v1030, 7
    %v1426 = vmul.f32 %v1339, %v1411
    %v1427 = vmul.f32 %v1341, %v1047
    %v1428 = vmul.f32 %v1343, %v1412
    %v1429 = vmul.f32 %v1345, %v1413
    %v1430 = vmul.f32 %v1347, %v1414
    %v1431 = vmul.f32 %v1349, %v1415
    %v1432 = vmul.f32 %v1351, %v1416
    %v1433 = vmul.f32 %v1353, %v1417
    %v1434 = vadd.f32 %v1403, %v1426
    %v1435 = vadd.f32 %v1404, %v1427
    %v1436 = vadd.f32 %v1405, %v1428
    %v1437 = vadd.f32 %v1406, %v1429
    %v1438 = vadd.f32 %v1407, %v1430
    %v1439 = vadd.f32 %v1408, %v1431
    %v1440 = vadd.f32 %v1409, %v1432
    %v1441 = vadd.f32 %v1410, %v1433
    %1442 = vst [vmem:[#allocation2] sm:$0x2] %v1434
    %1443 = vst [vmem:[#allocation2 + $0x8] sm:$0x2] %v1435
    %1444 = vst [vmem:[#allocation2 + $0x10] sm:$0x2] %v1436
    %1445 = vst [vmem:[#allocation2 + $0x18] sm:$0x2] %v1437
    %1446 = vst [vmem:[#allocation2 + $0x20] sm:$0x2] %v1438
    %1447 = vst [vmem:[#allocation2 + $0x28] sm:$0x2] %v1439
    %1448 = vst [vmem:[#allocation2 + $0x30] sm:$0x2] %v1440
    %1449 = vst [vmem:[#allocation2 + $0x38] sm:$0x2] %v1441
    %v1458 = vrot.slane %v1434, 1
    %v1459 = vsel %vm1048, %v1435, %v1458
    %v1460 = vrot.slane %v1436, 7
    %v1461 = vsel %vm1051, %v1460, %v1459
    %v1462 = vrot.slane %v1437, 6
    %v1463 = vsel %vm1054, %v1462, %v1461
    %v1464 = vrot.slane %v1438, 5
    %v1465 = vsel %vm1057, %v1464, %v1463
    %v1466 = vrot.slane %v1439, 4
    %v1467 = vsel %vm1060, %v1466, %v1465
    %v1468 = vrot.slane %v1440, 3
    %v1469 = vsel %vm1063, %v1468, %v1467
    %v1470 = vrot.slane %v1441, 2
    %v1471 = vsel %vm1066, %v1470, %v1469
    %1473 = vmatprep.subr.mxu0 %v647
    %1474 = vmatpush1.msra.mxu0 %v646
    %1475 = vmatprep.subr.mxu0 %v644
    %1476 = vmatpush1.msra.mxu0 %v643
    %1477 = vmatprep.subr.mxu0 %v641
    %1478 = vmatpush1.msra.mxu0 %v640
    %1479 = vmatprep.subr.mxu0 %v638
    %1480 = vmatpush1.msra.mxu0 %v637
    %1481 = vmatprep.subr.mxu0 %v635
    %1482 = vmatpush1.msra.mxu0 %v634
    %1483 = vmatprep.subr.mxu0 %v632
    %1484 = vmatpush1.msra.mxu0 %v631
    %1485 = vmatprep.subr.mxu0 %v629
    %1486 = vmatpush1.msra.mxu0 %v628
    %1487 = vmatprep.subr.mxu0 %v626
    %1488 = vmatpush1.msra.mxu0 %v625
    %1489 = vmatprep.subr.mxu0 %v623
    %1490 = vmatpush1.msra.mxu0 %v622
    %1491 = vmatprep.subr.mxu0 %v620
    %1492 = vmatpush1.msra.mxu0 %v619
    %1493 = vmatprep.subr.mxu0 %v617
    %1494 = vmatpush1.msra.mxu0 %v616
    %1495 = vmatprep.subr.mxu0 %v614
    %1496 = vmatpush1.msra.mxu0 %v613
    %1497 = vmatprep.subr.mxu0 %v611
    %1498 = vmatpush1.msra.mxu0 %v610
    %1499 = vmatprep.subr.mxu0 %v608
    %1500 = vmatpush1.msra.mxu0 %v607
    %1501 = vmatprep.subr.mxu0 %v605
    %1502 = vmatpush1.msra.mxu0 %v604
    %1503 = vmatprep.subr.mxu0 %v602
    %1504 = vmatpush1.msra.mxu0 %v601
    %1505 = vmatprep.subr.mxu0 0.0
    %1506 = vmatpush2.msra.mxu0 0.0
    %1507 = vmatprep.subr.mxu0 0.0
    %1508 = vmatpush2.msra.mxu0 0.0
    %1509 = vmatprep.subr.mxu0 0.0
    %1510 = vmatpush2.msra.mxu0 0.0
    %1511 = vmatprep.subr.mxu0 0.0
    %1512 = vmatpush2.msra.mxu0 0.0
    %1513 = vmatprep.subr.mxu0 0.0
    %1514 = vmatpush2.msra.mxu0 0.0
    %1515 = vmatprep.subr.mxu0 0.0
    %1516 = vmatpush2.msra.mxu0 0.0
    %1517 = vmatprep.subr.mxu0 0.0
    %1518 = vmatpush2.msra.mxu0 0.0
    %1519 = vmatprep.subr.mxu0 0.0
    %1520 = vmatpush2.msra.mxu0 0.0
    %1521 = vmatprep.subr.mxu0 0.0
    %1522 = vmatpush2.msra.mxu0 0.0
    %1523 = vmatprep.subr.mxu0 0.0
    %1524 = vmatpush2.msra.mxu0 0.0
    %1525 = vmatprep.subr.mxu0 0.0
    %1526 = vmatpush2.msra.mxu0 0.0
    %1527 = vmatprep.subr.mxu0 0.0
    %1528 = vmatpush2.msra.mxu0 0.0
    %1529 = vmatprep.subr.mxu0 0.0
    %1530 = vmatpush2.msra.mxu0 0.0
    %1531 = vmatprep.subr.mxu0 0.0
    %1532 = vmatpush2.msra.mxu0 0.0
    %1533 = vmatprep.subr.mxu0 0.0
    %1534 = vmatpush2.msra.mxu0 0.0
    %1535 = vmatprep.subr.mxu0 0.0
    %1536 = vmatpush2.msra.mxu0 0.0
    %1537 = vmatprep.mubr.f32.mxu0 0.0
    %1538 = vmatmul.mubr.f32.gmra.mxu0 %v1471
    %v1539 = vpop.f32.mrf.mxu0
    %v1540 = vadd.f32 0.0, %v1539
    %v1541 = vpop.f32.mrf.mxu0
    %v1542 = vadd.f32 0.0, %v1541
    %1543 = vdwg.mxu0
    %1544 = vmatprep.subr.mxu0 0.0
    %1545 = vmatpush1.msra.mxu0 %v648
    %1546 = vmatprep.subr.mxu0 0.0
    %1547 = vmatpush1.msra.mxu0 %v645
    %1548 = vmatprep.subr.mxu0 0.0
    %1549 = vmatpush1.msra.mxu0 %v642
    %1550 = vmatprep.subr.mxu0 0.0
    %1551 = vmatpush1.msra.mxu0 %v639
    %1552 = vmatprep.subr.mxu0 0.0
    %1553 = vmatpush1.msra.mxu0 %v636
    %1554 = vmatprep.subr.mxu0 0.0
    %1555 = vmatpush1.msra.mxu0 %v633
    %1556 = vmatprep.subr.mxu0 0.0
    %1557 = vmatpush1.msra.mxu0 %v630
    %1558 = vmatprep.subr.mxu0 0.0
    %1559 = vmatpush1.msra.mxu0 %v627
    %1560 = vmatprep.subr.mxu0 0.0
    %1561 = vmatpush1.msra.mxu0 %v624
    %1562 = vmatprep.subr.mxu0 0.0
    %1563 = vmatpush1.msra.mxu0 %v621
    %1564 = vmatprep.subr.mxu0 0.0
    %1565 = vmatpush1.msra.mxu0 %v618
    %1566 = vmatprep.subr.mxu0 0.0
    %1567 = vmatpush1.msra.mxu0 %v615
    %1568 = vmatprep.subr.mxu0 0.0
    %1569 = vmatpush1.msra.mxu0 %v612
    %1570 = vmatprep.subr.mxu0 0.0
    %1571 = vmatpush1.msra.mxu0 %v609
    %1572 = vmatprep.subr.mxu0 0.0
    %1573 = vmatpush1.msra.mxu0 %v606
    %1574 = vmatprep.subr.mxu0 0.0
    %1575 = vmatpush1.msra.mxu0 %v603
    %1576 = vmatprep.subr.mxu0 0.0
    %1577 = vmatpush2.msra.mxu0 0.0
    %1578 = vmatprep.subr.mxu0 0.0
    %1579 = vmatpush2.msra.mxu0 0.0
    %1580 = vmatprep.subr.mxu0 0.0
    %1581 = vmatpush2.msra.mxu0 0.0
    %1582 = vmatprep.subr.mxu0 0.0
    %1583 = vmatpush2.msra.mxu0 0.0
    %1584 = vmatprep.subr.mxu0 0.0
    %1585 = vmatpush2.msra.mxu0 0.0
    %1586 = vmatprep.subr.mxu0 0.0
    %1587 = vmatpush2.msra.mxu0 0.0
    %1588 = vmatprep.subr.mxu0 0.0
    %1589 = vmatpush2.msra.mxu0 0.0
    %1590 = vmatprep.subr.mxu0 0.0
    %1591 = vmatpush2.msra.mxu0 0.0
    %1592 = vmatprep.subr.mxu0 0.0
    %1593 = vmatpush2.msra.mxu0 0.0
    %1594 = vmatprep.subr.mxu0 0.0
    %1595 = vmatpush2.msra.mxu0 0.0
    %1596 = vmatprep.subr.mxu0 0.0
    %1597 = vmatpush2.msra.mxu0 0.0
    %1598 = vmatprep.subr.mxu0 0.0
    %1599 = vmatpush2.msra.mxu0 0.0
    %1600 = vmatprep.subr.mxu0 0.0
    %1601 = vmatpush2.msra.mxu0 0.0
    %1602 = vmatprep.subr.mxu0 0.0
    %1603 = vmatpush2.msra.mxu0 0.0
    %1604 = vmatprep.subr.mxu0 0.0
    %1605 = vmatpush2.msra.mxu0 0.0
    %1606 = vmatprep.subr.mxu0 0.0
    %1607 = vmatpush2.msra.mxu0 0.0
    %1608 = vmatprep.mubr.f32.mxu0 0.0
    %1609 = vmatmul.mubr.f32.gmra.mxu0 %v1471
    %v1610 = vpop.f32.mrf.mxu0
    %v1611 = vadd.f32 0.0, %v1610
    %v1612 = vpop.f32.mrf.mxu0
    %1613 = vdwg.mxu0
    %v1615 = vrot.slane %v1540, 6
    %v1616 = vrot.slane %v1540, 7
    %v1617 = vrot.slane %v1540, 1
    %v1618 = vrot.slane %v1540, 2
    %v1619 = vrot.slane %v1540, 3
    %v1620 = vrot.slane %v1540, 4
    %v1621 = vrot.slane %v1540, 5
    %v1630 = vadd.f32 %v450, %v1615
    %v1631 = vadd.f32 %v456, %v1616
    %v1632 = vadd.f32 %v462, %v1540
    %v1633 = vadd.f32 %v468, %v1617
    %v1634 = vadd.f32 %v474, %v1618
    %v1635 = vadd.f32 %v480, %v1619
    %v1636 = vadd.f32 %v486, %v1620
    %v1637 = vadd.f32 %v492, %v1621
    %v1638 = vxor.u32 %v1630, 2147483648
    %v1639 = vxor.u32 %v1631, 2147483648
    %v1640 = vxor.u32 %v1632, 2147483648
    %v1641 = vxor.u32 %v1633, 2147483648
    %v1642 = vxor.u32 %v1634, 2147483648
    %v1643 = vxor.u32 %v1635, 2147483648
    %v1644 = vxor.u32 %v1636, 2147483648
    %v1645 = vxor.u32 %v1637, 2147483648
    %v1646 = vmul.f32 %v1638, 1.442695
    %v1647 = vpow.pop %v1646
    %v1648 = vmul.f32 %v1639, 1.442695
    %v1649 = vpow.pop %v1648
    %v1650 = vmul.f32 %v1640, 1.442695
    %v1651 = vpow.pop %v1650
    %v1652 = vmul.f32 %v1641, 1.442695
    %v1653 = vpow.pop %v1652
    %v1654 = vmul.f32 %v1642, 1.442695
    %v1655 = vpow.pop %v1654
    %v1656 = vmul.f32 %v1643, 1.442695
    %v1657 = vpow.pop %v1656
    %v1658 = vmul.f32 %v1644, 1.442695
    %v1659 = vpow.pop %v1658
    %v1660 = vmul.f32 %v1645, 1.442695
    %v1661 = vpow.pop %v1660
    %v1662 = vadd.f32 %v1647, 1.0
    %v1663 = vadd.f32 %v1649, 1.0
    %v1664 = vadd.f32 %v1651, 1.0
    %v1665 = vadd.f32 %v1653, 1.0
    %v1666 = vadd.f32 %v1655, 1.0
    %v1667 = vadd.f32 %v1657, 1.0
    %v1668 = vadd.f32 %v1659, 1.0
    %v1669 = vadd.f32 %v1661, 1.0
    %v1670 = vrcp.pop %v1662
    %v1671 = vmul.f32 1.0, %v1670
    %v1672 = vrcp.pop %v1663
    %v1673 = vmul.f32 1.0, %v1672
    %v1674 = vrcp.pop %v1664
    %v1675 = vmul.f32 1.0, %v1674
    %v1676 = vrcp.pop %v1665
    %v1677 = vmul.f32 1.0, %v1676
    %v1678 = vrcp.pop %v1666
    %v1679 = vmul.f32 1.0, %v1678
    %v1680 = vrcp.pop %v1667
    %v1681 = vmul.f32 1.0, %v1680
    %v1682 = vrcp.pop %v1668
    %v1683 = vmul.f32 1.0, %v1682
    %v1684 = vrcp.pop %v1669
    %v1685 = vmul.f32 1.0, %v1684
    %v1687 = vrot.slane %v1542, 6
    %v1688 = vrot.slane %v1542, 7
    %v1689 = vrot.slane %v1542, 1
    %v1690 = vrot.slane %v1542, 2
    %v1691 = vrot.slane %v1542, 3
    %v1692 = vrot.slane %v1542, 4
    %v1693 = vrot.slane %v1542, 5
    %v1702 = vadd.f32 %v452, %v1687
    %v1703 = vadd.f32 %v458, %v1688
    %v1704 = vadd.f32 %v464, %v1542
    %v1705 = vadd.f32 %v470, %v1689
    %v1706 = vadd.f32 %v476, %v1690
    %v1707 = vadd.f32 %v482, %v1691
    %v1708 = vadd.f32 %v488, %v1692
    %v1709 = vadd.f32 %v494, %v1693
    %v1710 = vxor.u32 %v1702, 2147483648
    %v1711 = vxor.u32 %v1703, 2147483648
    %v1712 = vxor.u32 %v1704, 2147483648
    %v1713 = vxor.u32 %v1705, 2147483648
    %v1714 = vxor.u32 %v1706, 2147483648
    %v1715 = vxor.u32 %v1707, 2147483648
    %v1716 = vxor.u32 %v1708, 2147483648
    %v1717 = vxor.u32 %v1709, 2147483648
    %v1718 = vmul.f32 %v1710, 1.442695
    %v1719 = vpow.pop %v1718
    %v1720 = vmul.f32 %v1711, 1.442695
    %v1721 = vpow.pop %v1720
    %v1722 = vmul.f32 %v1712, 1.442695
    %v1723 = vpow.pop %v1722
    %v1724 = vmul.f32 %v1713, 1.442695
    %v1725 = vpow.pop %v1724
    %v1726 = vmul.f32 %v1714, 1.442695
    %v1727 = vpow.pop %v1726
    %v1728 = vmul.f32 %v1715, 1.442695
    %v1729 = vpow.pop %v1728
    %v1730 = vmul.f32 %v1716, 1.442695
    %v1731 = vpow.pop %v1730
    %v1732 = vmul.f32 %v1717, 1.442695
    %v1733 = vpow.pop %v1732
    %v1734 = vadd.f32 %v1719, 1.0
    %v1735 = vadd.f32 %v1721, 1.0
    %v1736 = vadd.f32 %v1723, 1.0
    %v1737 = vadd.f32 %v1725, 1.0
    %v1738 = vadd.f32 %v1727, 1.0
    %v1739 = vadd.f32 %v1729, 1.0
    %v1740 = vadd.f32 %v1731, 1.0
    %v1741 = vadd.f32 %v1733, 1.0
    %v1742 = vrcp.pop %v1734
    %v1743 = vmul.f32 1.0, %v1742
    %v1744 = vrcp.pop %v1735
    %v1745 = vmul.f32 1.0, %v1744
    %v1746 = vrcp.pop %v1736
    %v1747 = vmul.f32 1.0, %v1746
    %v1748 = vrcp.pop %v1737
    %v1749 = vmul.f32 1.0, %v1748
    %v1750 = vrcp.pop %v1738
    %v1751 = vmul.f32 1.0, %v1750
    %v1752 = vrcp.pop %v1739
    %v1753 = vmul.f32 1.0, %v1752
    %v1754 = vrcp.pop %v1740
    %v1755 = vmul.f32 1.0, %v1754
    %v1756 = vrcp.pop %v1741
    %v1757 = vmul.f32 1.0, %v1756
    %v1758 = vadd.f32 %v1611, %v940
    %v1760 = vrot.slane %v1758, 6
    %v1761 = vrot.slane %v1758, 7
    %v1762 = vrot.slane %v1758, 1
    %v1763 = vrot.slane %v1758, 2
    %v1764 = vrot.slane %v1758, 3
    %v1765 = vrot.slane %v1758, 4
    %v1766 = vrot.slane %v1758, 5
    %v1775 = vmul.f32 %v1671, %v1760
    %v1776 = vmul.f32 %v1673, %v1761
    %v1777 = vmul.f32 %v1675, %v1758
    %v1778 = vmul.f32 %v1677, %v1762
    %v1779 = vmul.f32 %v1679, %v1763
    %v1780 = vmul.f32 %v1681, %v1764
    %v1781 = vmul.f32 %v1683, %v1765
    %v1782 = vmul.f32 %v1685, %v1766
    %v1783 = vadd.f32 %v563, %v1775
    %v1784 = vadd.f32 %v568, %v1776
    %v1785 = vadd.f32 %v573, %v1777
    %v1786 = vadd.f32 %v578, %v1778
    %v1787 = vadd.f32 %v583, %v1779
    %v1788 = vadd.f32 %v588, %v1780
    %v1789 = vadd.f32 %v593, %v1781
    %v1790 = vadd.f32 %v598, %v1782
    %v1791 = vtanh.pop %v1783
    %v1792 = vtanh.pop %v1784
    %v1793 = vtanh.pop %v1785
    %v1794 = vtanh.pop %v1786
    %v1795 = vtanh.pop %v1787
    %v1796 = vtanh.pop %v1788
    %v1797 = vtanh.pop %v1789
    %v1798 = vtanh.pop %v1790
    %v1799 = vsub.f32 1.0, %v1743
    %v1800 = vsub.f32 1.0, %v1745
    %v1801 = vsub.f32 1.0, %v1747
    %v1802 = vsub.f32 1.0, %v1749
    %v1803 = vsub.f32 1.0, %v1751
    %v1804 = vsub.f32 1.0, %v1753
    %v1805 = vsub.f32 1.0, %v1755
    %v1806 = vsub.f32 1.0, %v1757
    %v1807 = vmul.f32 %v1799, %v1791
    %v1808 = vmul.f32 %v1800, %v1792
    %v1809 = vmul.f32 %v1801, %v1793
    %v1810 = vmul.f32 %v1802, %v1794
    %v1811 = vmul.f32 %v1803, %v1795
    %v1812 = vmul.f32 %v1804, %v1796
    %v1813 = vmul.f32 %v1805, %v1797
    %v1814 = vmul.f32 %v1806, %v1798
    %v1815 = vrot.slane %v1434, 7
    %v1816 = vrot.slane %v1435, 7
    %v1817 = vrot.slane %v1437, 7
    %v1818 = vrot.slane %v1438, 7
    %v1819 = vrot.slane %v1439, 7
    %v1820 = vrot.slane %v1440, 7
    %v1821 = vrot.slane %v1441, 7
    %v1830 = vmul.f32 %v1743, %v1815
    %v1831 = vmul.f32 %v1745, %v1816
    %v1832 = vmul.f32 %v1747, %v1460
    %v1833 = vmul.f32 %v1749, %v1817
    %v1834 = vmul.f32 %v1751, %v1818
    %v1835 = vmul.f32 %v1753, %v1819
    %v1836 = vmul.f32 %v1755, %v1820
    %v1837 = vmul.f32 %v1757, %v1821
    %v1838 = vadd.f32 %v1807, %v1830
    %v1839 = vadd.f32 %v1808, %v1831
    %v1840 = vadd.f32 %v1809, %v1832
    %v1841 = vadd.f32 %v1810, %v1833
    %v1842 = vadd.f32 %v1811, %v1834
    %v1843 = vadd.f32 %v1812, %v1835
    %v1844 = vadd.f32 %v1813, %v1836
    %v1845 = vadd.f32 %v1814, %v1837
    %1846 = vst [vmem:[#allocation2] sm:$0x4] %v1838
    %1847 = vst [vmem:[#allocation2 + $0x8] sm:$0x4] %v1839
    %1848 = vst [vmem:[#allocation2 + $0x10] sm:$0x4] %v1840
    %1849 = vst [vmem:[#allocation2 + $0x18] sm:$0x4] %v1841
    %1850 = vst [vmem:[#allocation2 + $0x20] sm:$0x4] %v1842
    %1851 = vst [vmem:[#allocation2 + $0x28] sm:$0x4] %v1843
    %1852 = vst [vmem:[#allocation2 + $0x30] sm:$0x4] %v1844
    %1853 = vst [vmem:[#allocation2 + $0x38] sm:$0x4] %v1845
    %v1862 = vrot.slane %v1838, 2
    %v1863 = vrot.slane %v1839, 1
    %v1864 = vsel %vm1048, %v1863, %v1862
    %v1865 = vsel %vm1051, %v1840, %v1864
    %v1866 = vrot.slane %v1841, 7
    %v1867 = vsel %vm1054, %v1866, %v1865
    %v1868 = vrot.slane %v1842, 6
    %v1869 = vsel %vm1057, %v1868, %v1867
    %v1870 = vrot.slane %v1843, 5
    %v1871 = vsel %vm1060, %v1870, %v1869
    %v1872 = vrot.slane %v1844, 4
    %v1873 = vsel %vm1063, %v1872, %v1871
    %v1874 = vrot.slane %v1845, 3
    %v1875 = vsel %vm1066, %v1874, %v1873
    %1877 = vmatprep.subr.mxu0 %v647
    %1878 = vmatpush1.msra.mxu0 %v646
    %1879 = vmatprep.subr.mxu0 %v644
    %1880 = vmatpush1.msra.mxu0 %v643
    %1881 = vmatprep.subr.mxu0 %v641
    %1882 = vmatpush1.msra.mxu0 %v640
    %1883 = vmatprep.subr.mxu0 %v638
    %1884 = vmatpush1.msra.mxu0 %v637
    %1885 = vmatprep.subr.mxu0 %v635
    %1886 = vmatpush1.msra.mxu0 %v634
    %1887 = vmatprep.subr.mxu0 %v632
    %1888 = vmatpush1.msra.mxu0 %v631
    %1889 = vmatprep.subr.mxu0 %v629
    %1890 = vmatpush1.msra.mxu0 %v628
    %1891 = vmatprep.subr.mxu0 %v626
    %1892 = vmatpush1.msra.mxu0 %v625
    %1893 = vmatprep.subr.mxu0 %v623
    %1894 = vmatpush1.msra.mxu0 %v622
    %1895 = vmatprep.subr.mxu0 %v620
    %1896 = vmatpush1.msra.mxu0 %v619
    %1897 = vmatprep.subr.mxu0 %v617
    %1898 = vmatpush1.msra.mxu0 %v616
    %1899 = vmatprep.subr.mxu0 %v614
    %1900 = vmatpush1.msra.mxu0 %v613
    %1901 = vmatprep.subr.mxu0 %v611
    %1902 = vmatpush1.msra.mxu0 %v610
    %1903 = vmatprep.subr.mxu0 %v608
    %1904 = vmatpush1.msra.mxu0 %v607
    %1905 = vmatprep.subr.mxu0 %v605
    %1906 = vmatpush1.msra.mxu0 %v604
    %1907 = vmatprep.subr.mxu0 %v602
    %1908 = vmatpush1.msra.mxu0 %v601
    %1909 = vmatprep.subr.mxu0 0.0
    %1910 = vmatpush2.msra.mxu0 0.0
    %1911 = vmatprep.subr.mxu0 0.0
    %1912 = vmatpush2.msra.mxu0 0.0
    %1913 = vmatprep.subr.mxu0 0.0
    %1914 = vmatpush2.msra.mxu0 0.0
    %1915 = vmatprep.subr.mxu0 0.0
    %1916 = vmatpush2.msra.mxu0 0.0
    %1917 = vmatprep.subr.mxu0 0.0
    %1918 = vmatpush2.msra.mxu0 0.0
    %1919 = vmatprep.subr.mxu0 0.0
    %1920 = vmatpush2.msra.mxu0 0.0
    %1921 = vmatprep.subr.mxu0 0.0
    %1922 = vmatpush2.msra.mxu0 0.0
    %1923 = vmatprep.subr.mxu0 0.0
    %1924 = vmatpush2.msra.mxu0 0.0
    %1925 = vmatprep.subr.mxu0 0.0
    %1926 = vmatpush2.msra.mxu0 0.0
    %1927 = vmatprep.subr.mxu0 0.0
    %1928 = vmatpush2.msra.mxu0 0.0
    %1929 = vmatprep.subr.mxu0 0.0
    %1930 = vmatpush2.msra.mxu0 0.0
    %1931 = vmatprep.subr.mxu0 0.0
    %1932 = vmatpush2.msra.mxu0 0.0
    %1933 = vmatprep.subr.mxu0 0.0
    %1934 = vmatpush2.msra.mxu0 0.0
    %1935 = vmatprep.subr.mxu0 0.0
    %1936 = vmatpush2.msra.mxu0 0.0
    %1937 = vmatprep.subr.mxu0 0.0
    %1938 = vmatpush2.msra.mxu0 0.0
    %1939 = vmatprep.subr.mxu0 0.0
    %1940 = vmatpush2.msra.mxu0 0.0
    %1941 = vmatprep.mubr.f32.mxu0 0.0
    %1942 = vmatmul.mubr.f32.gmra.mxu0 %v1875
    %v1943 = vpop.f32.mrf.mxu0
    %v1944 = vadd.f32 0.0, %v1943
    %v1945 = vpop.f32.mrf.mxu0
    %v1946 = vadd.f32 0.0, %v1945
    %1947 = vdwg.mxu0
    %1948 = vmatprep.subr.mxu0 0.0
    %1949 = vmatpush1.msra.mxu0 %v648
    %1950 = vmatprep.subr.mxu0 0.0
    %1951 = vmatpush1.msra.mxu0 %v645
    %1952 = vmatprep.subr.mxu0 0.0
    %1953 = vmatpush1.msra.mxu0 %v642
    %1954 = vmatprep.subr.mxu0 0.0
    %1955 = vmatpush1.msra.mxu0 %v639
    %1956 = vmatprep.subr.mxu0 0.0
    %1957 = vmatpush1.msra.mxu0 %v636
    %1958 = vmatprep.subr.mxu0 0.0
    %1959 = vmatpush1.msra.mxu0 %v633
    %1960 = vmatprep.subr.mxu0 0.0
    %1961 = vmatpush1.msra.mxu0 %v630
    %1962 = vmatprep.subr.mxu0 0.0
    %1963 = vmatpush1.msra.mxu0 %v627
    %1964 = vmatprep.subr.mxu0 0.0
    %1965 = vmatpush1.msra.mxu0 %v624
    %1966 = vmatprep.subr.mxu0 0.0
    %1967 = vmatpush1.msra.mxu0 %v621
    %1968 = vmatprep.subr.mxu0 0.0
    %1969 = vmatpush1.msra.mxu0 %v618
    %1970 = vmatprep.subr.mxu0 0.0
    %1971 = vmatpush1.msra.mxu0 %v615
    %1972 = vmatprep.subr.mxu0 0.0
    %1973 = vmatpush1.msra.mxu0 %v612
    %1974 = vmatprep.subr.mxu0 0.0
    %1975 = vmatpush1.msra.mxu0 %v609
    %1976 = vmatprep.subr.mxu0 0.0
    %1977 = vmatpush1.msra.mxu0 %v606
    %1978 = vmatprep.subr.mxu0 0.0
    %1979 = vmatpush1.msra.mxu0 %v603
    %1980 = vmatprep.subr.mxu0 0.0
    %1981 = vmatpush2.msra.mxu0 0.0
    %1982 = vmatprep.subr.mxu0 0.0
    %1983 = vmatpush2.msra.mxu0 0.0
    %1984 = vmatprep.subr.mxu0 0.0
    %1985 = vmatpush2.msra.mxu0 0.0
    %1986 = vmatprep.subr.mxu0 0.0
    %1987 = vmatpush2.msra.mxu0 0.0
    %1988 = vmatprep.subr.mxu0 0.0
    %1989 = vmatpush2.msra.mxu0 0.0
    %1990 = vmatprep.subr.mxu0 0.0
    %1991 = vmatpush2.msra.mxu0 0.0
    %1992 = vmatprep.subr.mxu0 0.0
    %1993 = vmatpush2.msra.mxu0 0.0
    %1994 = vmatprep.subr.mxu0 0.0
    %1995 = vmatpush2.msra.mxu0 0.0
    %1996 = vmatprep.subr.mxu0 0.0
    %1997 = vmatpush2.msra.mxu0 0.0
    %1998 = vmatprep.subr.mxu0 0.0
    %1999 = vmatpush2.msra.mxu0 0.0
    %2000 = vmatprep.subr.mxu0 0.0
    %2001 = vmatpush2.msra.mxu0 0.0
    %2002 = vmatprep.subr.mxu0 0.0
    %2003 = vmatpush2.msra.mxu0 0.0
    %2004 = vmatprep.subr.mxu0 0.0
    %2005 = vmatpush2.msra.mxu0 0.0
    %2006 = vmatprep.subr.mxu0 0.0
    %2007 = vmatpush2.msra.mxu0 0.0
    %2008 = vmatprep.subr.mxu0 0.0
    %2009 = vmatpush2.msra.mxu0 0.0
    %2010 = vmatprep.subr.mxu0 0.0
    %2011 = vmatpush2.msra.mxu0 0.0
    %2012 = vmatprep.mubr.f32.mxu0 0.0
    %2013 = vmatmul.mubr.f32.gmra.mxu0 %v1875
    %v2014 = vpop.f32.mrf.mxu0
    %v2015 = vadd.f32 0.0, %v2014
    %v2016 = vpop.f32.mrf.mxu0
    %2017 = vdwg.mxu0
    %v2019 = vrot.slane %v1944, 5
    %v2020 = vrot.slane %v1944, 6
    %v2021 = vrot.slane %v1944, 7
    %v2022 = vrot.slane %v1944, 1
    %v2023 = vrot.slane %v1944, 2
    %v2024 = vrot.slane %v1944, 3
    %v2025 = vrot.slane %v1944, 4
    %v2034 = vadd.f32 %v450, %v2019
    %v2035 = vadd.f32 %v456, %v2020
    %v2036 = vadd.f32 %v462, %v2021
    %v2037 = vadd.f32 %v468, %v1944
    %v2038 = vadd.f32 %v474, %v2022
    %v2039 = vadd.f32 %v480, %v2023
    %v2040 = vadd.f32 %v486, %v2024
    %v2041 = vadd.f32 %v492, %v2025
    %v2042 = vxor.u32 %v2034, 2147483648
    %v2043 = vxor.u32 %v2035, 2147483648
    %v2044 = vxor.u32 %v2036, 2147483648
    %v2045 = vxor.u32 %v2037, 2147483648
    %v2046 = vxor.u32 %v2038, 2147483648
    %v2047 = vxor.u32 %v2039, 2147483648
    %v2048 = vxor.u32 %v2040, 2147483648
    %v2049 = vxor.u32 %v2041, 2147483648
    %v2050 = vmul.f32 %v2042, 1.442695
    %v2051 = vpow.pop %v2050
    %v2052 = vmul.f32 %v2043, 1.442695
    %v2053 = vpow.pop %v2052
    %v2054 = vmul.f32 %v2044, 1.442695
    %v2055 = vpow.pop %v2054
    %v2056 = vmul.f32 %v2045, 1.442695
    %v2057 = vpow.pop %v2056
    %v2058 = vmul.f32 %v2046, 1.442695
    %v2059 = vpow.pop %v2058
    %v2060 = vmul.f32 %v2047, 1.442695
    %v2061 = vpow.pop %v2060
    %v2062 = vmul.f32 %v2048, 1.442695
    %v2063 = vpow.pop %v2062
    %v2064 = vmul.f32 %v2049, 1.442695
    %v2065 = vpow.pop %v2064
    %v2066 = vadd.f32 %v2051, 1.0
    %v2067 = vadd.f32 %v2053, 1.0
    %v2068 = vadd.f32 %v2055, 1.0
    %v2069 = vadd.f32 %v2057, 1.0
    %v2070 = vadd.f32 %v2059, 1.0
    %v2071 = vadd.f32 %v2061, 1.0
    %v2072 = vadd.f32 %v2063, 1.0
    %v2073 = vadd.f32 %v2065, 1.0
    %v2074 = vrcp.pop %v2066
    %v2075 = vmul.f32 1.0, %v2074
    %v2076 = vrcp.pop %v2067
    %v2077 = vmul.f32 1.0, %v2076
    %v2078 = vrcp.pop %v2068
    %v2079 = vmul.f32 1.0, %v2078
    %v2080 = vrcp.pop %v2069
    %v2081 = vmul.f32 1.0, %v2080
    %v2082 = vrcp.pop %v2070
    %v2083 = vmul.f32 1.0, %v2082
    %v2084 = vrcp.pop %v2071
    %v2085 = vmul.f32 1.0, %v2084
    %v2086 = vrcp.pop %v2072
    %v2087 = vmul.f32 1.0, %v2086
    %v2088 = vrcp.pop %v2073
    %v2089 = vmul.f32 1.0, %v2088
    %v2091 = vrot.slane %v1946, 5
    %v2092 = vrot.slane %v1946, 6
    %v2093 = vrot.slane %v1946, 7
    %v2094 = vrot.slane %v1946, 1
    %v2095 = vrot.slane %v1946, 2
    %v2096 = vrot.slane %v1946, 3
    %v2097 = vrot.slane %v1946, 4
    %v2106 = vadd.f32 %v452, %v2091
    %v2107 = vadd.f32 %v458, %v2092
    %v2108 = vadd.f32 %v464, %v2093
    %v2109 = vadd.f32 %v470, %v1946
    %v2110 = vadd.f32 %v476, %v2094
    %v2111 = vadd.f32 %v482, %v2095
    %v2112 = vadd.f32 %v488, %v2096
    %v2113 = vadd.f32 %v494, %v2097
    %v2114 = vxor.u32 %v2106, 2147483648
    %v2115 = vxor.u32 %v2107, 2147483648
    %v2116 = vxor.u32 %v2108, 2147483648
    %v2117 = vxor.u32 %v2109, 2147483648
    %v2118 = vxor.u32 %v2110, 2147483648
    %v2119 = vxor.u32 %v2111, 2147483648
    %v2120 = vxor.u32 %v2112, 2147483648
    %v2121 = vxor.u32 %v2113, 2147483648
    %v2122 = vmul.f32 %v2114, 1.442695
    %v2123 = vpow.pop %v2122
    %v2124 = vmul.f32 %v2115, 1.442695
    %v2125 = vpow.pop %v2124
    %v2126 = vmul.f32 %v2116, 1.442695
    %v2127 = vpow.pop %v2126
    %v2128 = vmul.f32 %v2117, 1.442695
    %v2129 = vpow.pop %v2128
    %v2130 = vmul.f32 %v2118, 1.442695
    %v2131 = vpow.pop %v2130
    %v2132 = vmul.f32 %v2119, 1.442695
    %v2133 = vpow.pop %v2132
    %v2134 = vmul.f32 %v2120, 1.442695
    %v2135 = vpow.pop %v2134
    %v2136 = vmul.f32 %v2121, 1.442695
    %v2137 = vpow.pop %v2136
    %v2138 = vadd.f32 %v2123, 1.0
    %v2139 = vadd.f32 %v2125, 1.0
    %v2140 = vadd.f32 %v2127, 1.0
    %v2141 = vadd.f32 %v2129, 1.0
    %v2142 = vadd.f32 %v2131, 1.0
    %v2143 = vadd.f32 %v2133, 1.0
    %v2144 = vadd.f32 %v2135, 1.0
    %v2145 = vadd.f32 %v2137, 1.0
    %v2146 = vrcp.pop %v2138
    %v2147 = vmul.f32 1.0, %v2146
    %v2148 = vrcp.pop %v2139
    %v2149 = vmul.f32 1.0, %v2148
    %v2150 = vrcp.pop %v2140
    %v2151 = vmul.f32 1.0, %v2150
    %v2152 = vrcp.pop %v2141
    %v2153 = vmul.f32 1.0, %v2152
    %v2154 = vrcp.pop %v2142
    %v2155 = vmul.f32 1.0, %v2154
    %v2156 = vrcp.pop %v2143
    %v2157 = vmul.f32 1.0, %v2156
    %v2158 = vrcp.pop %v2144
    %v2159 = vmul.f32 1.0, %v2158
    %v2160 = vrcp.pop %v2145
    %v2161 = vmul.f32 1.0, %v2160
    %v2162 = vadd.f32 %v2015, %v940
    %v2164 = vrot.slane %v2162, 5
    %v2165 = vrot.slane %v2162, 6
    %v2166 = vrot.slane %v2162, 7
    %v2167 = vrot.slane %v2162, 1
    %v2168 = vrot.slane %v2162, 2
    %v2169 = vrot.slane %v2162, 3
    %v2170 = vrot.slane %v2162, 4
    %v2179 = vmul.f32 %v2075, %v2164
    %v2180 = vmul.f32 %v2077, %v2165
    %v2181 = vmul.f32 %v2079, %v2166
    %v2182 = vmul.f32 %v2081, %v2162
    %v2183 = vmul.f32 %v2083, %v2167
    %v2184 = vmul.f32 %v2085, %v2168
    %v2185 = vmul.f32 %v2087, %v2169
    %v2186 = vmul.f32 %v2089, %v2170
    %v2187 = vadd.f32 %v563, %v2179
    %v2188 = vadd.f32 %v568, %v2180
    %v2189 = vadd.f32 %v573, %v2181
    %v2190 = vadd.f32 %v578, %v2182
    %v2191 = vadd.f32 %v583, %v2183
    %v2192 = vadd.f32 %v588, %v2184
    %v2193 = vadd.f32 %v593, %v2185
    %v2194 = vadd.f32 %v598, %v2186
    %v2195 = vtanh.pop %v2187
    %v2196 = vtanh.pop %v2188
    %v2197 = vtanh.pop %v2189
    %v2198 = vtanh.pop %v2190
    %v2199 = vtanh.pop %v2191
    %v2200 = vtanh.pop %v2192
    %v2201 = vtanh.pop %v2193
    %v2202 = vtanh.pop %v2194
    %v2203 = vsub.f32 1.0, %v2147
    %v2204 = vsub.f32 1.0, %v2149
    %v2205 = vsub.f32 1.0, %v2151
    %v2206 = vsub.f32 1.0, %v2153
    %v2207 = vsub.f32 1.0, %v2155
    %v2208 = vsub.f32 1.0, %v2157
    %v2209 = vsub.f32 1.0, %v2159
    %v2210 = vsub.f32 1.0, %v2161
    %v2211 = vmul.f32 %v2203, %v2195
    %v2212 = vmul.f32 %v2204, %v2196
    %v2213 = vmul.f32 %v2205, %v2197
    %v2214 = vmul.f32 %v2206, %v2198
    %v2215 = vmul.f32 %v2207, %v2199
    %v2216 = vmul.f32 %v2208, %v2200
    %v2217 = vmul.f32 %v2209, %v2201
    %v2218 = vmul.f32 %v2210, %v2202
    %v2219 = vrot.slane %v1838, 7
    %v2220 = vrot.slane %v1839, 7
    %v2221 = vrot.slane %v1840, 7
    %v2222 = vrot.slane %v1842, 7
    %v2223 = vrot.slane %v1843, 7
    %v2224 = vrot.slane %v1844, 7
    %v2225 = vrot.slane %v1845, 7
    %v2234 = vmul.f32 %v2147, %v2219
    %v2235 = vmul.f32 %v2149, %v2220
    %v2236 = vmul.f32 %v2151, %v2221
    %v2237 = vmul.f32 %v2153, %v1866
    %v2238 = vmul.f32 %v2155, %v2222
    %v2239 = vmul.f32 %v2157, %v2223
    %v2240 = vmul.f32 %v2159, %v2224
    %v2241 = vmul.f32 %v2161, %v2225
    %v2242 = vadd.f32 %v2211, %v2234
    %v2243 = vadd.f32 %v2212, %v2235
    %v2244 = vadd.f32 %v2213, %v2236
    %v2245 = vadd.f32 %v2214, %v2237
    %v2246 = vadd.f32 %v2215, %v2238
    %v2247 = vadd.f32 %v2216, %v2239
    %v2248 = vadd.f32 %v2217, %v2240
    %v2249 = vadd.f32 %v2218, %v2241
    %2250 = vst [vmem:[#allocation2] sm:$0x8] %v2242
    %2251 = vst [vmem:[#allocation2 + $0x8] sm:$0x8] %v2243
    %2252 = vst [vmem:[#allocation2 + $0x10] sm:$0x8] %v2244
    %2253 = vst [vmem:[#allocation2 + $0x18] sm:$0x8] %v2245
    %2254 = vst [vmem:[#allocation2 + $0x20] sm:$0x8] %v2246
    %2255 = vst [vmem:[#allocation2 + $0x28] sm:$0x8] %v2247
    %2256 = vst [vmem:[#allocation2 + $0x30] sm:$0x8] %v2248
    %2257 = vst [vmem:[#allocation2 + $0x38] sm:$0x8] %v2249
    %v2266 = vrot.slane %v2242, 3
    %v2267 = vrot.slane %v2243, 2
    %v2268 = vsel %vm1048, %v2267, %v2266
    %v2269 = vrot.slane %v2244, 1
    %v2270 = vsel %vm1051, %v2269, %v2268
    %v2271 = vsel %vm1054, %v2245, %v2270
    %v2272 = vrot.slane %v2246, 7
    %v2273 = vsel %vm1057, %v2272, %v2271
    %v2274 = vrot.slane %v2247, 6
    %v2275 = vsel %vm1060, %v2274, %v2273
    %v2276 = vrot.slane %v2248, 5
    %v2277 = vsel %vm1063, %v2276, %v2275
    %v2278 = vrot.slane %v2249, 4
    %v2279 = vsel %vm1066, %v2278, %v2277
    %2281 = vmatprep.subr.mxu0 %v647
    %2282 = vmatpush1.msra.mxu0 %v646
    %2283 = vmatprep.subr.mxu0 %v644
    %2284 = vmatpush1.msra.mxu0 %v643
    %2285 = vmatprep.subr.mxu0 %v641
    %2286 = vmatpush1.msra.mxu0 %v640
    %2287 = vmatprep.subr.mxu0 %v638
    %2288 = vmatpush1.msra.mxu0 %v637
    %2289 = vmatprep.subr.mxu0 %v635
    %2290 = vmatpush1.msra.mxu0 %v634
    %2291 = vmatprep.subr.mxu0 %v632
    %2292 = vmatpush1.msra.mxu0 %v631
    %2293 = vmatprep.subr.mxu0 %v629
    %2294 = vmatpush1.msra.mxu0 %v628
    %2295 = vmatprep.subr.mxu0 %v626
    %2296 = vmatpush1.msra.mxu0 %v625
    %2297 = vmatprep.subr.mxu0 %v623
    %2298 = vmatpush1.msra.mxu0 %v622
    %2299 = vmatprep.subr.mxu0 %v620
    %2300 = vmatpush1.msra.mxu0 %v619
    %2301 = vmatprep.subr.mxu0 %v617
    %2302 = vmatpush1.msra.mxu0 %v616
    %2303 = vmatprep.subr.mxu0 %v614
    %2304 = vmatpush1.msra.mxu0 %v613
    %2305 = vmatprep.subr.mxu0 %v611
    %2306 = vmatpush1.msra.mxu0 %v610
    %2307 = vmatprep.subr.mxu0 %v608
    %2308 = vmatpush1.msra.mxu0 %v607
    %2309 = vmatprep.subr.mxu0 %v605
    %2310 = vmatpush1.msra.mxu0 %v604
    %2311 = vmatprep.subr.mxu0 %v602
    %2312 = vmatpush1.msra.mxu0 %v601
    %2313 = vmatprep.subr.mxu0 0.0
    %2314 = vmatpush2.msra.mxu0 0.0
    %2315 = vmatprep.subr.mxu0 0.0
    %2316 = vmatpush2.msra.mxu0 0.0
    %2317 = vmatprep.subr.mxu0 0.0
    %2318 = vmatpush2.msra.mxu0 0.0
    %2319 = vmatprep.subr.mxu0 0.0
    %2320 = vmatpush2.msra.mxu0 0.0
    %2321 = vmatprep.subr.mxu0 0.0
    %2322 = vmatpush2.msra.mxu0 0.0
    %2323 = vmatprep.subr.mxu0 0.0
    %2324 = vmatpush2.msra.mxu0 0.0
    %2325 = vmatprep.subr.mxu0 0.0
    %2326 = vmatpush2.msra.mxu0 0.0
    %2327 = vmatprep.subr.mxu0 0.0
    %2328 = vmatpush2.msra.mxu0 0.0
    %2329 = vmatprep.subr.mxu0 0.0
    %2330 = vmatpush2.msra.mxu0 0.0
    %2331 = vmatprep.subr.mxu0 0.0
    %2332 = vmatpush2.msra.mxu0 0.0
    %2333 = vmatprep.subr.mxu0 0.0
    %2334 = vmatpush2.msra.mxu0 0.0
    %2335 = vmatprep.subr.mxu0 0.0
    %2336 = vmatpush2.msra.mxu0 0.0
    %2337 = vmatprep.subr.mxu0 0.0
    %2338 = vmatpush2.msra.mxu0 0.0
    %2339 = vmatprep.subr.mxu0 0.0
    %2340 = vmatpush2.msra.mxu0 0.0
    %2341 = vmatprep.subr.mxu0 0.0
    %2342 = vmatpush2.msra.mxu0 0.0
    %2343 = vmatprep.subr.mxu0 0.0
    %2344 = vmatpush2.msra.mxu0 0.0
    %2345 = vmatprep.mubr.f32.mxu0 0.0
    %2346 = vmatmul.mubr.f32.gmra.mxu0 %v2279
    %v2347 = vpop.f32.mrf.mxu0
    %v2348 = vadd.f32 0.0, %v2347
    %v2349 = vpop.f32.mrf.mxu0
    %v2350 = vadd.f32 0.0, %v2349
    %2351 = vdwg.mxu0
    %2352 = vmatprep.subr.mxu0 0.0
    %2353 = vmatpush1.msra.mxu0 %v648
    %2354 = vmatprep.subr.mxu0 0.0
    %2355 = vmatpush1.msra.mxu0 %v645
    %2356 = vmatprep.subr.mxu0 0.0
    %2357 = vmatpush1.msra.mxu0 %v642
    %2358 = vmatprep.subr.mxu0 0.0
    %2359 = vmatpush1.msra.mxu0 %v639
    %2360 = vmatprep.subr.mxu0 0.0
    %2361 = vmatpush1.msra.mxu0 %v636
    %2362 = vmatprep.subr.mxu0 0.0
    %2363 = vmatpush1.msra.mxu0 %v633
    %2364 = vmatprep.subr.mxu0 0.0
    %2365 = vmatpush1.msra.mxu0 %v630
    %2366 = vmatprep.subr.mxu0 0.0
    %2367 = vmatpush1.msra.mxu0 %v627
    %2368 = vmatprep.subr.mxu0 0.0
    %2369 = vmatpush1.msra.mxu0 %v624
    %2370 = vmatprep.subr.mxu0 0.0
    %2371 = vmatpush1.msra.mxu0 %v621
    %2372 = vmatprep.subr.mxu0 0.0
    %2373 = vmatpush1.msra.mxu0 %v618
    %2374 = vmatprep.subr.mxu0 0.0
    %2375 = vmatpush1.msra.mxu0 %v615
    %2376 = vmatprep.subr.mxu0 0.0
    %2377 = vmatpush1.msra.mxu0 %v612
    %2378 = vmatprep.subr.mxu0 0.0
    %2379 = vmatpush1.msra.mxu0 %v609
    %2380 = vmatprep.subr.mxu0 0.0
    %2381 = vmatpush1.msra.mxu0 %v606
    %2382 = vmatprep.subr.mxu0 0.0
    %2383 = vmatpush1.msra.mxu0 %v603
    %2384 = vmatprep.subr.mxu0 0.0
    %2385 = vmatpush2.msra.mxu0 0.0
    %2386 = vmatprep.subr.mxu0 0.0
    %2387 = vmatpush2.msra.mxu0 0.0
    %2388 = vmatprep.subr.mxu0 0.0
    %2389 = vmatpush2.msra.mxu0 0.0
    %2390 = vmatprep.subr.mxu0 0.0
    %2391 = vmatpush2.msra.mxu0 0.0
    %2392 = vmatprep.subr.mxu0 0.0
    %2393 = vmatpush2.msra.mxu0 0.0
    %2394 = vmatprep.subr.mxu0 0.0
    %2395 = vmatpush2.msra.mxu0 0.0
    %2396 = vmatprep.subr.mxu0 0.0
    %2397 = vmatpush2.msra.mxu0 0.0
    %2398 = vmatprep.subr.mxu0 0.0
    %2399 = vmatpush2.msra.mxu0 0.0
    %2400 = vmatprep.subr.mxu0 0.0
    %2401 = vmatpush2.msra.mxu0 0.0
    %2402 = vmatprep.subr.mxu0 0.0
    %2403 = vmatpush2.msra.mxu0 0.0
    %2404 = vmatprep.subr.mxu0 0.0
    %2405 = vmatpush2.msra.mxu0 0.0
    %2406 = vmatprep.subr.mxu0 0.0
    %2407 = vmatpush2.msra.mxu0 0.0
    %2408 = vmatprep.subr.mxu0 0.0
    %2409 = vmatpush2.msra.mxu0 0.0
    %2410 = vmatprep.subr.mxu0 0.0
    %2411 = vmatpush2.msra.mxu0 0.0
    %2412 = vmatprep.subr.mxu0 0.0
    %2413 = vmatpush2.msra.mxu0 0.0
    %2414 = vmatprep.subr.mxu0 0.0
    %2415 = vmatpush2.msra.mxu0 0.0
    %2416 = vmatprep.mubr.f32.mxu0 0.0
    %2417 = vmatmul.mubr.f32.gmra.mxu0 %v2279
    %v2418 = vpop.f32.mrf.mxu0
    %v2419 = vadd.f32 0.0, %v2418
    %v2420 = vpop.f32.mrf.mxu0
    %2421 = vdwg.mxu0
    %v2423 = vrot.slane %v2348, 4
    %v2424 = vrot.slane %v2348, 5
    %v2425 = vrot.slane %v2348, 6
    %v2426 = vrot.slane %v2348, 7
    %v2427 = vrot.slane %v2348, 1
    %v2428 = vrot.slane %v2348, 2
    %v2429 = vrot.slane %v2348, 3
    %v2438 = vadd.f32 %v450, %v2423
    %v2439 = vadd.f32 %v456, %v2424
    %v2440 = vadd.f32 %v462, %v2425
    %v2441 = vadd.f32 %v468, %v2426
    %v2442 = vadd.f32 %v474, %v2348
    %v2443 = vadd.f32 %v480, %v2427
    %v2444 = vadd.f32 %v486, %v2428
    %v2445 = vadd.f32 %v492, %v2429
    %v2446 = vxor.u32 %v2438, 2147483648
    %v2447 = vxor.u32 %v2439, 2147483648
    %v2448 = vxor.u32 %v2440, 2147483648
    %v2449 = vxor.u32 %v2441, 2147483648
    %v2450 = vxor.u32 %v2442, 2147483648
    %v2451 = vxor.u32 %v2443, 2147483648
    %v2452 = vxor.u32 %v2444, 2147483648
    %v2453 = vxor.u32 %v2445, 2147483648
    %v2454 = vmul.f32 %v2446, 1.442695
    %v2455 = vpow.pop %v2454
    %v2456 = vmul.f32 %v2447, 1.442695
    %v2457 = vpow.pop %v2456
    %v2458 = vmul.f32 %v2448, 1.442695
    %v2459 = vpow.pop %v2458
    %v2460 = vmul.f32 %v2449, 1.442695
    %v2461 = vpow.pop %v2460
    %v2462 = vmul.f32 %v2450, 1.442695
    %v2463 = vpow.pop %v2462
    %v2464 = vmul.f32 %v2451, 1.442695
    %v2465 = vpow.pop %v2464
    %v2466 = vmul.f32 %v2452, 1.442695
    %v2467 = vpow.pop %v2466
    %v2468 = vmul.f32 %v2453, 1.442695
    %v2469 = vpow.pop %v2468
    %v2470 = vadd.f32 %v2455, 1.0
    %v2471 = vadd.f32 %v2457, 1.0
    %v2472 = vadd.f32 %v2459, 1.0
    %v2473 = vadd.f32 %v2461, 1.0
    %v2474 = vadd.f32 %v2463, 1.0
    %v2475 = vadd.f32 %v2465, 1.0
    %v2476 = vadd.f32 %v2467, 1.0
    %v2477 = vadd.f32 %v2469, 1.0
    %v2478 = vrcp.pop %v2470
    %v2479 = vmul.f32 1.0, %v2478
    %v2480 = vrcp.pop %v2471
    %v2481 = vmul.f32 1.0, %v2480
    %v2482 = vrcp.pop %v2472
    %v2483 = vmul.f32 1.0, %v2482
    %v2484 = vrcp.pop %v2473
    %v2485 = vmul.f32 1.0, %v2484
    %v2486 = vrcp.pop %v2474
    %v2487 = vmul.f32 1.0, %v2486
    %v2488 = vrcp.pop %v2475
    %v2489 = vmul.f32 1.0, %v2488
    %v2490 = vrcp.pop %v2476
    %v2491 = vmul.f32 1.0, %v2490
    %v2492 = vrcp.pop %v2477
    %v2493 = vmul.f32 1.0, %v2492
    %v2495 = vrot.slane %v2350, 4
    %v2496 = vrot.slane %v2350, 5
    %v2497 = vrot.slane %v2350, 6
    %v2498 = vrot.slane %v2350, 7
    %v2499 = vrot.slane %v2350, 1
    %v2500 = vrot.slane %v2350, 2
    %v2501 = vrot.slane %v2350, 3
    %v2510 = vadd.f32 %v452, %v2495
    %v2511 = vadd.f32 %v458, %v2496
    %v2512 = vadd.f32 %v464, %v2497
    %v2513 = vadd.f32 %v470, %v2498
    %v2514 = vadd.f32 %v476, %v2350
    %v2515 = vadd.f32 %v482, %v2499
    %v2516 = vadd.f32 %v488, %v2500
    %v2517 = vadd.f32 %v494, %v2501
    %v2518 = vxor.u32 %v2510, 2147483648
    %v2519 = vxor.u32 %v2511, 2147483648
    %v2520 = vxor.u32 %v2512, 2147483648
    %v2521 = vxor.u32 %v2513, 2147483648
    %v2522 = vxor.u32 %v2514, 2147483648
    %v2523 = vxor.u32 %v2515, 2147483648
    %v2524 = vxor.u32 %v2516, 2147483648
    %v2525 = vxor.u32 %v2517, 2147483648
    %v2526 = vmul.f32 %v2518, 1.442695
    %v2527 = vpow.pop %v2526
    %v2528 = vmul.f32 %v2519, 1.442695
    %v2529 = vpow.pop %v2528
    %v2530 = vmul.f32 %v2520, 1.442695
    %v2531 = vpow.pop %v2530
    %v2532 = vmul.f32 %v2521, 1.442695
    %v2533 = vpow.pop %v2532
    %v2534 = vmul.f32 %v2522, 1.442695
    %v2535 = vpow.pop %v2534
    %v2536 = vmul.f32 %v2523, 1.442695
    %v2537 = vpow.pop %v2536
    %v2538 = vmul.f32 %v2524, 1.442695
    %v2539 = vpow.pop %v2538
    %v2540 = vmul.f32 %v2525, 1.442695
    %v2541 = vpow.pop %v2540
    %v2542 = vadd.f32 %v2527, 1.0
    %v2543 = vadd.f32 %v2529, 1.0
    %v2544 = vadd.f32 %v2531, 1.0
    %v2545 = vadd.f32 %v2533, 1.0
    %v2546 = vadd.f32 %v2535, 1.0
    %v2547 = vadd.f32 %v2537, 1.0
    %v2548 = vadd.f32 %v2539, 1.0
    %v2549 = vadd.f32 %v2541, 1.0
    %v2550 = vrcp.pop %v2542
    %v2551 = vmul.f32 1.0, %v2550
    %v2552 = vrcp.pop %v2543
    %v2553 = vmul.f32 1.0, %v2552
    %v2554 = vrcp.pop %v2544
    %v2555 = vmul.f32 1.0, %v2554
    %v2556 = vrcp.pop %v2545
    %v2557 = vmul.f32 1.0, %v2556
    %v2558 = vrcp.pop %v2546
    %v2559 = vmul.f32 1.0, %v2558
    %v2560 = vrcp.pop %v2547
    %v2561 = vmul.f32 1.0, %v2560
    %v2562 = vrcp.pop %v2548
    %v2563 = vmul.f32 1.0, %v2562
    %v2564 = vrcp.pop %v2549
    %v2565 = vmul.f32 1.0, %v2564
    %v2566 = vadd.f32 %v2419, %v940
    %v2568 = vrot.slane %v2566, 4
    %v2569 = vrot.slane %v2566, 5
    %v2570 = vrot.slane %v2566, 6
    %v2571 = vrot.slane %v2566, 7
    %v2572 = vrot.slane %v2566, 1
    %v2573 = vrot.slane %v2566, 2
    %v2574 = vrot.slane %v2566, 3
    %v2583 = vmul.f32 %v2479, %v2568
    %v2584 = vmul.f32 %v2481, %v2569
    %v2585 = vmul.f32 %v2483, %v2570
    %v2586 = vmul.f32 %v2485, %v2571
    %v2587 = vmul.f32 %v2487, %v2566
    %v2588 = vmul.f32 %v2489, %v2572
    %v2589 = vmul.f32 %v2491, %v2573
    %v2590 = vmul.f32 %v2493, %v2574
    %v2591 = vadd.f32 %v563, %v2583
    %v2592 = vadd.f32 %v568, %v2584
    %v2593 = vadd.f32 %v573, %v2585
    %v2594 = vadd.f32 %v578, %v2586
    %v2595 = vadd.f32 %v583, %v2587
    %v2596 = vadd.f32 %v588, %v2588
    %v2597 = vadd.f32 %v593, %v2589
    %v2598 = vadd.f32 %v598, %v2590
    %v2599 = vtanh.pop %v2591
    %v2600 = vtanh.pop %v2592
    %v2601 = vtanh.pop %v2593
    %v2602 = vtanh.pop %v2594
    %v2603 = vtanh.pop %v2595
    %v2604 = vtanh.pop %v2596
    %v2605 = vtanh.pop %v2597
    %v2606 = vtanh.pop %v2598
    %v2607 = vsub.f32 1.0, %v2551
    %v2608 = vsub.f32 1.0, %v2553
    %v2609 = vsub.f32 1.0, %v2555
    %v2610 = vsub.f32 1.0, %v2557
    %v2611 = vsub.f32 1.0, %v2559
    %v2612 = vsub.f32 1.0, %v2561
    %v2613 = vsub.f32 1.0, %v2563
    %v2614 = vsub.f32 1.0, %v2565
    %v2615 = vmul.f32 %v2607, %v2599
    %v2616 = vmul.f32 %v2608, %v2600
    %v2617 = vmul.f32 %v2609, %v2601
    %v2618 = vmul.f32 %v2610, %v2602
    %v2619 = vmul.f32 %v2611, %v2603
    %v2620 = vmul.f32 %v2612, %v2604
    %v2621 = vmul.f32 %v2613, %v2605
    %v2622 = vmul.f32 %v2614, %v2606
    %v2623 = vrot.slane %v2242, 7
    %v2624 = vrot.slane %v2243, 7
    %v2625 = vrot.slane %v2244, 7
    %v2626 = vrot.slane %v2245, 7
    %v2627 = vrot.slane %v2247, 7
    %v2628 = vrot.slane %v2248, 7
    %v2629 = vrot.slane %v2249, 7
    %v2638 = vmul.f32 %v2551, %v2623
    %v2639 = vmul.f32 %v2553, %v2624
    %v2640 = vmul.f32 %v2555, %v2625
    %v2641 = vmul.f32 %v2557, %v2626
    %v2642 = vmul.f32 %v2559, %v2272
    %v2643 = vmul.f32 %v2561, %v2627
    %v2644 = vmul.f32 %v2563, %v2628
    %v2645 = vmul.f32 %v2565, %v2629
    %v2646 = vadd.f32 %v2615, %v2638
    %v2647 = vadd.f32 %v2616, %v2639
    %v2648 = vadd.f32 %v2617, %v2640
    %v2649 = vadd.f32 %v2618, %v2641
    %v2650 = vadd.f32 %v2619, %v2642
    %v2651 = vadd.f32 %v2620, %v2643
    %v2652 = vadd.f32 %v2621, %v2644
    %v2653 = vadd.f32 %v2622, %v2645
    %2654 = vst [vmem:[#allocation2] sm:$0x10] %v2646
    %2655 = vst [vmem:[#allocation2 + $0x8] sm:$0x10] %v2647
    %2656 = vst [vmem:[#allocation2 + $0x10] sm:$0x10] %v2648
    %2657 = vst [vmem:[#allocation2 + $0x18] sm:$0x10] %v2649
    %2658 = vst [vmem:[#allocation2 + $0x20] sm:$0x10] %v2650
    %2659 = vst [vmem:[#allocation2 + $0x28] sm:$0x10] %v2651
    %2660 = vst [vmem:[#allocation2 + $0x30] sm:$0x10] %v2652
    %2661 = vst [vmem:[#allocation2 + $0x38] sm:$0x10] %v2653
    %v2670 = vrot.slane %v2646, 4
    %v2671 = vrot.slane %v2647, 3
    %v2672 = vsel %vm1048, %v2671, %v2670
    %v2673 = vrot.slane %v2648, 2
    %v2674 = vsel %vm1051, %v2673, %v2672
    %v2675 = vrot.slane %v2649, 1
    %v2676 = vsel %vm1054, %v2675, %v2674
    %v2677 = vsel %vm1057, %v2650, %v2676
    %v2678 = vrot.slane %v2651, 7
    %v2679 = vsel %vm1060, %v2678, %v2677
    %v2680 = vrot.slane %v2652, 6
    %v2681 = vsel %vm1063, %v2680, %v2679
    %v2682 = vrot.slane %v2653, 5
    %v2683 = vsel %vm1066, %v2682, %v2681
    %2685 = vmatprep.subr.mxu0 %v647
    %2686 = vmatpush1.msra.mxu0 %v646
    %2687 = vmatprep.subr.mxu0 %v644
    %2688 = vmatpush1.msra.mxu0 %v643
    %2689 = vmatprep.subr.mxu0 %v641
    %2690 = vmatpush1.msra.mxu0 %v640
    %2691 = vmatprep.subr.mxu0 %v638
    %2692 = vmatpush1.msra.mxu0 %v637
    %2693 = vmatprep.subr.mxu0 %v635
    %2694 = vmatpush1.msra.mxu0 %v634
    %2695 = vmatprep.subr.mxu0 %v632
    %2696 = vmatpush1.msra.mxu0 %v631
    %2697 = vmatprep.subr.mxu0 %v629
    %2698 = vmatpush1.msra.mxu0 %v628
    %2699 = vmatprep.subr.mxu0 %v626
    %2700 = vmatpush1.msra.mxu0 %v625
    %2701 = vmatprep.subr.mxu0 %v623
    %2702 = vmatpush1.msra.mxu0 %v622
    %2703 = vmatprep.subr.mxu0 %v620
    %2704 = vmatpush1.msra.mxu0 %v619
    %2705 = vmatprep.subr.mxu0 %v617
    %2706 = vmatpush1.msra.mxu0 %v616
    %2707 = vmatprep.subr.mxu0 %v614
    %2708 = vmatpush1.msra.mxu0 %v613
    %2709 = vmatprep.subr.mxu0 %v611
    %2710 = vmatpush1.msra.mxu0 %v610
    %2711 = vmatprep.subr.mxu0 %v608
    %2712 = vmatpush1.msra.mxu0 %v607
    %2713 = vmatprep.subr.mxu0 %v605
    %2714 = vmatpush1.msra.mxu0 %v604
    %2715 = vmatprep.subr.mxu0 %v602
    %2716 = vmatpush1.msra.mxu0 %v601
    %2717 = vmatprep.subr.mxu0 0.0
    %2718 = vmatpush2.msra.mxu0 0.0
    %2719 = vmatprep.subr.mxu0 0.0
    %2720 = vmatpush2.msra.mxu0 0.0
    %2721 = vmatprep.subr.mxu0 0.0
    %2722 = vmatpush2.msra.mxu0 0.0
    %2723 = vmatprep.subr.mxu0 0.0
    %2724 = vmatpush2.msra.mxu0 0.0
    %2725 = vmatprep.subr.mxu0 0.0
    %2726 = vmatpush2.msra.mxu0 0.0
    %2727 = vmatprep.subr.mxu0 0.0
    %2728 = vmatpush2.msra.mxu0 0.0
    %2729 = vmatprep.subr.mxu0 0.0
    %2730 = vmatpush2.msra.mxu0 0.0
    %2731 = vmatprep.subr.mxu0 0.0
    %2732 = vmatpush2.msra.mxu0 0.0
    %2733 = vmatprep.subr.mxu0 0.0
    %2734 = vmatpush2.msra.mxu0 0.0
    %2735 = vmatprep.subr.mxu0 0.0
    %2736 = vmatpush2.msra.mxu0 0.0
    %2737 = vmatprep.subr.mxu0 0.0
    %2738 = vmatpush2.msra.mxu0 0.0
    %2739 = vmatprep.subr.mxu0 0.0
    %2740 = vmatpush2.msra.mxu0 0.0
    %2741 = vmatprep.subr.mxu0 0.0
    %2742 = vmatpush2.msra.mxu0 0.0
    %2743 = vmatprep.subr.mxu0 0.0
    %2744 = vmatpush2.msra.mxu0 0.0
    %2745 = vmatprep.subr.mxu0 0.0
    %2746 = vmatpush2.msra.mxu0 0.0
    %2747 = vmatprep.subr.mxu0 0.0
    %2748 = vmatpush2.msra.mxu0 0.0
    %2749 = vmatprep.mubr.f32.mxu0 0.0
    %2750 = vmatmul.mubr.f32.gmra.mxu0 %v2683
    %v2751 = vpop.f32.mrf.mxu0
    %v2752 = vadd.f32 0.0, %v2751
    %v2753 = vpop.f32.mrf.mxu0
    %v2754 = vadd.f32 0.0, %v2753
    %2755 = vdwg.mxu0
    %2756 = vmatprep.subr.mxu0 0.0
    %2757 = vmatpush1.msra.mxu0 %v648
    %2758 = vmatprep.subr.mxu0 0.0
    %2759 = vmatpush1.msra.mxu0 %v645
    %2760 = vmatprep.subr.mxu0 0.0
    %2761 = vmatpush1.msra.mxu0 %v642
    %2762 = vmatprep.subr.mxu0 0.0
    %2763 = vmatpush1.msra.mxu0 %v639
    %2764 = vmatprep.subr.mxu0 0.0
    %2765 = vmatpush1.msra.mxu0 %v636
    %2766 = vmatprep.subr.mxu0 0.0
    %2767 = vmatpush1.msra.mxu0 %v633
    %2768 = vmatprep.subr.mxu0 0.0
    %2769 = vmatpush1.msra.mxu0 %v630
    %2770 = vmatprep.subr.mxu0 0.0
    %2771 = vmatpush1.msra.mxu0 %v627
    %2772 = vmatprep.subr.mxu0 0.0
    %2773 = vmatpush1.msra.mxu0 %v624
    %2774 = vmatprep.subr.mxu0 0.0
    %2775 = vmatpush1.msra.mxu0 %v621
    %2776 = vmatprep.subr.mxu0 0.0
    %2777 = vmatpush1.msra.mxu0 %v618
    %2778 = vmatprep.subr.mxu0 0.0
    %2779 = vmatpush1.msra.mxu0 %v615
    %2780 = vmatprep.subr.mxu0 0.0
    %2781 = vmatpush1.msra.mxu0 %v612
    %2782 = vmatprep.subr.mxu0 0.0
    %2783 = vmatpush1.msra.mxu0 %v609
    %2784 = vmatprep.subr.mxu0 0.0
    %2785 = vmatpush1.msra.mxu0 %v606
    %2786 = vmatprep.subr.mxu0 0.0
    %2787 = vmatpush1.msra.mxu0 %v603
    %2788 = vmatprep.subr.mxu0 0.0
    %2789 = vmatpush2.msra.mxu0 0.0
    %2790 = vmatprep.subr.mxu0 0.0
    %2791 = vmatpush2.msra.mxu0 0.0
    %2792 = vmatprep.subr.mxu0 0.0
    %2793 = vmatpush2.msra.mxu0 0.0
    %2794 = vmatprep.subr.mxu0 0.0
    %2795 = vmatpush2.msra.mxu0 0.0
    %2796 = vmatprep.subr.mxu0 0.0
    %2797 = vmatpush2.msra.mxu0 0.0
    %2798 = vmatprep.subr.mxu0 0.0
    %2799 = vmatpush2.msra.mxu0 0.0
    %2800 = vmatprep.subr.mxu0 0.0
    %2801 = vmatpush2.msra.mxu0 0.0
    %2802 = vmatprep.subr.mxu0 0.0
    %2803 = vmatpush2.msra.mxu0 0.0
    %2804 = vmatprep.subr.mxu0 0.0
    %2805 = vmatpush2.msra.mxu0 0.0
    %2806 = vmatprep.subr.mxu0 0.0
    %2807 = vmatpush2.msra.mxu0 0.0
    %2808 = vmatprep.subr.mxu0 0.0
    %2809 = vmatpush2.msra.mxu0 0.0
    %2810 = vmatprep.subr.mxu0 0.0
    %2811 = vmatpush2.msra.mxu0 0.0
    %2812 = vmatprep.subr.mxu0 0.0
    %2813 = vmatpush2.msra.mxu0 0.0
    %2814 = vmatprep.subr.mxu0 0.0
    %2815 = vmatpush2.msra.mxu0 0.0
    %2816 = vmatprep.subr.mxu0 0.0
    %2817 = vmatpush2.msra.mxu0 0.0
    %2818 = vmatprep.subr.mxu0 0.0
    %2819 = vmatpush2.msra.mxu0 0.0
    %2820 = vmatprep.mubr.f32.mxu0 0.0
    %2821 = vmatmul.mubr.f32.gmra.mxu0 %v2683
    %v2822 = vpop.f32.mrf.mxu0
    %v2823 = vadd.f32 0.0, %v2822
    %v2824 = vpop.f32.mrf.mxu0
    %2825 = vdwg.mxu0
    %v2827 = vrot.slane %v2752, 3
    %v2828 = vrot.slane %v2752, 4
    %v2829 = vrot.slane %v2752, 5
    %v2830 = vrot.slane %v2752, 6
    %v2831 = vrot.slane %v2752, 7
    %v2832 = vrot.slane %v2752, 1
    %v2833 = vrot.slane %v2752, 2
    %v2842 = vadd.f32 %v450, %v2827
    %v2843 = vadd.f32 %v456, %v2828
    %v2844 = vadd.f32 %v462, %v2829
    %v2845 = vadd.f32 %v468, %v2830
    %v2846 = vadd.f32 %v474, %v2831
    %v2847 = vadd.f32 %v480, %v2752
    %v2848 = vadd.f32 %v486, %v2832
    %v2849 = vadd.f32 %v492, %v2833
    %v2850 = vxor.u32 %v2842, 2147483648
    %v2851 = vxor.u32 %v2843, 2147483648
    %v2852 = vxor.u32 %v2844, 2147483648
    %v2853 = vxor.u32 %v2845, 2147483648
    %v2854 = vxor.u32 %v2846, 2147483648
    %v2855 = vxor.u32 %v2847, 2147483648
    %v2856 = vxor.u32 %v2848, 2147483648
    %v2857 = vxor.u32 %v2849, 2147483648
    %v2858 = vmul.f32 %v2850, 1.442695
    %v2859 = vpow.pop %v2858
    %v2860 = vmul.f32 %v2851, 1.442695
    %v2861 = vpow.pop %v2860
    %v2862 = vmul.f32 %v2852, 1.442695
    %v2863 = vpow.pop %v2862
    %v2864 = vmul.f32 %v2853, 1.442695
    %v2865 = vpow.pop %v2864
    %v2866 = vmul.f32 %v2854, 1.442695
    %v2867 = vpow.pop %v2866
    %v2868 = vmul.f32 %v2855, 1.442695
    %v2869 = vpow.pop %v2868
    %v2870 = vmul.f32 %v2856, 1.442695
    %v2871 = vpow.pop %v2870
    %v2872 = vmul.f32 %v2857, 1.442695
    %v2873 = vpow.pop %v2872
    %v2874 = vadd.f32 %v2859, 1.0
    %v2875 = vadd.f32 %v2861, 1.0
    %v2876 = vadd.f32 %v2863, 1.0
    %v2877 = vadd.f32 %v2865, 1.0
    %v2878 = vadd.f32 %v2867, 1.0
    %v2879 = vadd.f32 %v2869, 1.0
    %v2880 = vadd.f32 %v2871, 1.0
    %v2881 = vadd.f32 %v2873, 1.0
    %v2882 = vrcp.pop %v2874
    %v2883 = vmul.f32 1.0, %v2882
    %v2884 = vrcp.pop %v2875
    %v2885 = vmul.f32 1.0, %v2884
    %v2886 = vrcp.pop %v2876
    %v2887 = vmul.f32 1.0, %v2886
    %v2888 = vrcp.pop %v2877
    %v2889 = vmul.f32 1.0, %v2888
    %v2890 = vrcp.pop %v2878
    %v2891 = vmul.f32 1.0, %v2890
    %v2892 = vrcp.pop %v2879
    %v2893 = vmul.f32 1.0, %v2892
    %v2894 = vrcp.pop %v2880
    %v2895 = vmul.f32 1.0, %v2894
    %v2896 = vrcp.pop %v2881
    %v2897 = vmul.f32 1.0, %v2896
    %v2899 = vrot.slane %v2754, 3
    %v2900 = vrot.slane %v2754, 4
    %v2901 = vrot.slane %v2754, 5
    %v2902 = vrot.slane %v2754, 6
    %v2903 = vrot.slane %v2754, 7
    %v2904 = vrot.slane %v2754, 1
    %v2905 = vrot.slane %v2754, 2
    %v2914 = vadd.f32 %v452, %v2899
    %v2915 = vadd.f32 %v458, %v2900
    %v2916 = vadd.f32 %v464, %v2901
    %v2917 = vadd.f32 %v470, %v2902
    %v2918 = vadd.f32 %v476, %v2903
    %v2919 = vadd.f32 %v482, %v2754
    %v2920 = vadd.f32 %v488, %v2904
    %v2921 = vadd.f32 %v494, %v2905
    %v2922 = vxor.u32 %v2914, 2147483648
    %v2923 = vxor.u32 %v2915, 2147483648
    %v2924 = vxor.u32 %v2916, 2147483648
    %v2925 = vxor.u32 %v2917, 2147483648
    %v2926 = vxor.u32 %v2918, 2147483648
    %v2927 = vxor.u32 %v2919, 2147483648
    %v2928 = vxor.u32 %v2920, 2147483648
    %v2929 = vxor.u32 %v2921, 2147483648
    %v2930 = vmul.f32 %v2922, 1.442695
    %v2931 = vpow.pop %v2930
    %v2932 = vmul.f32 %v2923, 1.442695
    %v2933 = vpow.pop %v2932
    %v2934 = vmul.f32 %v2924, 1.442695
    %v2935 = vpow.pop %v2934
    %v2936 = vmul.f32 %v2925, 1.442695
    %v2937 = vpow.pop %v2936
    %v2938 = vmul.f32 %v2926, 1.442695
    %v2939 = vpow.pop %v2938
    %v2940 = vmul.f32 %v2927, 1.442695
    %v2941 = vpow.pop %v2940
    %v2942 = vmul.f32 %v2928, 1.442695
    %v2943 = vpow.pop %v2942
    %v2944 = vmul.f32 %v2929, 1.442695
    %v2945 = vpow.pop %v2944
    %v2946 = vadd.f32 %v2931, 1.0
    %v2947 = vadd.f32 %v2933, 1.0
    %v2948 = vadd.f32 %v2935, 1.0
    %v2949 = vadd.f32 %v2937, 1.0
    %v2950 = vadd.f32 %v2939, 1.0
    %v2951 = vadd.f32 %v2941, 1.0
    %v2952 = vadd.f32 %v2943, 1.0
    %v2953 = vadd.f32 %v2945, 1.0
    %v2954 = vrcp.pop %v2946
    %v2955 = vmul.f32 1.0, %v2954
    %v2956 = vrcp.pop %v2947
    %v2957 = vmul.f32 1.0, %v2956
    %v2958 = vrcp.pop %v2948
    %v2959 = vmul.f32 1.0, %v2958
    %v2960 = vrcp.pop %v2949
    %v2961 = vmul.f32 1.0, %v2960
    %v2962 = vrcp.pop %v2950
    %v2963 = vmul.f32 1.0, %v2962
    %v2964 = vrcp.pop %v2951
    %v2965 = vmul.f32 1.0, %v2964
    %v2966 = vrcp.pop %v2952
    %v2967 = vmul.f32 1.0, %v2966
    %v2968 = vrcp.pop %v2953
    %v2969 = vmul.f32 1.0, %v2968
    %v2970 = vadd.f32 %v2823, %v940
    %v2972 = vrot.slane %v2970, 3
    %v2973 = vrot.slane %v2970, 4
    %v2974 = vrot.slane %v2970, 5
    %v2975 = vrot.slane %v2970, 6
    %v2976 = vrot.slane %v2970, 7
    %v2977 = vrot.slane %v2970, 1
    %v2978 = vrot.slane %v2970, 2
    %v2987 = vmul.f32 %v2883, %v2972
    %v2988 = vmul.f32 %v2885, %v2973
    %v2989 = vmul.f32 %v2887, %v2974
    %v2990 = vmul.f32 %v2889, %v2975
    %v2991 = vmul.f32 %v2891, %v2976
    %v2992 = vmul.f32 %v2893, %v2970
    %v2993 = vmul.f32 %v2895, %v2977
    %v2994 = vmul.f32 %v2897, %v2978
    %v2995 = vadd.f32 %v563, %v2987
    %v2996 = vadd.f32 %v568, %v2988
    %v2997 = vadd.f32 %v573, %v2989
    %v2998 = vadd.f32 %v578, %v2990
    %v2999 = vadd.f32 %v583, %v2991
    %v3000 = vadd.f32 %v588, %v2992
    %v3001 = vadd.f32 %v593, %v2993
    %v3002 = vadd.f32 %v598, %v2994
    %v3003 = vtanh.pop %v2995
    %v3004 = vtanh.pop %v2996
    %v3005 = vtanh.pop %v2997
    %v3006 = vtanh.pop %v2998
    %v3007 = vtanh.pop %v2999
    %v3008 = vtanh.pop %v3000
    %v3009 = vtanh.pop %v3001
    %v3010 = vtanh.pop %v3002
    %v3011 = vsub.f32 1.0, %v2955
    %v3012 = vsub.f32 1.0, %v2957
    %v3013 = vsub.f32 1.0, %v2959
    %v3014 = vsub.f32 1.0, %v2961
    %v3015 = vsub.f32 1.0, %v2963
    %v3016 = vsub.f32 1.0, %v2965
    %v3017 = vsub.f32 1.0, %v2967
    %v3018 = vsub.f32 1.0, %v2969
    %v3019 = vmul.f32 %v3011, %v3003
    %v3020 = vmul.f32 %v3012, %v3004
    %v3021 = vmul.f32 %v3013, %v3005
    %v3022 = vmul.f32 %v3014, %v3006
    %v3023 = vmul.f32 %v3015, %v3007
    %v3024 = vmul.f32 %v3016, %v3008
    %v3025 = vmul.f32 %v3017, %v3009
    %v3026 = vmul.f32 %v3018, %v3010
    %v3027 = vrot.slane %v2646, 7
    %v3028 = vrot.slane %v2647, 7
    %v3029 = vrot.slane %v2648, 7
    %v3030 = vrot.slane %v2649, 7
    %v3031 = vrot.slane %v2650, 7
    %v3032 = vrot.slane %v2652, 7
    %v3033 = vrot.slane %v2653, 7
    %v3042 = vmul.f32 %v2955, %v3027
    %v3043 = vmul.f32 %v2957, %v3028
    %v3044 = vmul.f32 %v2959, %v3029
    %v3045 = vmul.f32 %v2961, %v3030
    %v3046 = vmul.f32 %v2963, %v3031
    %v3047 = vmul.f32 %v2965, %v2678
    %v3048 = vmul.f32 %v2967, %v3032
    %v3049 = vmul.f32 %v2969, %v3033
    %v3050 = vadd.f32 %v3019, %v3042
    %v3051 = vadd.f32 %v3020, %v3043
    %v3052 = vadd.f32 %v3021, %v3044
    %v3053 = vadd.f32 %v3022, %v3045
    %v3054 = vadd.f32 %v3023, %v3046
    %v3055 = vadd.f32 %v3024, %v3047
    %v3056 = vadd.f32 %v3025, %v3048
    %v3057 = vadd.f32 %v3026, %v3049
    %3058 = vst [vmem:[#allocation2] sm:$0x20] %v3050
    %3059 = vst [vmem:[#allocation2 + $0x8] sm:$0x20] %v3051
    %3060 = vst [vmem:[#allocation2 + $0x10] sm:$0x20] %v3052
    %3061 = vst [vmem:[#allocation2 + $0x18] sm:$0x20] %v3053
    %3062 = vst [vmem:[#allocation2 + $0x20] sm:$0x20] %v3054
    %3063 = vst [vmem:[#allocation2 + $0x28] sm:$0x20] %v3055
    %3064 = vst [vmem:[#allocation2 + $0x30] sm:$0x20] %v3056
    %3065 = vst [vmem:[#allocation2 + $0x38] sm:$0x20] %v3057
    %v3074 = vrot.slane %v3050, 5
    %v3075 = vrot.slane %v3051, 4
    %v3076 = vsel %vm1048, %v3075, %v3074
    %v3077 = vrot.slane %v3052, 3
    %v3078 = vsel %vm1051, %v3077, %v3076
    %v3079 = vrot.slane %v3053, 2
    %v3080 = vsel %vm1054, %v3079, %v3078
    %v3081 = vrot.slane %v3054, 1
    %v3082 = vsel %vm1057, %v3081, %v3080
    %v3083 = vsel %vm1060, %v3055, %v3082
    %v3084 = vrot.slane %v3056, 7
    %v3085 = vsel %vm1063, %v3084, %v3083
    %v3086 = vrot.slane %v3057, 6
    %v3087 = vsel %vm1066, %v3086, %v3085
    %3089 = vmatprep.subr.mxu0 %v647
    %3090 = vmatpush1.msra.mxu0 %v646
    %3091 = vmatprep.subr.mxu0 %v644
    %3092 = vmatpush1.msra.mxu0 %v643
    %3093 = vmatprep.subr.mxu0 %v641
    %3094 = vmatpush1.msra.mxu0 %v640
    %3095 = vmatprep.subr.mxu0 %v638
    %3096 = vmatpush1.msra.mxu0 %v637
    %3097 = vmatprep.subr.mxu0 %v635
    %3098 = vmatpush1.msra.mxu0 %v634
    %3099 = vmatprep.subr.mxu0 %v632
    %3100 = vmatpush1.msra.mxu0 %v631
    %3101 = vmatprep.subr.mxu0 %v629
    %3102 = vmatpush1.msra.mxu0 %v628
    %3103 = vmatprep.subr.mxu0 %v626
    %3104 = vmatpush1.msra.mxu0 %v625
    %3105 = vmatprep.subr.mxu0 %v623
    %3106 = vmatpush1.msra.mxu0 %v622
    %3107 = vmatprep.subr.mxu0 %v620
    %3108 = vmatpush1.msra.mxu0 %v619
    %3109 = vmatprep.subr.mxu0 %v617
    %3110 = vmatpush1.msra.mxu0 %v616
    %3111 = vmatprep.subr.mxu0 %v614
    %3112 = vmatpush1.msra.mxu0 %v613
    %3113 = vmatprep.subr.mxu0 %v611
    %3114 = vmatpush1.msra.mxu0 %v610
    %3115 = vmatprep.subr.mxu0 %v608
    %3116 = vmatpush1.msra.mxu0 %v607
    %3117 = vmatprep.subr.mxu0 %v605
    %3118 = vmatpush1.msra.mxu0 %v604
    %3119 = vmatprep.subr.mxu0 %v602
    %3120 = vmatpush1.msra.mxu0 %v601
    %3121 = vmatprep.subr.mxu0 0.0
    %3122 = vmatpush2.msra.mxu0 0.0
    %3123 = vmatprep.subr.mxu0 0.0
    %3124 = vmatpush2.msra.mxu0 0.0
    %3125 = vmatprep.subr.mxu0 0.0
    %3126 = vmatpush2.msra.mxu0 0.0
    %3127 = vmatprep.subr.mxu0 0.0
    %3128 = vmatpush2.msra.mxu0 0.0
    %3129 = vmatprep.subr.mxu0 0.0
    %3130 = vmatpush2.msra.mxu0 0.0
    %3131 = vmatprep.subr.mxu0 0.0
    %3132 = vmatpush2.msra.mxu0 0.0
    %3133 = vmatprep.subr.mxu0 0.0
    %3134 = vmatpush2.msra.mxu0 0.0
    %3135 = vmatprep.subr.mxu0 0.0
    %3136 = vmatpush2.msra.mxu0 0.0
    %3137 = vmatprep.subr.mxu0 0.0
    %3138 = vmatpush2.msra.mxu0 0.0
    %3139 = vmatprep.subr.mxu0 0.0
    %3140 = vmatpush2.msra.mxu0 0.0
    %3141 = vmatprep.subr.mxu0 0.0
    %3142 = vmatpush2.msra.mxu0 0.0
    %3143 = vmatprep.subr.mxu0 0.0
    %3144 = vmatpush2.msra.mxu0 0.0
    %3145 = vmatprep.subr.mxu0 0.0
    %3146 = vmatpush2.msra.mxu0 0.0
    %3147 = vmatprep.subr.mxu0 0.0
    %3148 = vmatpush2.msra.mxu0 0.0
    %3149 = vmatprep.subr.mxu0 0.0
    %3150 = vmatpush2.msra.mxu0 0.0
    %3151 = vmatprep.subr.mxu0 0.0
    %3152 = vmatpush2.msra.mxu0 0.0
    %3153 = vmatprep.mubr.f32.mxu0 0.0
    %3154 = vmatmul.mubr.f32.gmra.mxu0 %v3087
    %v3155 = vpop.f32.mrf.mxu0
    %v3156 = vadd.f32 0.0, %v3155
    %v3157 = vpop.f32.mrf.mxu0
    %v3158 = vadd.f32 0.0, %v3157
    %3159 = vdwg.mxu0
    %3160 = vmatprep.subr.mxu0 0.0
    %3161 = vmatpush1.msra.mxu0 %v648
    %3162 = vmatprep.subr.mxu0 0.0
    %3163 = vmatpush1.msra.mxu0 %v645
    %3164 = vmatprep.subr.mxu0 0.0
    %3165 = vmatpush1.msra.mxu0 %v642
    %3166 = vmatprep.subr.mxu0 0.0
    %3167 = vmatpush1.msra.mxu0 %v639
    %3168 = vmatprep.subr.mxu0 0.0
    %3169 = vmatpush1.msra.mxu0 %v636
    %3170 = vmatprep.subr.mxu0 0.0
    %3171 = vmatpush1.msra.mxu0 %v633
    %3172 = vmatprep.subr.mxu0 0.0
    %3173 = vmatpush1.msra.mxu0 %v630
    %3174 = vmatprep.subr.mxu0 0.0
    %3175 = vmatpush1.msra.mxu0 %v627
    %3176 = vmatprep.subr.mxu0 0.0
    %3177 = vmatpush1.msra.mxu0 %v624
    %3178 = vmatprep.subr.mxu0 0.0
    %3179 = vmatpush1.msra.mxu0 %v621
    %3180 = vmatprep.subr.mxu0 0.0
    %3181 = vmatpush1.msra.mxu0 %v618
    %3182 = vmatprep.subr.mxu0 0.0
    %3183 = vmatpush1.msra.mxu0 %v615
    %3184 = vmatprep.subr.mxu0 0.0
    %3185 = vmatpush1.msra.mxu0 %v612
    %3186 = vmatprep.subr.mxu0 0.0
    %3187 = vmatpush1.msra.mxu0 %v609
    %3188 = vmatprep.subr.mxu0 0.0
    %3189 = vmatpush1.msra.mxu0 %v606
    %3190 = vmatprep.subr.mxu0 0.0
    %3191 = vmatpush1.msra.mxu0 %v603
    %3192 = vmatprep.subr.mxu0 0.0
    %3193 = vmatpush2.msra.mxu0 0.0
    %3194 = vmatprep.subr.mxu0 0.0
    %3195 = vmatpush2.msra.mxu0 0.0
    %3196 = vmatprep.subr.mxu0 0.0
    %3197 = vmatpush2.msra.mxu0 0.0
    %3198 = vmatprep.subr.mxu0 0.0
    %3199 = vmatpush2.msra.mxu0 0.0
    %3200 = vmatprep.subr.mxu0 0.0
    %3201 = vmatpush2.msra.mxu0 0.0
    %3202 = vmatprep.subr.mxu0 0.0
    %3203 = vmatpush2.msra.mxu0 0.0
    %3204 = vmatprep.subr.mxu0 0.0
    %3205 = vmatpush2.msra.mxu0 0.0
    %3206 = vmatprep.subr.mxu0 0.0
    %3207 = vmatpush2.msra.mxu0 0.0
    %3208 = vmatprep.subr.mxu0 0.0
    %3209 = vmatpush2.msra.mxu0 0.0
    %3210 = vmatprep.subr.mxu0 0.0
    %3211 = vmatpush2.msra.mxu0 0.0
    %3212 = vmatprep.subr.mxu0 0.0
    %3213 = vmatpush2.msra.mxu0 0.0
    %3214 = vmatprep.subr.mxu0 0.0
    %3215 = vmatpush2.msra.mxu0 0.0
    %3216 = vmatprep.subr.mxu0 0.0
    %3217 = vmatpush2.msra.mxu0 0.0
    %3218 = vmatprep.subr.mxu0 0.0
    %3219 = vmatpush2.msra.mxu0 0.0
    %3220 = vmatprep.subr.mxu0 0.0
    %3221 = vmatpush2.msra.mxu0 0.0
    %3222 = vmatprep.subr.mxu0 0.0
    %3223 = vmatpush2.msra.mxu0 0.0
    %3224 = vmatprep.mubr.f32.mxu0 0.0
    %3225 = vmatmul.mubr.f32.gmra.mxu0 %v3087
    %v3226 = vpop.f32.mrf.mxu0
    %v3227 = vadd.f32 0.0, %v3226
    %v3228 = vpop.f32.mrf.mxu0
    %3229 = vdwg.mxu0
    %v3231 = vrot.slane %v3156, 2
    %v3232 = vrot.slane %v3156, 3
    %v3233 = vrot.slane %v3156, 4
    %v3234 = vrot.slane %v3156, 5
    %v3235 = vrot.slane %v3156, 6
    %v3236 = vrot.slane %v3156, 7
    %v3237 = vrot.slane %v3156, 1
    %v3246 = vadd.f32 %v450, %v3231
    %v3247 = vadd.f32 %v456, %v3232
    %v3248 = vadd.f32 %v462, %v3233
    %v3249 = vadd.f32 %v468, %v3234
    %v3250 = vadd.f32 %v474, %v3235
    %v3251 = vadd.f32 %v480, %v3236
    %v3252 = vadd.f32 %v486, %v3156
    %v3253 = vadd.f32 %v492, %v3237
    %v3254 = vxor.u32 %v3246, 2147483648
    %v3255 = vxor.u32 %v3247, 2147483648
    %v3256 = vxor.u32 %v3248, 2147483648
    %v3257 = vxor.u32 %v3249, 2147483648
    %v3258 = vxor.u32 %v3250, 2147483648
    %v3259 = vxor.u32 %v3251, 2147483648
    %v3260 = vxor.u32 %v3252, 2147483648
    %v3261 = vxor.u32 %v3253, 2147483648
    %v3262 = vmul.f32 %v3254, 1.442695
    %v3263 = vpow.pop %v3262
    %v3264 = vmul.f32 %v3255, 1.442695
    %v3265 = vpow.pop %v3264
    %v3266 = vmul.f32 %v3256, 1.442695
    %v3267 = vpow.pop %v3266
    %v3268 = vmul.f32 %v3257, 1.442695
    %v3269 = vpow.pop %v3268
    %v3270 = vmul.f32 %v3258, 1.442695
    %v3271 = vpow.pop %v3270
    %v3272 = vmul.f32 %v3259, 1.442695
    %v3273 = vpow.pop %v3272
    %v3274 = vmul.f32 %v3260, 1.442695
    %v3275 = vpow.pop %v3274
    %v3276 = vmul.f32 %v3261, 1.442695
    %v3277 = vpow.pop %v3276
    %v3278 = vadd.f32 %v3263, 1.0
    %v3279 = vadd.f32 %v3265, 1.0
    %v3280 = vadd.f32 %v3267, 1.0
    %v3281 = vadd.f32 %v3269, 1.0
    %v3282 = vadd.f32 %v3271, 1.0
    %v3283 = vadd.f32 %v3273, 1.0
    %v3284 = vadd.f32 %v3275, 1.0
    %v3285 = vadd.f32 %v3277, 1.0
    %v3286 = vrcp.pop %v3278
    %v3287 = vmul.f32 1.0, %v3286
    %v3288 = vrcp.pop %v3279
    %v3289 = vmul.f32 1.0, %v3288
    %v3290 = vrcp.pop %v3280
    %v3291 = vmul.f32 1.0, %v3290
    %v3292 = vrcp.pop %v3281
    %v3293 = vmul.f32 1.0, %v3292
    %v3294 = vrcp.pop %v3282
    %v3295 = vmul.f32 1.0, %v3294
    %v3296 = vrcp.pop %v3283
    %v3297 = vmul.f32 1.0, %v3296
    %v3298 = vrcp.pop %v3284
    %v3299 = vmul.f32 1.0, %v3298
    %v3300 = vrcp.pop %v3285
    %v3301 = vmul.f32 1.0, %v3300
    %v3303 = vrot.slane %v3158, 2
    %v3304 = vrot.slane %v3158, 3
    %v3305 = vrot.slane %v3158, 4
    %v3306 = vrot.slane %v3158, 5
    %v3307 = vrot.slane %v3158, 6
    %v3308 = vrot.slane %v3158, 7
    %v3309 = vrot.slane %v3158, 1
    %v3318 = vadd.f32 %v452, %v3303
    %v3319 = vadd.f32 %v458, %v3304
    %v3320 = vadd.f32 %v464, %v3305
    %v3321 = vadd.f32 %v470, %v3306
    %v3322 = vadd.f32 %v476, %v3307
    %v3323 = vadd.f32 %v482, %v3308
    %v3324 = vadd.f32 %v488, %v3158
    %v3325 = vadd.f32 %v494, %v3309
    %v3326 = vxor.u32 %v3318, 2147483648
    %v3327 = vxor.u32 %v3319, 2147483648
    %v3328 = vxor.u32 %v3320, 2147483648
    %v3329 = vxor.u32 %v3321, 2147483648
    %v3330 = vxor.u32 %v3322, 2147483648
    %v3331 = vxor.u32 %v3323, 2147483648
    %v3332 = vxor.u32 %v3324, 2147483648
    %v3333 = vxor.u32 %v3325, 2147483648
    %v3334 = vmul.f32 %v3326, 1.442695
    %v3335 = vpow.pop %v3334
    %v3336 = vmul.f32 %v3327, 1.442695
    %v3337 = vpow.pop %v3336
    %v3338 = vmul.f32 %v3328, 1.442695
    %v3339 = vpow.pop %v3338
    %v3340 = vmul.f32 %v3329, 1.442695
    %v3341 = vpow.pop %v3340
    %v3342 = vmul.f32 %v3330, 1.442695
    %v3343 = vpow.pop %v3342
    %v3344 = vmul.f32 %v3331, 1.442695
    %v3345 = vpow.pop %v3344
    %v3346 = vmul.f32 %v3332, 1.442695
    %v3347 = vpow.pop %v3346
    %v3348 = vmul.f32 %v3333, 1.442695
    %v3349 = vpow.pop %v3348
    %v3350 = vadd.f32 %v3335, 1.0
    %v3351 = vadd.f32 %v3337, 1.0
    %v3352 = vadd.f32 %v3339, 1.0
    %v3353 = vadd.f32 %v3341, 1.0
    %v3354 = vadd.f32 %v3343, 1.0
    %v3355 = vadd.f32 %v3345, 1.0
    %v3356 = vadd.f32 %v3347, 1.0
    %v3357 = vadd.f32 %v3349, 1.0
    %v3358 = vrcp.pop %v3350
    %v3359 = vmul.f32 1.0, %v3358
    %v3360 = vrcp.pop %v3351
    %v3361 = vmul.f32 1.0, %v3360
    %v3362 = vrcp.pop %v3352
    %v3363 = vmul.f32 1.0, %v3362
    %v3364 = vrcp.pop %v3353
    %v3365 = vmul.f32 1.0, %v3364
    %v3366 = vrcp.pop %v3354
    %v3367 = vmul.f32 1.0, %v3366
    %v3368 = vrcp.pop %v3355
    %v3369 = vmul.f32 1.0, %v3368
    %v3370 = vrcp.pop %v3356
    %v3371 = vmul.f32 1.0, %v3370
    %v3372 = vrcp.pop %v3357
    %v3373 = vmul.f32 1.0, %v3372
    %v3374 = vadd.f32 %v3227, %v940
    %v3376 = vrot.slane %v3374, 2
    %v3377 = vrot.slane %v3374, 3
    %v3378 = vrot.slane %v3374, 4
    %v3379 = vrot.slane %v3374, 5
    %v3380 = vrot.slane %v3374, 6
    %v3381 = vrot.slane %v3374, 7
    %v3382 = vrot.slane %v3374, 1
    %v3391 = vmul.f32 %v3287, %v3376
    %v3392 = vmul.f32 %v3289, %v3377
    %v3393 = vmul.f32 %v3291, %v3378
    %v3394 = vmul.f32 %v3293, %v3379
    %v3395 = vmul.f32 %v3295, %v3380
    %v3396 = vmul.f32 %v3297, %v3381
    %v3397 = vmul.f32 %v3299, %v3374
    %v3398 = vmul.f32 %v3301, %v3382
    %v3399 = vadd.f32 %v563, %v3391
    %v3400 = vadd.f32 %v568, %v3392
    %v3401 = vadd.f32 %v573, %v3393
    %v3402 = vadd.f32 %v578, %v3394
    %v3403 = vadd.f32 %v583, %v3395
    %v3404 = vadd.f32 %v588, %v3396
    %v3405 = vadd.f32 %v593, %v3397
    %v3406 = vadd.f32 %v598, %v3398
    %v3407 = vtanh.pop %v3399
    %v3408 = vtanh.pop %v3400
    %v3409 = vtanh.pop %v3401
    %v3410 = vtanh.pop %v3402
    %v3411 = vtanh.pop %v3403
    %v3412 = vtanh.pop %v3404
    %v3413 = vtanh.pop %v3405
    %v3414 = vtanh.pop %v3406
    %v3415 = vsub.f32 1.0, %v3359
    %v3416 = vsub.f32 1.0, %v3361
    %v3417 = vsub.f32 1.0, %v3363
    %v3418 = vsub.f32 1.0, %v3365
    %v3419 = vsub.f32 1.0, %v3367
    %v3420 = vsub.f32 1.0, %v3369
    %v3421 = vsub.f32 1.0, %v3371
    %v3422 = vsub.f32 1.0, %v3373
    %v3423 = vmul.f32 %v3415, %v3407
    %v3424 = vmul.f32 %v3416, %v3408
    %v3425 = vmul.f32 %v3417, %v3409
    %v3426 = vmul.f32 %v3418, %v3410
    %v3427 = vmul.f32 %v3419, %v3411
    %v3428 = vmul.f32 %v3420, %v3412
    %v3429 = vmul.f32 %v3421, %v3413
    %v3430 = vmul.f32 %v3422, %v3414
    %v3431 = vrot.slane %v3050, 7
    %v3432 = vrot.slane %v3051, 7
    %v3433 = vrot.slane %v3052, 7
    %v3434 = vrot.slane %v3053, 7
    %v3435 = vrot.slane %v3054, 7
    %v3436 = vrot.slane %v3055, 7
    %v3437 = vrot.slane %v3057, 7
    %v3446 = vmul.f32 %v3359, %v3431
    %v3447 = vmul.f32 %v3361, %v3432
    %v3448 = vmul.f32 %v3363, %v3433
    %v3449 = vmul.f32 %v3365, %v3434
    %v3450 = vmul.f32 %v3367, %v3435
    %v3451 = vmul.f32 %v3369, %v3436
    %v3452 = vmul.f32 %v3371, %v3084
    %v3453 = vmul.f32 %v3373, %v3437
    %v3454 = vadd.f32 %v3423, %v3446
    %v3455 = vadd.f32 %v3424, %v3447
    %v3456 = vadd.f32 %v3425, %v3448
    %v3457 = vadd.f32 %v3426, %v3449
    %v3458 = vadd.f32 %v3427, %v3450
    %v3459 = vadd.f32 %v3428, %v3451
    %v3460 = vadd.f32 %v3429, %v3452
    %v3461 = vadd.f32 %v3430, %v3453
    %3462 = vst [vmem:[#allocation2] sm:$0x40] %v3454
    %3463 = vst [vmem:[#allocation2 + $0x8] sm:$0x40] %v3455
    %3464 = vst [vmem:[#allocation2 + $0x10] sm:$0x40] %v3456
    %3465 = vst [vmem:[#allocation2 + $0x18] sm:$0x40] %v3457
    %3466 = vst [vmem:[#allocation2 + $0x20] sm:$0x40] %v3458
    %3467 = vst [vmem:[#allocation2 + $0x28] sm:$0x40] %v3459
    %3468 = vst [vmem:[#allocation2 + $0x30] sm:$0x40] %v3460
    %3469 = vst [vmem:[#allocation2 + $0x38] sm:$0x40] %v3461
    %v3478 = vrot.slane %v3454, 6
    %v3479 = vrot.slane %v3455, 5
    %v3480 = vsel %vm1048, %v3479, %v3478
    %v3481 = vrot.slane %v3456, 4
    %v3482 = vsel %vm1051, %v3481, %v3480
    %v3483 = vrot.slane %v3457, 3
    %v3484 = vsel %vm1054, %v3483, %v3482
    %v3485 = vrot.slane %v3458, 2
    %v3486 = vsel %vm1057, %v3485, %v3484
    %v3487 = vrot.slane %v3459, 1
    %v3488 = vsel %vm1060, %v3487, %v3486
    %v3489 = vsel %vm1063, %v3460, %v3488
    %v3490 = vrot.slane %v3461, 7
    %v3491 = vsel %vm1066, %v3490, %v3489
    %3493 = vmatprep.subr.mxu0 %v647
    %3494 = vmatpush1.msra.mxu0 %v646
    %3495 = vmatprep.subr.mxu0 %v644
    %3496 = vmatpush1.msra.mxu0 %v643
    %3497 = vmatprep.subr.mxu0 %v641
    %3498 = vmatpush1.msra.mxu0 %v640
    %3499 = vmatprep.subr.mxu0 %v638
    %3500 = vmatpush1.msra.mxu0 %v637
    %3501 = vmatprep.subr.mxu0 %v635
    %3502 = vmatpush1.msra.mxu0 %v634
    %3503 = vmatprep.subr.mxu0 %v632
    %3504 = vmatpush1.msra.mxu0 %v631
    %3505 = vmatprep.subr.mxu0 %v629
    %3506 = vmatpush1.msra.mxu0 %v628
    %3507 = vmatprep.subr.mxu0 %v626
    %3508 = vmatpush1.msra.mxu0 %v625
    %3509 = vmatprep.subr.mxu0 %v623
    %3510 = vmatpush1.msra.mxu0 %v622
    %3511 = vmatprep.subr.mxu0 %v620
    %3512 = vmatpush1.msra.mxu0 %v619
    %3513 = vmatprep.subr.mxu0 %v617
    %3514 = vmatpush1.msra.mxu0 %v616
    %3515 = vmatprep.subr.mxu0 %v614
    %3516 = vmatpush1.msra.mxu0 %v613
    %3517 = vmatprep.subr.mxu0 %v611
    %3518 = vmatpush1.msra.mxu0 %v610
    %3519 = vmatprep.subr.mxu0 %v608
    %3520 = vmatpush1.msra.mxu0 %v607
    %3521 = vmatprep.subr.mxu0 %v605
    %3522 = vmatpush1.msra.mxu0 %v604
    %3523 = vmatprep.subr.mxu0 %v602
    %3524 = vmatpush1.msra.mxu0 %v601
    %3525 = vmatprep.subr.mxu0 0.0
    %3526 = vmatpush2.msra.mxu0 0.0
    %3527 = vmatprep.subr.mxu0 0.0
    %3528 = vmatpush2.msra.mxu0 0.0
    %3529 = vmatprep.subr.mxu0 0.0
    %3530 = vmatpush2.msra.mxu0 0.0
    %3531 = vmatprep.subr.mxu0 0.0
    %3532 = vmatpush2.msra.mxu0 0.0
    %3533 = vmatprep.subr.mxu0 0.0
    %3534 = vmatpush2.msra.mxu0 0.0
    %3535 = vmatprep.subr.mxu0 0.0
    %3536 = vmatpush2.msra.mxu0 0.0
    %3537 = vmatprep.subr.mxu0 0.0
    %3538 = vmatpush2.msra.mxu0 0.0
    %3539 = vmatprep.subr.mxu0 0.0
    %3540 = vmatpush2.msra.mxu0 0.0
    %3541 = vmatprep.subr.mxu0 0.0
    %3542 = vmatpush2.msra.mxu0 0.0
    %3543 = vmatprep.subr.mxu0 0.0
    %3544 = vmatpush2.msra.mxu0 0.0
    %3545 = vmatprep.subr.mxu0 0.0
    %3546 = vmatpush2.msra.mxu0 0.0
    %3547 = vmatprep.subr.mxu0 0.0
    %3548 = vmatpush2.msra.mxu0 0.0
    %3549 = vmatprep.subr.mxu0 0.0
    %3550 = vmatpush2.msra.mxu0 0.0
    %3551 = vmatprep.subr.mxu0 0.0
    %3552 = vmatpush2.msra.mxu0 0.0
    %3553 = vmatprep.subr.mxu0 0.0
    %3554 = vmatpush2.msra.mxu0 0.0
    %3555 = vmatprep.subr.mxu0 0.0
    %3556 = vmatpush2.msra.mxu0 0.0
    %3557 = vmatprep.mubr.f32.mxu0 0.0
    %3558 = vmatmul.mubr.f32.gmra.mxu0 %v3491
    %v3559 = vpop.f32.mrf.mxu0
    %v3560 = vadd.f32 0.0, %v3559
    %v3561 = vpop.f32.mrf.mxu0
    %v3562 = vadd.f32 0.0, %v3561
    %3563 = vdwg.mxu0
    %3564 = vmatprep.subr.mxu0 0.0
    %3565 = vmatpush1.msra.mxu0 %v648
    %3566 = vmatprep.subr.mxu0 0.0
    %3567 = vmatpush1.msra.mxu0 %v645
    %3568 = vmatprep.subr.mxu0 0.0
    %3569 = vmatpush1.msra.mxu0 %v642
    %3570 = vmatprep.subr.mxu0 0.0
    %3571 = vmatpush1.msra.mxu0 %v639
    %3572 = vmatprep.subr.mxu0 0.0
    %3573 = vmatpush1.msra.mxu0 %v636
    %3574 = vmatprep.subr.mxu0 0.0
    %3575 = vmatpush1.msra.mxu0 %v633
    %3576 = vmatprep.subr.mxu0 0.0
    %3577 = vmatpush1.msra.mxu0 %v630
    %3578 = vmatprep.subr.mxu0 0.0
    %3579 = vmatpush1.msra.mxu0 %v627
    %3580 = vmatprep.subr.mxu0 0.0
    %3581 = vmatpush1.msra.mxu0 %v624
    %3582 = vmatprep.subr.mxu0 0.0
    %3583 = vmatpush1.msra.mxu0 %v621
    %3584 = vmatprep.subr.mxu0 0.0
    %3585 = vmatpush1.msra.mxu0 %v618
    %3586 = vmatprep.subr.mxu0 0.0
    %3587 = vmatpush1.msra.mxu0 %v615
    %3588 = vmatprep.subr.mxu0 0.0
    %3589 = vmatpush1.msra.mxu0 %v612
    %3590 = vmatprep.subr.mxu0 0.0
    %3591 = vmatpush1.msra.mxu0 %v609
    %3592 = vmatprep.subr.mxu0 0.0
    %3593 = vmatpush1.msra.mxu0 %v606
    %3594 = vmatprep.subr.mxu0 0.0
    %3595 = vmatpush1.msra.mxu0 %v603
    %3596 = vmatprep.subr.mxu0 0.0
    %3597 = vmatpush2.msra.mxu0 0.0
    %3598 = vmatprep.subr.mxu0 0.0
    %3599 = vmatpush2.msra.mxu0 0.0
    %3600 = vmatprep.subr.mxu0 0.0
    %3601 = vmatpush2.msra.mxu0 0.0
    %3602 = vmatprep.subr.mxu0 0.0
    %3603 = vmatpush2.msra.mxu0 0.0
    %3604 = vmatprep.subr.mxu0 0.0
    %3605 = vmatpush2.msra.mxu0 0.0
    %3606 = vmatprep.subr.mxu0 0.0
    %3607 = vmatpush2.msra.mxu0 0.0
    %3608 = vmatprep.subr.mxu0 0.0
    %3609 = vmatpush2.msra.mxu0 0.0
    %3610 = vmatprep.subr.mxu0 0.0
    %3611 = vmatpush2.msra.mxu0 0.0
    %3612 = vmatprep.subr.mxu0 0.0
    %3613 = vmatpush2.msra.mxu0 0.0
    %3614 = vmatprep.subr.mxu0 0.0
    %3615 = vmatpush2.msra.mxu0 0.0
    %3616 = vmatprep.subr.mxu0 0.0
    %3617 = vmatpush2.msra.mxu0 0.0
    %3618 = vmatprep.subr.mxu0 0.0
    %3619 = vmatpush2.msra.mxu0 0.0
    %3620 = vmatprep.subr.mxu0 0.0
    %3621 = vmatpush2.msra.mxu0 0.0
    %3622 = vmatprep.subr.mxu0 0.0
    %3623 = vmatpush2.msra.mxu0 0.0
    %3624 = vmatprep.subr.mxu0 0.0
    %3625 = vmatpush2.msra.mxu0 0.0
    %3626 = vmatprep.subr.mxu0 0.0
    %3627 = vmatpush2.msra.mxu0 0.0
    %3628 = vmatprep.mubr.f32.mxu0 0.0
    %3629 = vmatmul.mubr.f32.gmra.mxu0 %v3491
    %v3630 = vpop.f32.mrf.mxu0
    %v3631 = vadd.f32 0.0, %v3630
    %v3632 = vpop.f32.mrf.mxu0
    %3633 = vdwg.mxu0
    %v3635 = vrot.slane %v3560, 1
    %v3636 = vrot.slane %v3560, 2
    %v3637 = vrot.slane %v3560, 3
    %v3638 = vrot.slane %v3560, 4
    %v3639 = vrot.slane %v3560, 5
    %v3640 = vrot.slane %v3560, 6
    %v3641 = vrot.slane %v3560, 7
    %v3650 = vadd.f32 %v450, %v3635
    %v3651 = vadd.f32 %v456, %v3636
    %v3652 = vadd.f32 %v462, %v3637
    %v3653 = vadd.f32 %v468, %v3638
    %v3654 = vadd.f32 %v474, %v3639
    %v3655 = vadd.f32 %v480, %v3640
    %v3656 = vadd.f32 %v486, %v3641
    %v3657 = vadd.f32 %v492, %v3560
    %v3658 = vxor.u32 %v3650, 2147483648
    %v3659 = vxor.u32 %v3651, 2147483648
    %v3660 = vxor.u32 %v3652, 2147483648
    %v3661 = vxor.u32 %v3653, 2147483648
    %v3662 = vxor.u32 %v3654, 2147483648
    %v3663 = vxor.u32 %v3655, 2147483648
    %v3664 = vxor.u32 %v3656, 2147483648
    %v3665 = vxor.u32 %v3657, 2147483648
    %v3666 = vmul.f32 %v3658, 1.442695
    %v3667 = vpow.pop %v3666
    %v3668 = vmul.f32 %v3659, 1.442695
    %v3669 = vpow.pop %v3668
    %v3670 = vmul.f32 %v3660, 1.442695
    %v3671 = vpow.pop %v3670
    %v3672 = vmul.f32 %v3661, 1.442695
    %v3673 = vpow.pop %v3672
    %v3674 = vmul.f32 %v3662, 1.442695
    %v3675 = vpow.pop %v3674
    %v3676 = vmul.f32 %v3663, 1.442695
    %v3677 = vpow.pop %v3676
    %v3678 = vmul.f32 %v3664, 1.442695
    %v3679 = vpow.pop %v3678
    %v3680 = vmul.f32 %v3665, 1.442695
    %v3681 = vpow.pop %v3680
    %v3682 = vadd.f32 %v3667, 1.0
    %v3683 = vadd.f32 %v3669, 1.0
    %v3684 = vadd.f32 %v3671, 1.0
    %v3685 = vadd.f32 %v3673, 1.0
    %v3686 = vadd.f32 %v3675, 1.0
    %v3687 = vadd.f32 %v3677, 1.0
    %v3688 = vadd.f32 %v3679, 1.0
    %v3689 = vadd.f32 %v3681, 1.0
    %v3690 = vrcp.pop %v3682
    %v3691 = vmul.f32 1.0, %v3690
    %v3692 = vrcp.pop %v3683
    %v3693 = vmul.f32 1.0, %v3692
    %v3694 = vrcp.pop %v3684
    %v3695 = vmul.f32 1.0, %v3694
    %v3696 = vrcp.pop %v3685
    %v3697 = vmul.f32 1.0, %v3696
    %v3698 = vrcp.pop %v3686
    %v3699 = vmul.f32 1.0, %v3698
    %v3700 = vrcp.pop %v3687
    %v3701 = vmul.f32 1.0, %v3700
    %v3702 = vrcp.pop %v3688
    %v3703 = vmul.f32 1.0, %v3702
    %v3704 = vrcp.pop %v3689
    %v3705 = vmul.f32 1.0, %v3704
    %v3707 = vrot.slane %v3562, 1
    %v3708 = vrot.slane %v3562, 2
    %v3709 = vrot.slane %v3562, 3
    %v3710 = vrot.slane %v3562, 4
    %v3711 = vrot.slane %v3562, 5
    %v3712 = vrot.slane %v3562, 6
    %v3713 = vrot.slane %v3562, 7
    %v3722 = vadd.f32 %v452, %v3707
    %v3723 = vadd.f32 %v458, %v3708
    %v3724 = vadd.f32 %v464, %v3709
    %v3725 = vadd.f32 %v470, %v3710
    %v3726 = vadd.f32 %v476, %v3711
    %v3727 = vadd.f32 %v482, %v3712
    %v3728 = vadd.f32 %v488, %v3713
    %v3729 = vadd.f32 %v494, %v3562
    %v3730 = vxor.u32 %v3722, 2147483648
    %v3731 = vxor.u32 %v3723, 2147483648
    %v3732 = vxor.u32 %v3724, 2147483648
    %v3733 = vxor.u32 %v3725, 2147483648
    %v3734 = vxor.u32 %v3726, 2147483648
    %v3735 = vxor.u32 %v3727, 2147483648
    %v3736 = vxor.u32 %v3728, 2147483648
    %v3737 = vxor.u32 %v3729, 2147483648
    %v3738 = vmul.f32 %v3730, 1.442695
    %v3739 = vpow.pop %v3738
    %v3740 = vmul.f32 %v3731, 1.442695
    %v3741 = vpow.pop %v3740
    %v3742 = vmul.f32 %v3732, 1.442695
    %v3743 = vpow.pop %v3742
    %v3744 = vmul.f32 %v3733, 1.442695
    %v3745 = vpow.pop %v3744
    %v3746 = vmul.f32 %v3734, 1.442695
    %v3747 = vpow.pop %v3746
    %v3748 = vmul.f32 %v3735, 1.442695
    %v3749 = vpow.pop %v3748
    %v3750 = vmul.f32 %v3736, 1.442695
    %v3751 = vpow.pop %v3750
    %v3752 = vmul.f32 %v3737, 1.442695
    %v3753 = vpow.pop %v3752
    %v3754 = vadd.f32 %v3739, 1.0
    %v3755 = vadd.f32 %v3741, 1.0
    %v3756 = vadd.f32 %v3743, 1.0
    %v3757 = vadd.f32 %v3745, 1.0
    %v3758 = vadd.f32 %v3747, 1.0
    %v3759 = vadd.f32 %v3749, 1.0
    %v3760 = vadd.f32 %v3751, 1.0
    %v3761 = vadd.f32 %v3753, 1.0
    %v3762 = vrcp.pop %v3754
    %v3763 = vmul.f32 1.0, %v3762
    %v3764 = vrcp.pop %v3755
    %v3765 = vmul.f32 1.0, %v3764
    %v3766 = vrcp.pop %v3756
    %v3767 = vmul.f32 1.0, %v3766
    %v3768 = vrcp.pop %v3757
    %v3769 = vmul.f32 1.0, %v3768
    %v3770 = vrcp.pop %v3758
    %v3771 = vmul.f32 1.0, %v3770
    %v3772 = vrcp.pop %v3759
    %v3773 = vmul.f32 1.0, %v3772
    %v3774 = vrcp.pop %v3760
    %v3775 = vmul.f32 1.0, %v3774
    %v3776 = vrcp.pop %v3761
    %v3777 = vmul.f32 1.0, %v3776
    %v3778 = vadd.f32 %v3631, %v940
    %v3780 = vrot.slane %v3778, 1
    %v3781 = vrot.slane %v3778, 2
    %v3782 = vrot.slane %v3778, 3
    %v3783 = vrot.slane %v3778, 4
    %v3784 = vrot.slane %v3778, 5
    %v3785 = vrot.slane %v3778, 6
    %v3786 = vrot.slane %v3778, 7
    %v3795 = vmul.f32 %v3691, %v3780
    %v3796 = vmul.f32 %v3693, %v3781
    %v3797 = vmul.f32 %v3695, %v3782
    %v3798 = vmul.f32 %v3697, %v3783
    %v3799 = vmul.f32 %v3699, %v3784
    %v3800 = vmul.f32 %v3701, %v3785
    %v3801 = vmul.f32 %v3703, %v3786
    %v3802 = vmul.f32 %v3705, %v3778
    %v3803 = vadd.f32 %v563, %v3795
    %v3804 = vadd.f32 %v568, %v3796
    %v3805 = vadd.f32 %v573, %v3797
    %v3806 = vadd.f32 %v578, %v3798
    %v3807 = vadd.f32 %v583, %v3799
    %v3808 = vadd.f32 %v588, %v3800
    %v3809 = vadd.f32 %v593, %v3801
    %v3810 = vadd.f32 %v598, %v3802
    %v3811 = vtanh.pop %v3803
    %v3812 = vtanh.pop %v3804
    %v3813 = vtanh.pop %v3805
    %v3814 = vtanh.pop %v3806
    %v3815 = vtanh.pop %v3807
    %v3816 = vtanh.pop %v3808
    %v3817 = vtanh.pop %v3809
    %v3818 = vtanh.pop %v3810
    %v3819 = vsub.f32 1.0, %v3763
    %v3820 = vsub.f32 1.0, %v3765
    %v3821 = vsub.f32 1.0, %v3767
    %v3822 = vsub.f32 1.0, %v3769
    %v3823 = vsub.f32 1.0, %v3771
    %v3824 = vsub.f32 1.0, %v3773
    %v3825 = vsub.f32 1.0, %v3775
    %v3826 = vsub.f32 1.0, %v3777
    %v3827 = vmul.f32 %v3819, %v3811
    %v3828 = vmul.f32 %v3820, %v3812
    %v3829 = vmul.f32 %v3821, %v3813
    %v3830 = vmul.f32 %v3822, %v3814
    %v3831 = vmul.f32 %v3823, %v3815
    %v3832 = vmul.f32 %v3824, %v3816
    %v3833 = vmul.f32 %v3825, %v3817
    %v3834 = vmul.f32 %v3826, %v3818
    %v3835 = vrot.slane %v3454, 7
    %v3836 = vrot.slane %v3455, 7
    %v3837 = vrot.slane %v3456, 7
    %v3838 = vrot.slane %v3457, 7
    %v3839 = vrot.slane %v3458, 7
    %v3840 = vrot.slane %v3459, 7
    %v3841 = vrot.slane %v3460, 7
    %v3850 = vmul.f32 %v3763, %v3835
    %v3851 = vmul.f32 %v3765, %v3836
    %v3852 = vmul.f32 %v3767, %v3837
    %v3853 = vmul.f32 %v3769, %v3838
    %v3854 = vmul.f32 %v3771, %v3839
    %v3855 = vmul.f32 %v3773, %v3840
    %v3856 = vmul.f32 %v3775, %v3841
    %v3857 = vmul.f32 %v3777, %v3490
    %v3858 = vadd.f32 %v3827, %v3850
    %v3859 = vadd.f32 %v3828, %v3851
    %v3860 = vadd.f32 %v3829, %v3852
    %v3861 = vadd.f32 %v3830, %v3853
    %v3862 = vadd.f32 %v3831, %v3854
    %v3863 = vadd.f32 %v3832, %v3855
    %v3864 = vadd.f32 %v3833, %v3856
    %v3865 = vadd.f32 %v3834, %v3857
    %3866 = vst [vmem:[#allocation2] sm:$0x80] %v3858
    %3867 = vst [vmem:[#allocation2 + $0x8] sm:$0x80] %v3859
    %3868 = vst [vmem:[#allocation2 + $0x10] sm:$0x80] %v3860
    %3869 = vst [vmem:[#allocation2 + $0x18] sm:$0x80] %v3861
    %3870 = vst [vmem:[#allocation2 + $0x20] sm:$0x80] %v3862
    %3871 = vst [vmem:[#allocation2 + $0x28] sm:$0x80] %v3863
    %3872 = vst [vmem:[#allocation2 + $0x30] sm:$0x80] %v3864
    %3873 = vst [vmem:[#allocation2 + $0x38] sm:$0x80] %v3865
    %v3882 = vrot.slane %v3859, 7
    %v3883 = vrot.slane %v3860, 6
    %v3884 = vsel %vm1048, %v3883, %v3882
    %v3885 = vrot.slane %v3861, 5
    %v3886 = vsel %vm1051, %v3885, %v3884
    %v3887 = vrot.slane %v3862, 4
    %v3888 = vsel %vm1054, %v3887, %v3886
    %v3889 = vrot.slane %v3863, 3
    %v3890 = vsel %vm1057, %v3889, %v3888
    %v3891 = vrot.slane %v3864, 2
    %v3892 = vsel %vm1060, %v3891, %v3890
    %v3893 = vrot.slane %v3865, 1
    %v3894 = vsel %vm1063, %v3893, %v3892
    %3897 = vst [vmem:[#allocation15 - $0x7] sm:$0x80] %v3858
    %3898 = vst [vmem:[#allocation15 + $0x1] sm:$0x7f] %v3894
    %v3899 = vld [vmem:[#allocation2] sm:$0xff]
    %v3900 = vld [vmem:[#allocation2 + $0x8] sm:$0xff]
    %v3901 = vld [vmem:[#allocation2 + $0x10] sm:$0xff]
    %v3902 = vld [vmem:[#allocation2 + $0x18] sm:$0xff]
    %v3903 = vld [vmem:[#allocation2 + $0x20] sm:$0xff]
    %v3904 = vld [vmem:[#allocation2 + $0x28] sm:$0xff]
    %v3905 = vld [vmem:[#allocation2 + $0x30] sm:$0xff]
    %v3906 = vld [vmem:[#allocation2 + $0x38] sm:$0xff]
    %v3907 = vld [vmem:[#allocation12] sm:$0xff]
    %v3908 = vld [vmem:[#allocation12 + $0x8] sm:$0xff]
    %v3909 = vld [vmem:[#allocation12 + $0x10] sm:$0xff]
    %v3910 = vld [vmem:[#allocation12 + $0x18] sm:$0xff]
    %v3911 = vld [vmem:[#allocation12 + $0x20] sm:$0xff]
    %v3912 = vld [vmem:[#allocation12 + $0x28] sm:$0xff]
    %v3913 = vld [vmem:[#allocation12 + $0x30] sm:$0xff]
    %v3914 = vld [vmem:[#allocation12 + $0x38] sm:$0xff]
    %v3915 = vld [vmem:[#allocation12 + $0x40] sm:$0xff]
    %v3916 = vld [vmem:[#allocation12 + $0x48] sm:$0xff]
    %v3917 = vld [vmem:[#allocation12 + $0x50] sm:$0xff]
    %v3918 = vld [vmem:[#allocation12 + $0x58] sm:$0xff]
    %v3919 = vld [vmem:[#allocation12 + $0x60] sm:$0xff]
    %v3920 = vld [vmem:[#allocation12 + $0x68] sm:$0xff]
    %v3921 = vld [vmem:[#allocation12 + $0x70] sm:$0xff]
    %v3922 = vld [vmem:[#allocation12 + $0x78] sm:$0xff]
    %v3923 = vld [vmem:[%s8] sm:$0x1]
    %v3925 = vlaneseq
    %v3926 = vshrl.u32 %v3925, 7
    %v3927 = vsub.s32 0, %v3926
    %v3928 = vrot.slane %v3923, %v3927
    %3930 = vmatprep.subr.mxu0 0.0
    %3931 = vmatpush1.msra.mxu0 %v3922
    %3932 = vmatprep.subr.mxu0 0.0
    %3933 = vmatpush1.msra.mxu0 %v3921
    %3934 = vmatprep.subr.mxu0 0.0
    %3935 = vmatpush1.msra.mxu0 %v3920
    %3936 = vmatprep.subr.mxu0 0.0
    %3937 = vmatpush1.msra.mxu0 %v3919
    %3938 = vmatprep.subr.mxu0 0.0
    %3939 = vmatpush1.msra.mxu0 %v3918
    %3940 = vmatprep.subr.mxu0 0.0
    %3941 = vmatpush1.msra.mxu0 %v3917
    %3942 = vmatprep.subr.mxu0 0.0
    %3943 = vmatpush1.msra.mxu0 %v3916
    %3944 = vmatprep.subr.mxu0 0.0
    %3945 = vmatpush1.msra.mxu0 %v3915
    %3946 = vmatprep.subr.mxu0 0.0
    %3947 = vmatpush1.msra.mxu0 %v3914
    %3948 = vmatprep.subr.mxu0 0.0
    %3949 = vmatpush1.msra.mxu0 %v3913
    %3950 = vmatprep.subr.mxu0 0.0
    %3951 = vmatpush1.msra.mxu0 %v3912
    %3952 = vmatprep.subr.mxu0 0.0
    %3953 = vmatpush1.msra.mxu0 %v3911
    %3954 = vmatprep.subr.mxu0 0.0
    %3955 = vmatpush1.msra.mxu0 %v3910
    %3956 = vmatprep.subr.mxu0 0.0
    %3957 = vmatpush1.msra.mxu0 %v3909
    %3958 = vmatprep.subr.mxu0 0.0
    %3959 = vmatpush1.msra.mxu0 %v3908
    %3960 = vmatprep.subr.mxu0 0.0
    %3961 = vmatpush1.msra.mxu0 %v3907
    %3962 = vmatprep.subr.mxu0 0.0
    %3963 = vmatpush2.msra.mxu0 0.0
    %3964 = vmatprep.subr.mxu0 0.0
    %3965 = vmatpush2.msra.mxu0 0.0
    %3966 = vmatprep.subr.mxu0 0.0
    %3967 = vmatpush2.msra.mxu0 0.0
    %3968 = vmatprep.subr.mxu0 0.0
    %3969 = vmatpush2.msra.mxu0 0.0
    %3970 = vmatprep.subr.mxu0 0.0
    %3971 = vmatpush2.msra.mxu0 0.0
    %3972 = vmatprep.subr.mxu0 0.0
    %3973 = vmatpush2.msra.mxu0 0.0
    %3974 = vmatprep.subr.mxu0 0.0
    %3975 = vmatpush2.msra.mxu0 0.0
    %3976 = vmatprep.subr.mxu0 0.0
    %3977 = vmatpush2.msra.mxu0 0.0
    %3978 = vmatprep.subr.mxu0 0.0
    %3979 = vmatpush2.msra.mxu0 0.0
    %3980 = vmatprep.subr.mxu0 0.0
    %3981 = vmatpush2.msra.mxu0 0.0
    %3982 = vmatprep.subr.mxu0 0.0
    %3983 = vmatpush2.msra.mxu0 0.0
    %3984 = vmatprep.subr.mxu0 0.0
    %3985 = vmatpush2.msra.mxu0 0.0
    %3986 = vmatprep.subr.mxu0 0.0
    %3987 = vmatpush2.msra.mxu0 0.0
    %3988 = vmatprep.subr.mxu0 0.0
    %3989 = vmatpush2.msra.mxu0 0.0
    %3990 = vmatprep.subr.mxu0 0.0
    %3991 = vmatpush2.msra.mxu0 0.0
    %3992 = vmatprep.subr.mxu0 0.0
    %3993 = vmatpush2.msra.mxu0 0.0
    %3994 = vmatprep.mubr.f32.mxu0 0.0
    %3995 = vmatmul.mubr.f32.gmra.mxu0 %v3899
    %v3996 = vpop.f32.mrf.mxu0
    %v3997 = vadd.f32 %v3928, %v3996
    %v3998 = vpop.f32.mrf.mxu0
    %3999 = vmatprep.mubr.f32.mxu0 0.0
    %4000 = vmatmul.mubr.f32.gmra.mxu0 %v3900
    %v4001 = vpop.f32.mrf.mxu0
    %v4002 = vadd.f32 %v3928, %v4001
    %v4003 = vpop.f32.mrf.mxu0
    %4004 = vmatprep.mubr.f32.mxu0 0.0
    %4005 = vmatmul.mubr.f32.gmra.mxu0 %v3901
    %v4006 = vpop.f32.mrf.mxu0
    %v4007 = vadd.f32 %v3928, %v4006
    %v4008 = vpop.f32.mrf.mxu0
    %4009 = vmatprep.mubr.f32.mxu0 0.0
    %4010 = vmatmul.mubr.f32.gmra.mxu0 %v3902
    %v4011 = vpop.f32.mrf.mxu0
    %v4012 = vadd.f32 %v3928, %v4011
    %v4013 = vpop.f32.mrf.mxu0
    %4014 = vmatprep.mubr.f32.mxu0 0.0
    %4015 = vmatmul.mubr.f32.gmra.mxu0 %v3903
    %v4016 = vpop.f32.mrf.mxu0
    %v4017 = vadd.f32 %v3928, %v4016
    %v4018 = vpop.f32.mrf.mxu0
    %4019 = vmatprep.mubr.f32.mxu0 0.0
    %4020 = vmatmul.mubr.f32.gmra.mxu0 %v3904
    %v4021 = vpop.f32.mrf.mxu0
    %v4022 = vadd.f32 %v3928, %v4021
    %v4023 = vpop.f32.mrf.mxu0
    %4024 = vmatprep.mubr.f32.mxu0 0.0
    %4025 = vmatmul.mubr.f32.gmra.mxu0 %v3905
    %v4026 = vpop.f32.mrf.mxu0
    %v4027 = vadd.f32 %v3928, %v4026
    %v4028 = vpop.f32.mrf.mxu0
    %4029 = vmatprep.mubr.f32.mxu0 0.0
    %4030 = vmatmul.mubr.f32.gmra.mxu0 %v3906
    %v4031 = vpop.f32.mrf.mxu0
    %v4032 = vadd.f32 %v3928, %v4031
    %v4033 = vpop.f32.mrf.mxu0
    %4034 = vdwg.mxu0
    %4035 = vmax.xlane.f32.xlu0 %v3997
    %v4036 = vpop.xlane.xlu0 %4035
    %4037 = vmax.xlane.f32.xlu0 %v4002
    %v4038 = vpop.xlane.xlu0 %4037
    %4039 = vmax.xlane.f32.xlu0 %v4007
    %v4040 = vpop.xlane.xlu0 %4039
    %4041 = vmax.xlane.f32.xlu0 %v4012
    %v4042 = vpop.xlane.xlu0 %4041
    %4043 = vmax.xlane.f32.xlu0 %v4017
    %v4044 = vpop.xlane.xlu0 %4043
    %4045 = vmax.xlane.f32.xlu0 %v4022
    %v4046 = vpop.xlane.xlu0 %4045
    %4047 = vmax.xlane.f32.xlu0 %v4027
    %v4048 = vpop.xlane.xlu0 %4047
    %4049 = vmax.xlane.f32.xlu0 %v4032
    %v4050 = vpop.xlane.xlu0 %4049
    %v4051 = vsub.f32 %v3997, %v4036
    %v4052 = vsub.f32 %v4002, %v4038
    %v4053 = vsub.f32 %v4007, %v4040
    %v4054 = vsub.f32 %v4012, %v4042
    %v4055 = vsub.f32 %v4017, %v4044
    %v4056 = vsub.f32 %v4022, %v4046
    %v4057 = vsub.f32 %v4027, %v4048
    %v4058 = vsub.f32 %v4032, %v4050
    %v4059 = vmul.f32 %v4051, 1.442695
    %v4060 = vpow.pop %v4059
    %v4061 = vmul.f32 %v4052, 1.442695
    %v4062 = vpow.pop %v4061
    %v4063 = vmul.f32 %v4053, 1.442695
    %v4064 = vpow.pop %v4063
    %v4065 = vmul.f32 %v4054, 1.442695
    %v4066 = vpow.pop %v4065
    %v4067 = vmul.f32 %v4055, 1.442695
    %v4068 = vpow.pop %v4067
    %v4069 = vmul.f32 %v4056, 1.442695
    %v4070 = vpow.pop %v4069
    %v4071 = vmul.f32 %v4057, 1.442695
    %v4072 = vpow.pop %v4071
    %v4073 = vmul.f32 %v4058, 1.442695
    %v4074 = vpow.pop %v4073
    %4075 = vadd.xlane.f32.xlu0 %v4060
    %v4076 = vpop.xlane.xlu0 %4075
    %4077 = vadd.xlane.f32.xlu0 %v4062
    %v4078 = vpop.xlane.xlu0 %4077
    %4079 = vadd.xlane.f32.xlu0 %v4064
    %v4080 = vpop.xlane.xlu0 %4079
    %4081 = vadd.xlane.f32.xlu0 %v4066
    %v4082 = vpop.xlane.xlu0 %4081
    %4083 = vadd.xlane.f32.xlu0 %v4068
    %v4084 = vpop.xlane.xlu0 %4083
    %4085 = vadd.xlane.f32.xlu0 %v4070
    %v4086 = vpop.xlane.xlu0 %4085
    %4087 = vadd.xlane.f32.xlu0 %v4072
    %v4088 = vpop.xlane.xlu0 %4087
    %4089 = vadd.xlane.f32.xlu0 %v4074
    %v4090 = vpop.xlane.xlu0 %4089
    %v4091 = vlog2.pop %v4076
    %v4092 = vmul.f32 %v4091, 0.6931472
    %v4093 = vlog2.pop %v4078
    %v4094 = vmul.f32 %v4093, 0.6931472
    %v4095 = vlog2.pop %v4080
    %v4096 = vmul.f32 %v4095, 0.6931472
    %v4097 = vlog2.pop %v4082
    %v4098 = vmul.f32 %v4097, 0.6931472
    %v4099 = vlog2.pop %v4084
    %v4100 = vmul.f32 %v4099, 0.6931472
    %v4101 = vlog2.pop %v4086
    %v4102 = vmul.f32 %v4101, 0.6931472
    %v4103 = vlog2.pop %v4088
    %v4104 = vmul.f32 %v4103, 0.6931472
    %v4105 = vlog2.pop %v4090
    %v4106 = vmul.f32 %v4105, 0.6931472
    %v4107 = vadd.f32 %v4036, %v4092
    %v4108 = vadd.f32 %v4038, %v4094
    %v4109 = vadd.f32 %v4040, %v4096
    %v4110 = vadd.f32 %v4042, %v4098
    %v4111 = vadd.f32 %v4044, %v4100
    %v4112 = vadd.f32 %v4046, %v4102
    %v4113 = vadd.f32 %v4048, %v4104
    %v4114 = vadd.f32 %v4050, %v4106
    %v4115 = vsub.f32 %v3997, %v4107
    %v4116 = vsub.f32 %v4002, %v4108
    %v4117 = vsub.f32 %v4007, %v4109
    %v4118 = vsub.f32 %v4012, %v4110
    %v4119 = vsub.f32 %v4017, %v4111
    %v4120 = vsub.f32 %v4022, %v4112
    %v4121 = vsub.f32 %v4027, %v4113
    %v4122 = vsub.f32 %v4032, %v4114
    %4123 = vst [vmem:[#allocation14] sm:$0xff] %v4115
    %4124 = vst [vmem:[#allocation14 + $0x8] sm:$0xff] %v4116
    %4125 = vst [vmem:[#allocation14 + $0x10] sm:$0xff] %v4117
    %4126 = vst [vmem:[#allocation14 + $0x18] sm:$0xff] %v4118
    %4127 = vst [vmem:[#allocation14 + $0x20] sm:$0xff] %v4119
    %4128 = vst [vmem:[#allocation14 + $0x28] sm:$0xff] %v4120
    %4129 = vst [vmem:[#allocation14 + $0x30] sm:$0xff] %v4121
    %4130 = vst [vmem:[#allocation14 + $0x38] sm:$0xff] %v4122
    // Predicated region
    $region62: #{tpu_custom_call.1} parent=1 // pred_check
      _
    $region63: #{tpu_custom_call.1} parent=1 // pred_check_branch
      %4132 = sbr.rel (0) target = $region65
    $region64: #{tpu_custom_call.1} parent=1 // pred_region
      %s4134 = ssub.s32 1024, 1024
      %4135 = vsyncadd [#allocation5], %s4134
      %s4136 = sshll.u32 [#allocation14], 4
      %s4137 = int_to_ptr.vmem [resolvable:$true] %s4136
      %4142 = dma.vmem_to_hbm [thread:$0]  %s4137, 1024, %s9, [#allocation5], 128, 128, 8
    $region65: #{tpu_custom_call.1} parent=1 // pred_fallthru
      _
    // Predicated region
    $region66: #{tpu_custom_call.1} parent=1 // pred_check
      _
    $region67: #{tpu_custom_call.1} parent=1 // pred_check_branch
      %4144 = sbr.rel (0) target = $region69
    $region68: #{tpu_custom_call.1} parent=1 // pred_region
      %s4146 = ssub.s32 128, 128
      %4147 = vsyncadd [#allocation16], %s4146
      %s4149 = sshll.u32 [#allocation15], 4
      %s4150 = int_to_ptr.vmem [resolvable:$true] %s4149
      %4152 = dma.vmem_to_hbm [thread:$0]  %s4150, 128, %s10, [#allocation16]
    $region69: #{tpu_custom_call.1} parent=1 // pred_fallthru
      _
    // Predicated region
    $region70: #{tpu_custom_call.1} parent=1 // pred_check
      _
    $region71: #{tpu_custom_call.1} parent=1 // pred_check_branch
      %4154 = sbr.rel (0) target = $region73
    $region72: #{tpu_custom_call.1} parent=1 // pred_region
      %4155 = dma.done [#allocation5], 1024
    $region73: #{tpu_custom_call.1} parent=1 // pred_fallthru
      _
    // Predicated region
    $region74: #{tpu_custom_call.1} parent=1 // pred_check
      _
    $region75: #{tpu_custom_call.1} parent=1 // pred_check_branch
      %4157 = sbr.rel (0) target = $region77
    $region76: #{tpu_custom_call.1} parent=1 // pred_region
      %4158 = dma.done [#allocation16], 128
    $region77: #{tpu_custom_call.1} parent=1 // pred_fallthru
      _
    %4159 = vsyncpa [#allocation4], 1
    %4160 = vsyncpa [#allocation7], 1
    %4161 = vsyncpa [#allocation10], 1
    %4162 = vsyncpa [#allocation13], 1
    %4163 = vsyncpa [#allocation5], 1
    %4164 = vsyncpa [#allocation16], 1

</llo_original>
